<compile_context>
chip_gen: v5e
topology: v5e:2x2
jax: 0.10.0
libtpu: 0.0.40
codegen_flags: <defaults>
</compile_context>

<pallas_src>
import jax
import jax.numpy as jnp
import numpy as np
from jax import lax
from jax.experimental import pallas as pl
from jax.experimental.pallas import tpu as pltpu

C = 352          # channels (== groups, depthwise)
H = W = 7        # spatial size
HW = H * W       # flattened spatial (49)
KH = KW = 3      # kernel size
PAD = 1          # conv padding
F = W + 1        # halo on each side of the flat spatial axis (max |shift| = 8)


def _pick_channel_block():
    """CB=176 on 2-TensorCore v7x (one parallel block per core); CB=352
    (single grid step over channels) on single-TC v5e/v6e and anything else."""
    try:
        kind = jax.devices()[0].device_kind.lower()
    except Exception:
        kind = ""
    return 176 if "v7" in kind else 352


def dwconv3x3_kernel(x_ref, w_ref, o_ref):
    # x_ref: (CB, HW)   NCHW activations (spatial flattened) for one channel block
    # w_ref: (CB, 9)    per-channel 3x3 taps, row-major flattened
    # o_ref: (CB, HW)   output block
    x = x_ref[...].astype(jnp.float32)
    w = w_ref[...].astype(jnp.float32)                 # hoisted: load weights once
    cb = x.shape[0]

    # Column-validity masks, built once per grid step (not per tap).  Only a
    # column wrap can alias a valid flat index; row overflow lands in the halo.
    col = lax.broadcasted_iota(jnp.int32, (1, HW), 1) % W
    mask_nolast = (col != W - 1).astype(jnp.float32)   # zero last valid column
    mask_nofirst = (col != 0).astype(jnp.float32)      # zero first valid column

    # Fused zero padding: halo of zeros on both ends of the flat spatial axis.
    # Three source copies: plain (kw==1), last-column-zeroed (kw==0 taps),
    # first-column-zeroed (kw==2 taps).
    zpad = jnp.zeros((cb, F), jnp.float32)
    xp = jnp.concatenate([zpad, x, zpad], axis=1)                   # (CB, HW+2F)
    xp_nolast = jnp.concatenate([zpad, x * mask_nolast, zpad], axis=1)
    xp_nofirst = jnp.concatenate([zpad, x * mask_nofirst, zpad], axis=1)
    srcs = (xp_nolast, xp, xp_nofirst)                 # indexed by kw

    # Accumulator initialized with the (unmasked, unshifted) center tap.
    acc = x * w[:, 4:5]
    for kh in range(KH):                               # fully unrolled 8 taps
        for kw in range(KW):
            if kh == 1 and kw == 1:
                continue                               # center already done
            s = (kh - 1) * W + (kw - 1)                # flat-index shift
            xs = srcs[kw][:, F + s:F + s + HW]         # shifted window (CB, HW)
            t = kh * KW + kw
            acc = acc + xs * w[:, t:t + 1]             # lane-broadcast weight
    o_ref[...] = acc.astype(o_ref.dtype)


def depthwise_conv3x3(x_nchw, w_oihw, cb=None):
    """x_nchw: (N, C, H, W) float32; w_oihw: (C, 1, 3, 3) float32 (groups=C)."""
    N = x_nchw.shape[0]
    if cb is None:
        cb = _pick_channel_block()
    assert C % cb == 0 and cb % 8 == 0

    x_flat = x_nchw.reshape(N, C, HW)                  # free contiguous reshape
    w_flat = w_oihw.reshape(C, KH * KW)                # free contiguous reshape

    out_flat = pl.pallas_call(
        dwconv3x3_kernel,
        out_shape=jax.ShapeDtypeStruct((N, C, HW), x_nchw.dtype),
        grid=(N, C // cb),
        in_specs=[
            pl.BlockSpec((None, cb, HW), lambda n, c: (n, c, 0)),
            pl.BlockSpec((cb, KH * KW), lambda n, c: (c, 0)),
        ],
        out_specs=pl.BlockSpec((None, cb, HW), lambda n, c: (n, c, 0)),
        compiler_params=pltpu.CompilerParams(
            dimension_semantics=("parallel", "parallel")),
    )(x_flat, w_flat)

    return out_flat.reshape(N, C, H, W)                # free contiguous reshape


if __name__ == "__main__":
    key = jax.random.PRNGKey(0)
    kx, kw = jax.random.split(key)

    # Input matches the module's forward: [1, 352, 7, 7]
    x = jax.random.normal(kx, (1, C, H, W), dtype=jnp.float32)
    # Synthetic weights for Conv2d(352, 352, 3, groups=352, bias=False) -> (352,1,3,3)
    fan_in = 1 * KH * KW
    bound = 1.0 / np.sqrt(fan_in)
    w = jax.random.uniform(kw, (C, 1, KH, KW), dtype=jnp.float32,
                           minval=-bound, maxval=bound)

    out = depthwise_conv3x3(x, w)
    out = jax.block_until_ready(out)

    # Cross-check against XLA's grouped conv (same semantics as torch Conv2d).
    ref = lax.conv_general_dilated(
        x, w, window_strides=(1, 1), padding=((PAD, PAD), (PAD, PAD)),
        dimension_numbers=("NCHW", "OIHW", "NCHW"),
        feature_group_count=C)
    ref = jax.block_until_ready(ref)

    assert out.shape == (1, C, H, W)
    np.testing.assert_allclose(np.asarray(out), np.asarray(ref),
                               rtol=1e-5, atol=1e-5)
    print("KERNEL_OK")
</pallas_src>

<mosaic_0001>
module attributes {stable_mosaic.version = 11 : i64} {
  func.func @dwconv3x3_kernel(%arg0: i32, %arg1: i32, %arg2: memref<1x352x49xf32, #tpu.memory_space<vmem>>, %arg3: memref<352x9xf32, #tpu.memory_space<vmem>>, %arg4: memref<1x352x49xf32, #tpu.memory_space<vmem>>) attributes {dimension_semantics = [#tpu.dimension_semantics<parallel>, #tpu.dimension_semantics<parallel>], iteration_bounds = array<i64: 1, 1>, scalar_prefetch = 0 : i64, scratch_operands = 0 : i64, tpu.core_type = #tpu.core_type<tc>, window_params = [{transform_indices = @transform_0, window_bounds = array<i64: 1, 352, 49>}, {transform_indices = @transform_1, window_bounds = array<i64: 352, 9>}, {transform_indices = @transform_2, window_bounds = array<i64: 1, 352, 49>}]} {
    %c0 = arith.constant 0 : index
    %c0_0 = arith.constant 0 : index
    %c0_1 = arith.constant 0 : index
    %0 = vector.load %arg2[%c0, %c0_0, %c0_1] : memref<1x352x49xf32, #tpu.memory_space<vmem>>, vector<1x352x49xf32>
    %1 = vector.shape_cast %0 : vector<1x352x49xf32> to vector<352x49xf32>
    %c0_2 = arith.constant 0 : index
    %c0_3 = arith.constant 0 : index
    %2 = vector.load %arg3[%c0_2, %c0_3] : memref<352x9xf32, #tpu.memory_space<vmem>>, vector<352x9xf32>
    %3 = tpu.iota {dimensions = array<i32: 1>} : vector<1x49xi32>
    %c7_i32 = arith.constant 7 : i32
    %c0_i32 = arith.constant 0 : i32
    %4 = arith.cmpi eq, %c7_i32, %c0_i32 : i32
    %c1_i32 = arith.constant 1 : i32
    %5 = arith.select %4, %c1_i32, %c7_i32 : i32
    %6 = vector.broadcast %5 : i32 to vector<1x49xi32>
    %7 = arith.remsi %3, %6 : vector<1x49xi32>
    %c0_i32_4 = arith.constant 0 : i32
    %8 = vector.broadcast %c0_i32_4 : i32 to vector<1x49xi32>
    %9 = arith.cmpi ne, %7, %8 : vector<1x49xi32>
    %c0_i32_5 = arith.constant 0 : i32
    %10 = vector.broadcast %c0_i32_5 : i32 to vector<1x49xi32>
    %11 = arith.cmpi slt, %7, %10 : vector<1x49xi32>
    %c0_i32_6 = arith.constant 0 : i32
    %12 = arith.cmpi slt, %5, %c0_i32_6 : i32
    %13 = vector.broadcast %12 : i1 to vector<1x49xi1>
    %14 = vector.broadcast %13 : vector<1x49xi1> to vector<1x49xi1>
    %15 = arith.xori %11, %14 : vector<1x49xi1>
    %16 = arith.andi %15, %9 : vector<1x49xi1>
    %17 = vector.broadcast %5 : i32 to vector<1x49xi32>
    %18 = arith.addi %7, %17 : vector<1x49xi32>
    %19 = arith.select %16, %18, %7 : vector<1x49xi1>, vector<1x49xi32>
    %c6_i32 = arith.constant 6 : i32
    %20 = vector.broadcast %c6_i32 : i32 to vector<1x49xi32>
    %21 = arith.cmpi ne, %19, %20 : vector<1x49xi32>
    %22 = arith.extui %21 : vector<1x49xi1> to vector<1x49xi32>
    %23 = arith.sitofp %22 : vector<1x49xi32> to vector<1x49xf32>
    %c0_i32_7 = arith.constant 0 : i32
    %24 = vector.broadcast %c0_i32_7 : i32 to vector<1x49xi32>
    %25 = arith.cmpi ne, %19, %24 : vector<1x49xi32>
    %26 = arith.extui %25 : vector<1x49xi1> to vector<1x49xi32>
    %27 = arith.sitofp %26 : vector<1x49xi32> to vector<1x49xf32>
    %cst = arith.constant 0.000000e+00 : f32
    %28 = vector.broadcast %cst : f32 to vector<352x8xf32>
    %29 = tpu.concatenate %28, %1, %28 in 1 : vector<352x8xf32>, vector<352x49xf32>, vector<352x8xf32> -> vector<352x65xf32>
    %30 = vector.broadcast %23 : vector<1x49xf32> to vector<352x49xf32>
    %31 = arith.mulf %1, %30 : vector<352x49xf32>
    %32 = tpu.concatenate %28, %31, %28 in 1 : vector<352x8xf32>, vector<352x49xf32>, vector<352x8xf32> -> vector<352x65xf32>
    %33 = vector.broadcast %27 : vector<1x49xf32> to vector<352x49xf32>
    %34 = arith.mulf %1, %33 : vector<352x49xf32>
    %35 = tpu.concatenate %28, %34, %28 in 1 : vector<352x8xf32>, vector<352x49xf32>, vector<352x8xf32> -> vector<352x65xf32>
    %36 = vector.extract_strided_slice %2 {offsets = [0, 4], sizes = [352, 1], strides = [1, 1]} : vector<352x9xf32> to vector<352x1xf32>
    %37 = vector.broadcast %36 : vector<352x1xf32> to vector<352x49xf32>
    %38 = arith.mulf %1, %37 : vector<352x49xf32>
    %39 = vector.extract_strided_slice %32 {offsets = [0, 0], sizes = [352, 49], strides = [1, 1]} : vector<352x65xf32> to vector<352x49xf32>
    %40 = vector.extract_strided_slice %2 {offsets = [0, 0], sizes = [352, 1], strides = [1, 1]} : vector<352x9xf32> to vector<352x1xf32>
    %41 = vector.broadcast %40 : vector<352x1xf32> to vector<352x49xf32>
    %42 = arith.mulf %39, %41 : vector<352x49xf32>
    %43 = arith.addf %38, %42 : vector<352x49xf32>
    %44 = vector.extract_strided_slice %29 {offsets = [0, 1], sizes = [352, 49], strides = [1, 1]} : vector<352x65xf32> to vector<352x49xf32>
    %45 = vector.extract_strided_slice %2 {offsets = [0, 1], sizes = [352, 1], strides = [1, 1]} : vector<352x9xf32> to vector<352x1xf32>
    %46 = vector.broadcast %45 : vector<352x1xf32> to vector<352x49xf32>
    %47 = arith.mulf %44, %46 : vector<352x49xf32>
    %48 = arith.addf %43, %47 : vector<352x49xf32>
    %49 = vector.extract_strided_slice %35 {offsets = [0, 2], sizes = [352, 49], strides = [1, 1]} : vector<352x65xf32> to vector<352x49xf32>
    %50 = vector.extract_strided_slice %2 {offsets = [0, 2], sizes = [352, 1], strides = [1, 1]} : vector<352x9xf32> to vector<352x1xf32>
    %51 = vector.broadcast %50 : vector<352x1xf32> to vector<352x49xf32>
    %52 = arith.mulf %49, %51 : vector<352x49xf32>
    %53 = arith.addf %48, %52 : vector<352x49xf32>
    %54 = vector.extract_strided_slice %32 {offsets = [0, 7], sizes = [352, 49], strides = [1, 1]} : vector<352x65xf32> to vector<352x49xf32>
    %55 = vector.extract_strided_slice %2 {offsets = [0, 3], sizes = [352, 1], strides = [1, 1]} : vector<352x9xf32> to vector<352x1xf32>
    %56 = vector.broadcast %55 : vector<352x1xf32> to vector<352x49xf32>
    %57 = arith.mulf %54, %56 : vector<352x49xf32>
    %58 = arith.addf %53, %57 : vector<352x49xf32>
    %59 = vector.extract_strided_slice %35 {offsets = [0, 9], sizes = [352, 49], strides = [1, 1]} : vector<352x65xf32> to vector<352x49xf32>
    %60 = vector.extract_strided_slice %2 {offsets = [0, 5], sizes = [352, 1], strides = [1, 1]} : vector<352x9xf32> to vector<352x1xf32>
    %61 = vector.broadcast %60 : vector<352x1xf32> to vector<352x49xf32>
    %62 = arith.mulf %59, %61 : vector<352x49xf32>
    %63 = arith.addf %58, %62 : vector<352x49xf32>
    %64 = vector.extract_strided_slice %32 {offsets = [0, 14], sizes = [352, 49], strides = [1, 1]} : vector<352x65xf32> to vector<352x49xf32>
    %65 = vector.extract_strided_slice %2 {offsets = [0, 6], sizes = [352, 1], strides = [1, 1]} : vector<352x9xf32> to vector<352x1xf32>
    %66 = vector.broadcast %65 : vector<352x1xf32> to vector<352x49xf32>
    %67 = arith.mulf %64, %66 : vector<352x49xf32>
    %68 = arith.addf %63, %67 : vector<352x49xf32>
    %69 = vector.extract_strided_slice %29 {offsets = [0, 15], sizes = [352, 49], strides = [1, 1]} : vector<352x65xf32> to vector<352x49xf32>
    %70 = vector.extract_strided_slice %2 {offsets = [0, 7], sizes = [352, 1], strides = [1, 1]} : vector<352x9xf32> to vector<352x1xf32>
    %71 = vector.broadcast %70 : vector<352x1xf32> to vector<352x49xf32>
    %72 = arith.mulf %69, %71 : vector<352x49xf32>
    %73 = arith.addf %68, %72 : vector<352x49xf32>
    %74 = vector.extract_strided_slice %35 {offsets = [0, 16], sizes = [352, 49], strides = [1, 1]} : vector<352x65xf32> to vector<352x49xf32>
    %75 = vector.extract_strided_slice %2 {offsets = [0, 8], sizes = [352, 1], strides = [1, 1]} : vector<352x9xf32> to vector<352x1xf32>
    %76 = vector.broadcast %75 : vector<352x1xf32> to vector<352x49xf32>
    %77 = arith.mulf %74, %76 : vector<352x49xf32>
    %78 = arith.addf %73, %77 : vector<352x49xf32>
    %c0_8 = arith.constant 0 : index
    %c0_9 = arith.constant 0 : index
    %c0_10 = arith.constant 0 : index
    %79 = vector.load %arg4[%c0_8, %c0_9, %c0_10] : memref<1x352x49xf32, #tpu.memory_space<vmem>>, vector<1x352x49xf32>
    %80 = vector.shape_cast %79 : vector<1x352x49xf32> to vector<352x49xf32>
    %81 = vector.shape_cast %78 : vector<352x49xf32> to vector<1x352x49xf32>
    tpu.vector_store %arg4[%c0_8, %c0_9, %c0_10], %81 {strides = array<i32>} : memref<1x352x49xf32, #tpu.memory_space<vmem>>, vector<1x352x49xf32>,
    return
  }
  func.func @transform_0(%arg0: i32, %arg1: i32) -> (i32, i32, i32) {
    %c0_i32 = arith.constant 0 : i32
    %c0_i32_0 = arith.constant 0 : i32
    return %arg0, %arg1, %c0_i32 : i32, i32, i32
  }
  func.func @transform_1(%arg0: i32, %arg1: i32) -> (i32, i32) {
    %c0_i32 = arith.constant 0 : i32
    %c0_i32_0 = arith.constant 0 : i32
    return %arg1, %c0_i32 : i32, i32
  }
  func.func @transform_2(%arg0: i32, %arg1: i32) -> (i32, i32, i32) {
    %c0_i32 = arith.constant 0 : i32
    %c0_i32_0 = arith.constant 0 : i32
    return %arg0, %arg1, %c0_i32 : i32, i32, i32
  }
}

</mosaic_0001>

<llo_original>
// kernel: tpu_custom_call.1
$region0: #{tpu_custom_call.1}
  #allocation0 [shape = 'u32[]', space=smem, size = 0x4, offset = 0x4, fixed_abs, tag = 'smem constant byte address 0x4 - core index']
  #allocation1 [shape = 'u32[72,128]{1,0:T(1,128)}', space=vmem, size = 0x9000, scoped, tag = 'internal scratch']
  %s0 = inlined_call_operand.vmem [shape: f32[1,352,49], index: 0, kind: input, shape index: {}]
  %s1 = inlined_call_operand.vmem [shape: f32[352,9], index: 1, kind: input, shape index: {}]
  %s2 = inlined_call_operand.vmem [shape: f32[1,352,49], index: 2, kind: output, shape index: {}]
  %s3 = sld [smem:[#allocation0]]
  $region18: #{tpu_custom_call.1} parent=0
    _
  %s5 = ssub.s32 1, %s3
  %s6 = scalar_select 0, %s5, %s3
  // Predicated region
  $region2: #{tpu_custom_call.1} parent=0 // pred_check
    _
  $region3: #{tpu_custom_call.1} parent=0 // pred_check_branch
    %8 = sbr.rel (0) target = $region5
  $region4: #{tpu_custom_call.1} parent=0 // pred_region
    _
  $region5: #{tpu_custom_call.1} parent=0 // pred_fallthru
    _
  // Predicated region
  $region6: #{tpu_custom_call.1} parent=0 // pred_check
    _
  $region7: #{tpu_custom_call.1} parent=0 // pred_check_branch
    %10 = sbr.rel (0) target = $region9
  $region8: #{tpu_custom_call.1} parent=0 // pred_region
    _
  $region9: #{tpu_custom_call.1} parent=0 // pred_fallthru
    _
  %v11 = vld [vmem:[%s0] sm:$0xff]
  %v12 = vld [vmem:[%s0 + $0x8] sm:$0xff]
  %v13 = vld [vmem:[%s0 + $0x10] sm:$0xff]
  %v14 = vld [vmem:[%s0 + $0x18] sm:$0xff]
  %v15 = vld [vmem:[%s0 + $0x20] sm:$0xff]
  %v16 = vld [vmem:[%s0 + $0x28] sm:$0xff]
  %v17 = vld [vmem:[%s0 + $0x30] sm:$0xff]
  %v18 = vld [vmem:[%s0 + $0x38] sm:$0xff]
  %v19 = vld [vmem:[%s0 + $0x40] sm:$0xff]
  %v20 = vld [vmem:[%s0 + $0x48] sm:$0xff]
  %v21 = vld [vmem:[%s0 + $0x50] sm:$0xff]
  %v22 = vld [vmem:[%s0 + $0x58] sm:$0xff]
  %v23 = vld [vmem:[%s0 + $0x60] sm:$0xff]
  %v24 = vld [vmem:[%s0 + $0x68] sm:$0xff]
  %v25 = vld [vmem:[%s0 + $0x70] sm:$0xff]
  %v26 = vld [vmem:[%s0 + $0x78] sm:$0xff]
  %v27 = vld [vmem:[%s0 + $0x80] sm:$0xff]
  %v28 = vld [vmem:[%s0 + $0x88] sm:$0xff]
  %v29 = vld [vmem:[%s0 + $0x90] sm:$0xff]
  %v30 = vld [vmem:[%s0 + $0x98] sm:$0xff]
  %v31 = vld [vmem:[%s0 + $0xa0] sm:$0xff]
  %v32 = vld [vmem:[%s0 + $0xa8] sm:$0xff]
  %v33 = vld [vmem:[%s0 + $0xb0] sm:$0xff]
  %v34 = vld [vmem:[%s0 + $0xb8] sm:$0xff]
  %v35 = vld [vmem:[%s0 + $0xc0] sm:$0xff]
  %v36 = vld [vmem:[%s0 + $0xc8] sm:$0xff]
  %v37 = vld [vmem:[%s0 + $0xd0] sm:$0xff]
  %v38 = vld [vmem:[%s0 + $0xd8] sm:$0xff]
  %v39 = vld [vmem:[%s0 + $0xe0] sm:$0xff]
  %v40 = vld [vmem:[%s0 + $0xe8] sm:$0xff]
  %v41 = vld [vmem:[%s0 + $0xf0] sm:$0xff]
  %v42 = vld [vmem:[%s0 + $0xf8] sm:$0xff]
  %v43 = vld [vmem:[%s0 + $0x100] sm:$0xff]
  %v44 = vld [vmem:[%s0 + $0x108] sm:$0xff]
  %v45 = vld [vmem:[%s0 + $0x110] sm:$0xff]
  %v46 = vld [vmem:[%s0 + $0x118] sm:$0xff]
  %v47 = vld [vmem:[%s0 + $0x120] sm:$0xff]
  %v48 = vld [vmem:[%s0 + $0x128] sm:$0xff]
  %v49 = vld [vmem:[%s0 + $0x130] sm:$0xff]
  %v50 = vld [vmem:[%s0 + $0x138] sm:$0xff]
  %v51 = vld [vmem:[%s0 + $0x140] sm:$0xff]
  %v52 = vld [vmem:[%s0 + $0x148] sm:$0xff]
  %v53 = vld [vmem:[%s0 + $0x150] sm:$0xff]
  %v54 = vld [vmem:[%s0 + $0x158] sm:$0xff]
  %v55 = vld [vmem:[%s1] sm:$0xff]
  %v56 = vld [vmem:[%s1 + $0x8] sm:$0xff]
  %v57 = vld [vmem:[%s1 + $0x10] sm:$0xff]
  %v58 = vld [vmem:[%s1 + $0x18] sm:$0xff]
  %v59 = vld [vmem:[%s1 + $0x20] sm:$0xff]
  %v60 = vld [vmem:[%s1 + $0x28] sm:$0xff]
  %v61 = vld [vmem:[%s1 + $0x30] sm:$0xff]
  %v62 = vld [vmem:[%s1 + $0x38] sm:$0xff]
  %v63 = vld [vmem:[%s1 + $0x40] sm:$0xff]
  %v64 = vld [vmem:[%s1 + $0x48] sm:$0xff]
  %v65 = vld [vmem:[%s1 + $0x50] sm:$0xff]
  %v66 = vld [vmem:[%s1 + $0x58] sm:$0xff]
  %v67 = vld [vmem:[%s1 + $0x60] sm:$0xff]
  %v68 = vld [vmem:[%s1 + $0x68] sm:$0xff]
  %v69 = vld [vmem:[%s1 + $0x70] sm:$0xff]
  %v70 = vld [vmem:[%s1 + $0x78] sm:$0xff]
  %v71 = vld [vmem:[%s1 + $0x80] sm:$0xff]
  %v72 = vld [vmem:[%s1 + $0x88] sm:$0xff]
  %v73 = vld [vmem:[%s1 + $0x90] sm:$0xff]
  %v74 = vld [vmem:[%s1 + $0x98] sm:$0xff]
  %v75 = vld [vmem:[%s1 + $0xa0] sm:$0xff]
  %v76 = vld [vmem:[%s1 + $0xa8] sm:$0xff]
  %v77 = vld [vmem:[%s1 + $0xb0] sm:$0xff]
  %v78 = vld [vmem:[%s1 + $0xb8] sm:$0xff]
  %v79 = vld [vmem:[%s1 + $0xc0] sm:$0xff]
  %v80 = vld [vmem:[%s1 + $0xc8] sm:$0xff]
  %v81 = vld [vmem:[%s1 + $0xd0] sm:$0xff]
  %v82 = vld [vmem:[%s1 + $0xd8] sm:$0xff]
  %v83 = vld [vmem:[%s1 + $0xe0] sm:$0xff]
  %v84 = vld [vmem:[%s1 + $0xe8] sm:$0xff]
  %v85 = vld [vmem:[%s1 + $0xf0] sm:$0xff]
  %v86 = vld [vmem:[%s1 + $0xf8] sm:$0xff]
  %v87 = vld [vmem:[%s1 + $0x100] sm:$0xff]
  %v88 = vld [vmem:[%s1 + $0x108] sm:$0xff]
  %v89 = vld [vmem:[%s1 + $0x110] sm:$0xff]
  %v90 = vld [vmem:[%s1 + $0x118] sm:$0xff]
  %v91 = vld [vmem:[%s1 + $0x120] sm:$0xff]
  %v92 = vld [vmem:[%s1 + $0x128] sm:$0xff]
  %v93 = vld [vmem:[%s1 + $0x130] sm:$0xff]
  %v94 = vld [vmem:[%s1 + $0x138] sm:$0xff]
  %v95 = vld [vmem:[%s1 + $0x140] sm:$0xff]
  %v96 = vld [vmem:[%s1 + $0x148] sm:$0xff]
  %v97 = vld [vmem:[%s1 + $0x150] sm:$0xff]
  %v98 = vld [vmem:[%s1 + $0x158] sm:$0xff]
  %v99 = vlaneseq
  %v100 = vand.u32 %v99, 127
  %vm101 = vcmp.lt.s32.totalorder %v100, 0
  %v102 = vsub.s32 0, %v100
  %v103 = vsel %vm101, %v102, %v100
  %v104 = vand.u32 %v103, 65535
  %v105 = vshrl.u32 %v103, 16
  %v107 = vmul.u32 %v104, 9362
  %v108 = vmul.u32 %v104, 37449
  %v109 = vmul.u32 %v105, 9362
  %v110 = vmul.u32 %v105, 37449
  %v111 = vshll.u32 %v108, 16
  %v112 = vshrl.u32 %v108, 16
  %v113 = vshll.u32 %v109, 16
  %v114 = vshrl.u32 %v109, 16
  %vm115 = vc.u32 %v107, %v111
  %v116 = vsel %vm115, 1, 0
  %v117 = vadd.s32 %v107, %v111
  %v118 = vadd.s32 %v110, %v116
  %vm119 = vc.u32 %v117, %v113
  %v120 = vsel %vm119, 1, 0
  %v121 = vadd.s32 %v117, %v113
  %v122 = vadd.s32 %v118, %v120
  %v123 = vadd.s32 %v122, %v112
  %v124 = vadd.s32 %v123, %v114
  %vm125 = vc.u32 %v121, 2454267026
  %v126 = vsel %vm125, 1, 0
  %v127 = vadd.s32 %v124, %v126
  %v128 = vshrl.u32 %v127, 2
  %v129 = vmul.u32 %v128, 7
  %v130 = vsub.s32 %v103, %v129
  %v131 = vsub.s32 0, %v130
  %v132 = vsel %vm101, %v131, %v130
  %vm133 = vcmp.ne.s32.totalorder %v132, 0
  %vm134 = vcmp.lt.s32.totalorder %v132, 0
  %vm135 = vmand %vm134, %vm133
  %v136 = vadd.s32 %v132, 7
  %v137 = vsel %vm135, %v136, %v132
  %vm138 = vcmp.ne.s32.totalorder %v137, 6
  %v139 = vsel %vm138, 1, 0
  %v140 = vcvt.s32.f32 %v139
  %vm141 = vcmp.ne.s32.totalorder %v137, 0
  %v142 = vsel %vm141, 1, 0
  %v143 = vcvt.s32.f32 %v142
  %188 = vrot.lane.b32.xlu0 %v11, 8
  %v189 = vpop.permute.xlu0 %188
  %190 = vrot.lane.b32.xlu0 %v12, 8
  %v191 = vpop.permute.xlu0 %190
  %192 = vrot.lane.b32.xlu0 %v13, 8
  %v193 = vpop.permute.xlu0 %192
  %194 = vrot.lane.b32.xlu0 %v14, 8
  %v195 = vpop.permute.xlu0 %194
  %196 = vrot.lane.b32.xlu0 %v15, 8
  %v197 = vpop.permute.xlu0 %196
  %198 = vrot.lane.b32.xlu0 %v16, 8
  %v199 = vpop.permute.xlu0 %198
  %200 = vrot.lane.b32.xlu0 %v17, 8
  %v201 = vpop.permute.xlu0 %200
  %202 = vrot.lane.b32.xlu0 %v18, 8
  %v203 = vpop.permute.xlu0 %202
  %204 = vrot.lane.b32.xlu0 %v19, 8
  %v205 = vpop.permute.xlu0 %204
  %206 = vrot.lane.b32.xlu0 %v20, 8
  %v207 = vpop.permute.xlu0 %206
  %208 = vrot.lane.b32.xlu0 %v21, 8
  %v209 = vpop.permute.xlu0 %208
  %210 = vrot.lane.b32.xlu0 %v22, 8
  %v211 = vpop.permute.xlu0 %210
  %212 = vrot.lane.b32.xlu0 %v23, 8
  %v213 = vpop.permute.xlu0 %212
  %214 = vrot.lane.b32.xlu0 %v24, 8
  %v215 = vpop.permute.xlu0 %214
  %216 = vrot.lane.b32.xlu0 %v25, 8
  %v217 = vpop.permute.xlu0 %216
  %218 = vrot.lane.b32.xlu0 %v26, 8
  %v219 = vpop.permute.xlu0 %218
  %220 = vrot.lane.b32.xlu0 %v27, 8
  %v221 = vpop.permute.xlu0 %220
  %222 = vrot.lane.b32.xlu0 %v28, 8
  %v223 = vpop.permute.xlu0 %222
  %224 = vrot.lane.b32.xlu0 %v29, 8
  %v225 = vpop.permute.xlu0 %224
  %226 = vrot.lane.b32.xlu0 %v30, 8
  %v227 = vpop.permute.xlu0 %226
  %228 = vrot.lane.b32.xlu0 %v31, 8
  %v229 = vpop.permute.xlu0 %228
  %230 = vrot.lane.b32.xlu0 %v32, 8
  %v231 = vpop.permute.xlu0 %230
  %232 = vrot.lane.b32.xlu0 %v33, 8
  %v233 = vpop.permute.xlu0 %232
  %234 = vrot.lane.b32.xlu0 %v34, 8
  %v235 = vpop.permute.xlu0 %234
  %236 = vrot.lane.b32.xlu0 %v35, 8
  %v237 = vpop.permute.xlu0 %236
  %238 = vrot.lane.b32.xlu0 %v36, 8
  %v239 = vpop.permute.xlu0 %238
  %240 = vrot.lane.b32.xlu0 %v37, 8
  %v241 = vpop.permute.xlu0 %240
  %242 = vrot.lane.b32.xlu0 %v38, 8
  %v243 = vpop.permute.xlu0 %242
  %244 = vrot.lane.b32.xlu0 %v39, 8
  %v245 = vpop.permute.xlu0 %244
  %246 = vrot.lane.b32.xlu0 %v40, 8
  %v247 = vpop.permute.xlu0 %246
  %248 = vrot.lane.b32.xlu0 %v41, 8
  %v249 = vpop.permute.xlu0 %248
  %250 = vrot.lane.b32.xlu0 %v42, 8
  %v251 = vpop.permute.xlu0 %250
  %252 = vrot.lane.b32.xlu0 %v43, 8
  %v253 = vpop.permute.xlu0 %252
  %254 = vrot.lane.b32.xlu0 %v44, 8
  %v255 = vpop.permute.xlu0 %254
  %256 = vrot.lane.b32.xlu0 %v45, 8
  %v257 = vpop.permute.xlu0 %256
  %258 = vrot.lane.b32.xlu0 %v46, 8
  %v259 = vpop.permute.xlu0 %258
  %260 = vrot.lane.b32.xlu0 %v47, 8
  %v261 = vpop.permute.xlu0 %260
  %262 = vrot.lane.b32.xlu0 %v48, 8
  %v263 = vpop.permute.xlu0 %262
  %264 = vrot.lane.b32.xlu0 %v49, 8
  %v265 = vpop.permute.xlu0 %264
  %266 = vrot.lane.b32.xlu0 %v50, 8
  %v267 = vpop.permute.xlu0 %266
  %268 = vrot.lane.b32.xlu0 %v51, 8
  %v269 = vpop.permute.xlu0 %268
  %270 = vrot.lane.b32.xlu0 %v52, 8
  %v271 = vpop.permute.xlu0 %270
  %272 = vrot.lane.b32.xlu0 %v53, 8
  %v273 = vpop.permute.xlu0 %272
  %274 = vrot.lane.b32.xlu0 %v54, 8
  %v275 = vpop.permute.xlu0 %274
  %vm320 = vcmask 64512
  %v321 = vsel %vm320, 0.0, %v189
  %v322 = vsel %vm320, 0.0, %v191
  %v323 = vsel %vm320, 0.0, %v193
  %v324 = vsel %vm320, 0.0, %v195
  %v325 = vsel %vm320, 0.0, %v197
  %v326 = vsel %vm320, 0.0, %v199
  %v327 = vsel %vm320, 0.0, %v201
  %v328 = vsel %vm320, 0.0, %v203
  %v329 = vsel %vm320, 0.0, %v205
  %v330 = vsel %vm320, 0.0, %v207
  %v331 = vsel %vm320, 0.0, %v209
  %v332 = vsel %vm320, 0.0, %v211
  %v333 = vsel %vm320, 0.0, %v213
  %v334 = vsel %vm320, 0.0, %v215
  %v335 = vsel %vm320, 0.0, %v217
  %v336 = vsel %vm320, 0.0, %v219
  %v337 = vsel %vm320, 0.0, %v221
  %v338 = vsel %vm320, 0.0, %v223
  %v339 = vsel %vm320, 0.0, %v225
  %v340 = vsel %vm320, 0.0, %v227
  %v341 = vsel %vm320, 0.0, %v229
  %v342 = vsel %vm320, 0.0, %v231
  %v343 = vsel %vm320, 0.0, %v233
  %v344 = vsel %vm320, 0.0, %v235
  %v345 = vsel %vm320, 0.0, %v237
  %v346 = vsel %vm320, 0.0, %v239
  %v347 = vsel %vm320, 0.0, %v241
  %v348 = vsel %vm320, 0.0, %v243
  %v349 = vsel %vm320, 0.0, %v245
  %v350 = vsel %vm320, 0.0, %v247
  %v351 = vsel %vm320, 0.0, %v249
  %v352 = vsel %vm320, 0.0, %v251
  %v353 = vsel %vm320, 0.0, %v253
  %v354 = vsel %vm320, 0.0, %v255
  %v355 = vsel %vm320, 0.0, %v257
  %v356 = vsel %vm320, 0.0, %v259
  %v357 = vsel %vm320, 0.0, %v261
  %v358 = vsel %vm320, 0.0, %v263
  %v359 = vsel %vm320, 0.0, %v265
  %v360 = vsel %vm320, 0.0, %v267
  %v361 = vsel %vm320, 0.0, %v269
  %v362 = vsel %vm320, 0.0, %v271
  %v363 = vsel %vm320, 0.0, %v273
  %v364 = vsel %vm320, 0.0, %v275
  %vm365 = vcmask 465920
  %v366 = vsel %vm365, %v321, 0.0
  %v367 = vsel %vm365, %v322, 0.0
  %v368 = vsel %vm365, %v323, 0.0
  %v369 = vsel %vm365, %v324, 0.0
  %v370 = vsel %vm365, %v325, 0.0
  %v371 = vsel %vm365, %v326, 0.0
  %v372 = vsel %vm365, %v327, 0.0
  %v373 = vsel %vm365, %v328, 0.0
  %v374 = vsel %vm365, %v329, 0.0
  %v375 = vsel %vm365, %v330, 0.0
  %v376 = vsel %vm365, %v331, 0.0
  %v377 = vsel %vm365, %v332, 0.0
  %v378 = vsel %vm365, %v333, 0.0
  %v379 = vsel %vm365, %v334, 0.0
  %v380 = vsel %vm365, %v335, 0.0
  %v381 = vsel %vm365, %v336, 0.0
  %v382 = vsel %vm365, %v337, 0.0
  %v383 = vsel %vm365, %v338, 0.0
  %v384 = vsel %vm365, %v339, 0.0
  %v385 = vsel %vm365, %v340, 0.0
  %v386 = vsel %vm365, %v341, 0.0
  %v387 = vsel %vm365, %v342, 0.0
  %v388 = vsel %vm365, %v343, 0.0
  %v389 = vsel %vm365, %v344, 0.0
  %v390 = vsel %vm365, %v345, 0.0
  %v391 = vsel %vm365, %v346, 0.0
  %v392 = vsel %vm365, %v347, 0.0
  %v393 = vsel %vm365, %v348, 0.0
  %v394 = vsel %vm365, %v349, 0.0
  %v395 = vsel %vm365, %v350, 0.0
  %v396 = vsel %vm365, %v351, 0.0
  %v397 = vsel %vm365, %v352, 0.0
  %v398 = vsel %vm365, %v353, 0.0
  %v399 = vsel %vm365, %v354, 0.0
  %v400 = vsel %vm365, %v355, 0.0
  %v401 = vsel %vm365, %v356, 0.0
  %v402 = vsel %vm365, %v357, 0.0
  %v403 = vsel %vm365, %v358, 0.0
  %v404 = vsel %vm365, %v359, 0.0
  %v405 = vsel %vm365, %v360, 0.0
  %v406 = vsel %vm365, %v361, 0.0
  %v407 = vsel %vm365, %v362, 0.0
  %v408 = vsel %vm365, %v363, 0.0
  %v409 = vsel %vm365, %v364, 0.0
  %v410 = vmul.f32 %v11, %v140
  %v411 = vmul.f32 %v12, %v140
  %v412 = vmul.f32 %v13, %v140
  %v413 = vmul.f32 %v14, %v140
  %v414 = vmul.f32 %v15, %v140
  %v415 = vmul.f32 %v16, %v140
  %v416 = vmul.f32 %v17, %v140
  %v417 = vmul.f32 %v18, %v140
  %v418 = vmul.f32 %v19, %v140
  %v419 = vmul.f32 %v20, %v140
  %v420 = vmul.f32 %v21, %v140
  %v421 = vmul.f32 %v22, %v140
  %v422 = vmul.f32 %v23, %v140
  %v423 = vmul.f32 %v24, %v140
  %v424 = vmul.f32 %v25, %v140
  %v425 = vmul.f32 %v26, %v140
  %v426 = vmul.f32 %v27, %v140
  %v427 = vmul.f32 %v28, %v140
  %v428 = vmul.f32 %v29, %v140
  %v429 = vmul.f32 %v30, %v140
  %v430 = vmul.f32 %v31, %v140
  %v431 = vmul.f32 %v32, %v140
  %v432 = vmul.f32 %v33, %v140
  %v433 = vmul.f32 %v34, %v140
  %v434 = vmul.f32 %v35, %v140
  %v435 = vmul.f32 %v36, %v140
  %v436 = vmul.f32 %v37, %v140
  %v437 = vmul.f32 %v38, %v140
  %v438 = vmul.f32 %v39, %v140
  %v439 = vmul.f32 %v40, %v140
  %v440 = vmul.f32 %v41, %v140
  %v441 = vmul.f32 %v42, %v140
  %v442 = vmul.f32 %v43, %v140
  %v443 = vmul.f32 %v44, %v140
  %v444 = vmul.f32 %v45, %v140
  %v445 = vmul.f32 %v46, %v140
  %v446 = vmul.f32 %v47, %v140
  %v447 = vmul.f32 %v48, %v140
  %v448 = vmul.f32 %v49, %v140
  %v449 = vmul.f32 %v50, %v140
  %v450 = vmul.f32 %v51, %v140
  %v451 = vmul.f32 %v52, %v140
  %v452 = vmul.f32 %v53, %v140
  %v453 = vmul.f32 %v54, %v140
  %498 = vrot.lane.b32.xlu0 %v410, 8
  %v499 = vpop.permute.xlu0 %498
  %500 = vrot.lane.b32.xlu0 %v411, 8
  %v501 = vpop.permute.xlu0 %500
  %502 = vrot.lane.b32.xlu0 %v412, 8
  %v503 = vpop.permute.xlu0 %502
  %504 = vrot.lane.b32.xlu0 %v413, 8
  %v505 = vpop.permute.xlu0 %504
  %506 = vrot.lane.b32.xlu0 %v414, 8
  %v507 = vpop.permute.xlu0 %506
  %508 = vrot.lane.b32.xlu0 %v415, 8
  %v509 = vpop.permute.xlu0 %508
  %510 = vrot.lane.b32.xlu0 %v416, 8
  %v511 = vpop.permute.xlu0 %510
  %512 = vrot.lane.b32.xlu0 %v417, 8
  %v513 = vpop.permute.xlu0 %512
  %514 = vrot.lane.b32.xlu0 %v418, 8
  %v515 = vpop.permute.xlu0 %514
  %516 = vrot.lane.b32.xlu0 %v419, 8
  %v517 = vpop.permute.xlu0 %516
  %518 = vrot.lane.b32.xlu0 %v420, 8
  %v519 = vpop.permute.xlu0 %518
  %520 = vrot.lane.b32.xlu0 %v421, 8
  %v521 = vpop.permute.xlu0 %520
  %522 = vrot.lane.b32.xlu0 %v422, 8
  %v523 = vpop.permute.xlu0 %522
  %524 = vrot.lane.b32.xlu0 %v423, 8
  %v525 = vpop.permute.xlu0 %524
  %526 = vrot.lane.b32.xlu0 %v424, 8
  %v527 = vpop.permute.xlu0 %526
  %528 = vrot.lane.b32.xlu0 %v425, 8
  %v529 = vpop.permute.xlu0 %528
  %530 = vrot.lane.b32.xlu0 %v426, 8
  %v531 = vpop.permute.xlu0 %530
  %532 = vrot.lane.b32.xlu0 %v427, 8
  %v533 = vpop.permute.xlu0 %532
  %534 = vrot.lane.b32.xlu0 %v428, 8
  %v535 = vpop.permute.xlu0 %534
  %536 = vrot.lane.b32.xlu0 %v429, 8
  %v537 = vpop.permute.xlu0 %536
  %538 = vrot.lane.b32.xlu0 %v430, 8
  %v539 = vpop.permute.xlu0 %538
  %540 = vrot.lane.b32.xlu0 %v431, 8
  %v541 = vpop.permute.xlu0 %540
  %542 = vrot.lane.b32.xlu0 %v432, 8
  %v543 = vpop.permute.xlu0 %542
  %544 = vrot.lane.b32.xlu0 %v433, 8
  %v545 = vpop.permute.xlu0 %544
  %546 = vrot.lane.b32.xlu0 %v434, 8
  %v547 = vpop.permute.xlu0 %546
  %548 = vrot.lane.b32.xlu0 %v435, 8
  %v549 = vpop.permute.xlu0 %548
  %550 = vrot.lane.b32.xlu0 %v436, 8
  %v551 = vpop.permute.xlu0 %550
  %552 = vrot.lane.b32.xlu0 %v437, 8
  %v553 = vpop.permute.xlu0 %552
  %554 = vrot.lane.b32.xlu0 %v438, 8
  %v555 = vpop.permute.xlu0 %554
  %556 = vrot.lane.b32.xlu0 %v439, 8
  %v557 = vpop.permute.xlu0 %556
  %558 = vrot.lane.b32.xlu0 %v440, 8
  %v559 = vpop.permute.xlu0 %558
  %560 = vrot.lane.b32.xlu0 %v441, 8
  %v561 = vpop.permute.xlu0 %560
  %562 = vrot.lane.b32.xlu0 %v442, 8
  %v563 = vpop.permute.xlu0 %562
  %564 = vrot.lane.b32.xlu0 %v443, 8
  %v565 = vpop.permute.xlu0 %564
  %566 = vrot.lane.b32.xlu0 %v444, 8
  %v567 = vpop.permute.xlu0 %566
  %568 = vrot.lane.b32.xlu0 %v445, 8
  %v569 = vpop.permute.xlu0 %568
  %570 = vrot.lane.b32.xlu0 %v446, 8
  %v571 = vpop.permute.xlu0 %570
  %572 = vrot.lane.b32.xlu0 %v447, 8
  %v573 = vpop.permute.xlu0 %572
  %574 = vrot.lane.b32.xlu0 %v448, 8
  %v575 = vpop.permute.xlu0 %574
  %576 = vrot.lane.b32.xlu0 %v449, 8
  %v577 = vpop.permute.xlu0 %576
  %578 = vrot.lane.b32.xlu0 %v450, 8
  %v579 = vpop.permute.xlu0 %578
  %580 = vrot.lane.b32.xlu0 %v451, 8
  %v581 = vpop.permute.xlu0 %580
  %582 = vrot.lane.b32.xlu0 %v452, 8
  %v583 = vpop.permute.xlu0 %582
  %584 = vrot.lane.b32.xlu0 %v453, 8
  %v585 = vpop.permute.xlu0 %584
  %v630 = vsel %vm320, 0.0, %v499
  %v631 = vsel %vm320, 0.0, %v501
  %v632 = vsel %vm320, 0.0, %v503
  %v633 = vsel %vm320, 0.0, %v505
  %v634 = vsel %vm320, 0.0, %v507
  %v635 = vsel %vm320, 0.0, %v509
  %v636 = vsel %vm320, 0.0, %v511
  %v637 = vsel %vm320, 0.0, %v513
  %v638 = vsel %vm320, 0.0, %v515
  %v639 = vsel %vm320, 0.0, %v517
  %v640 = vsel %vm320, 0.0, %v519
  %v641 = vsel %vm320, 0.0, %v521
  %v642 = vsel %vm320, 0.0, %v523
  %v643 = vsel %vm320, 0.0, %v525
  %v644 = vsel %vm320, 0.0, %v527
  %v645 = vsel %vm320, 0.0, %v529
  %v646 = vsel %vm320, 0.0, %v531
  %v647 = vsel %vm320, 0.0, %v533
  %v648 = vsel %vm320, 0.0, %v535
  %v649 = vsel %vm320, 0.0, %v537
  %v650 = vsel %vm320, 0.0, %v539
  %v651 = vsel %vm320, 0.0, %v541
  %v652 = vsel %vm320, 0.0, %v543
  %v653 = vsel %vm320, 0.0, %v545
  %v654 = vsel %vm320, 0.0, %v547
  %v655 = vsel %vm320, 0.0, %v549
  %v656 = vsel %vm320, 0.0, %v551
  %v657 = vsel %vm320, 0.0, %v553
  %v658 = vsel %vm320, 0.0, %v555
  %v659 = vsel %vm320, 0.0, %v557
  %v660 = vsel %vm320, 0.0, %v559
  %v661 = vsel %vm320, 0.0, %v561
  %v662 = vsel %vm320, 0.0, %v563
  %v663 = vsel %vm320, 0.0, %v565
  %v664 = vsel %vm320, 0.0, %v567
  %v665 = vsel %vm320, 0.0, %v569
  %v666 = vsel %vm320, 0.0, %v571
  %v667 = vsel %vm320, 0.0, %v573
  %v668 = vsel %vm320, 0.0, %v575
  %v669 = vsel %vm320, 0.0, %v577
  %v670 = vsel %vm320, 0.0, %v579
  %v671 = vsel %vm320, 0.0, %v581
  %v672 = vsel %vm320, 0.0, %v583
  %v673 = vsel %vm320, 0.0, %v585
  %v674 = vsel %vm365, %v630, 0.0
  %v675 = vsel %vm365, %v631, 0.0
  %v676 = vsel %vm365, %v632, 0.0
  %v677 = vsel %vm365, %v633, 0.0
  %v678 = vsel %vm365, %v634, 0.0
  %v679 = vsel %vm365, %v635, 0.0
  %v680 = vsel %vm365, %v636, 0.0
  %v681 = vsel %vm365, %v637, 0.0
  %v682 = vsel %vm365, %v638, 0.0
  %v683 = vsel %vm365, %v639, 0.0
  %v684 = vsel %vm365, %v640, 0.0
  %v685 = vsel %vm365, %v641, 0.0
  %v686 = vsel %vm365, %v642, 0.0
  %v687 = vsel %vm365, %v643, 0.0
  %v688 = vsel %vm365, %v644, 0.0
  %v689 = vsel %vm365, %v645, 0.0
  %v690 = vsel %vm365, %v646, 0.0
  %v691 = vsel %vm365, %v647, 0.0
  %v692 = vsel %vm365, %v648, 0.0
  %v693 = vsel %vm365, %v649, 0.0
  %v694 = vsel %vm365, %v650, 0.0
  %v695 = vsel %vm365, %v651, 0.0
  %v696 = vsel %vm365, %v652, 0.0
  %v697 = vsel %vm365, %v653, 0.0
  %v698 = vsel %vm365, %v654, 0.0
  %v699 = vsel %vm365, %v655, 0.0
  %v700 = vsel %vm365, %v656, 0.0
  %v701 = vsel %vm365, %v657, 0.0
  %v702 = vsel %vm365, %v658, 0.0
  %v703 = vsel %vm365, %v659, 0.0
  %v704 = vsel %vm365, %v660, 0.0
  %v705 = vsel %vm365, %v661, 0.0
  %v706 = vsel %vm365, %v662, 0.0
  %v707 = vsel %vm365, %v663, 0.0
  %v708 = vsel %vm365, %v664, 0.0
  %v709 = vsel %vm365, %v665, 0.0
  %v710 = vsel %vm365, %v666, 0.0
  %v711 = vsel %vm365, %v667, 0.0
  %v712 = vsel %vm365, %v668, 0.0
  %v713 = vsel %vm365, %v669, 0.0
  %v714 = vsel %vm365, %v670, 0.0
  %v715 = vsel %vm365, %v671, 0.0
  %v716 = vsel %vm365, %v672, 0.0
  %v717 = vsel %vm365, %v673, 0.0
  %v718 = vmul.f32 %v11, %v143
  %v719 = vmul.f32 %v12, %v143
  %v720 = vmul.f32 %v13, %v143
  %v721 = vmul.f32 %v14, %v143
  %v722 = vmul.f32 %v15, %v143
  %v723 = vmul.f32 %v16, %v143
  %v724 = vmul.f32 %v17, %v143
  %v725 = vmul.f32 %v18, %v143
  %v726 = vmul.f32 %v19, %v143
  %v727 = vmul.f32 %v20, %v143
  %v728 = vmul.f32 %v21, %v143
  %v729 = vmul.f32 %v22, %v143
  %v730 = vmul.f32 %v23, %v143
  %v731 = vmul.f32 %v24, %v143
  %v732 = vmul.f32 %v25, %v143
  %v733 = vmul.f32 %v26, %v143
  %v734 = vmul.f32 %v27, %v143
  %v735 = vmul.f32 %v28, %v143
  %v736 = vmul.f32 %v29, %v143
  %v737 = vmul.f32 %v30, %v143
  %v738 = vmul.f32 %v31, %v143
  %v739 = vmul.f32 %v32, %v143
  %v740 = vmul.f32 %v33, %v143
  %v741 = vmul.f32 %v34, %v143
  %v742 = vmul.f32 %v35, %v143
  %v743 = vmul.f32 %v36, %v143
  %v744 = vmul.f32 %v37, %v143
  %v745 = vmul.f32 %v38, %v143
  %v746 = vmul.f32 %v39, %v143
  %v747 = vmul.f32 %v40, %v143
  %v748 = vmul.f32 %v41, %v143
  %v749 = vmul.f32 %v42, %v143
  %v750 = vmul.f32 %v43, %v143
  %v751 = vmul.f32 %v44, %v143
  %v752 = vmul.f32 %v45, %v143
  %v753 = vmul.f32 %v46, %v143
  %v754 = vmul.f32 %v47, %v143
  %v755 = vmul.f32 %v48, %v143
  %v756 = vmul.f32 %v49, %v143
  %v757 = vmul.f32 %v50, %v143
  %v758 = vmul.f32 %v51, %v143
  %v759 = vmul.f32 %v52, %v143
  %v760 = vmul.f32 %v53, %v143
  %v761 = vmul.f32 %v54, %v143
  %806 = vrot.lane.b32.xlu0 %v718, 8
  %v807 = vpop.permute.xlu0 %806
  %808 = vrot.lane.b32.xlu0 %v719, 8
  %v809 = vpop.permute.xlu0 %808
  %810 = vrot.lane.b32.xlu0 %v720, 8
  %v811 = vpop.permute.xlu0 %810
  %812 = vrot.lane.b32.xlu0 %v721, 8
  %v813 = vpop.permute.xlu0 %812
  %814 = vrot.lane.b32.xlu0 %v722, 8
  %v815 = vpop.permute.xlu0 %814
  %816 = vrot.lane.b32.xlu0 %v723, 8
  %v817 = vpop.permute.xlu0 %816
  %818 = vrot.lane.b32.xlu0 %v724, 8
  %v819 = vpop.permute.xlu0 %818
  %820 = vrot.lane.b32.xlu0 %v725, 8
  %v821 = vpop.permute.xlu0 %820
  %822 = vrot.lane.b32.xlu0 %v726, 8
  %v823 = vpop.permute.xlu0 %822
  %824 = vrot.lane.b32.xlu0 %v727, 8
  %v825 = vpop.permute.xlu0 %824
  %826 = vrot.lane.b32.xlu0 %v728, 8
  %v827 = vpop.permute.xlu0 %826
  %828 = vrot.lane.b32.xlu0 %v729, 8
  %v829 = vpop.permute.xlu0 %828
  %830 = vrot.lane.b32.xlu0 %v730, 8
  %v831 = vpop.permute.xlu0 %830
  %832 = vrot.lane.b32.xlu0 %v731, 8
  %v833 = vpop.permute.xlu0 %832
  %834 = vrot.lane.b32.xlu0 %v732, 8
  %v835 = vpop.permute.xlu0 %834
  %836 = vrot.lane.b32.xlu0 %v733, 8
  %v837 = vpop.permute.xlu0 %836
  %838 = vrot.lane.b32.xlu0 %v734, 8
  %v839 = vpop.permute.xlu0 %838
  %840 = vrot.lane.b32.xlu0 %v735, 8
  %v841 = vpop.permute.xlu0 %840
  %842 = vrot.lane.b32.xlu0 %v736, 8
  %v843 = vpop.permute.xlu0 %842
  %844 = vrot.lane.b32.xlu0 %v737, 8
  %v845 = vpop.permute.xlu0 %844
  %846 = vrot.lane.b32.xlu0 %v738, 8
  %v847 = vpop.permute.xlu0 %846
  %848 = vrot.lane.b32.xlu0 %v739, 8
  %v849 = vpop.permute.xlu0 %848
  %850 = vrot.lane.b32.xlu0 %v740, 8
  %v851 = vpop.permute.xlu0 %850
  %852 = vrot.lane.b32.xlu0 %v741, 8
  %v853 = vpop.permute.xlu0 %852
  %854 = vrot.lane.b32.xlu0 %v742, 8
  %v855 = vpop.permute.xlu0 %854
  %856 = vrot.lane.b32.xlu0 %v743, 8
  %v857 = vpop.permute.xlu0 %856
  %858 = vrot.lane.b32.xlu0 %v744, 8
  %v859 = vpop.permute.xlu0 %858
  %860 = vrot.lane.b32.xlu0 %v745, 8
  %v861 = vpop.permute.xlu0 %860
  %862 = vrot.lane.b32.xlu0 %v746, 8
  %v863 = vpop.permute.xlu0 %862
  %864 = vrot.lane.b32.xlu0 %v747, 8
  %v865 = vpop.permute.xlu0 %864
  %866 = vrot.lane.b32.xlu0 %v748, 8
  %v867 = vpop.permute.xlu0 %866
  %868 = vrot.lane.b32.xlu0 %v749, 8
  %v869 = vpop.permute.xlu0 %868
  %870 = vrot.lane.b32.xlu0 %v750, 8
  %v871 = vpop.permute.xlu0 %870
  %872 = vrot.lane.b32.xlu0 %v751, 8
  %v873 = vpop.permute.xlu0 %872
  %874 = vrot.lane.b32.xlu0 %v752, 8
  %v875 = vpop.permute.xlu0 %874
  %876 = vrot.lane.b32.xlu0 %v753, 8
  %v877 = vpop.permute.xlu0 %876
  %878 = vrot.lane.b32.xlu0 %v754, 8
  %v879 = vpop.permute.xlu0 %878
  %880 = vrot.lane.b32.xlu0 %v755, 8
  %v881 = vpop.permute.xlu0 %880
  %882 = vrot.lane.b32.xlu0 %v756, 8
  %v883 = vpop.permute.xlu0 %882
  %884 = vrot.lane.b32.xlu0 %v757, 8
  %v885 = vpop.permute.xlu0 %884
  %886 = vrot.lane.b32.xlu0 %v758, 8
  %v887 = vpop.permute.xlu0 %886
  %888 = vrot.lane.b32.xlu0 %v759, 8
  %v889 = vpop.permute.xlu0 %888
  %890 = vrot.lane.b32.xlu0 %v760, 8
  %v891 = vpop.permute.xlu0 %890
  %892 = vrot.lane.b32.xlu0 %v761, 8
  %v893 = vpop.permute.xlu0 %892
  %v938 = vsel %vm320, 0.0, %v807
  %v939 = vsel %vm320, 0.0, %v809
  %v940 = vsel %vm320, 0.0, %v811
  %v941 = vsel %vm320, 0.0, %v813
  %v942 = vsel %vm320, 0.0, %v815
  %v943 = vsel %vm320, 0.0, %v817
  %v944 = vsel %vm320, 0.0, %v819
  %v945 = vsel %vm320, 0.0, %v821
  %v946 = vsel %vm320, 0.0, %v823
  %v947 = vsel %vm320, 0.0, %v825
  %v948 = vsel %vm320, 0.0, %v827
  %v949 = vsel %vm320, 0.0, %v829
  %v950 = vsel %vm320, 0.0, %v831
  %v951 = vsel %vm320, 0.0, %v833
  %v952 = vsel %vm320, 0.0, %v835
  %v953 = vsel %vm320, 0.0, %v837
  %v954 = vsel %vm320, 0.0, %v839
  %v955 = vsel %vm320, 0.0, %v841
  %v956 = vsel %vm320, 0.0, %v843
  %v957 = vsel %vm320, 0.0, %v845
  %v958 = vsel %vm320, 0.0, %v847
  %v959 = vsel %vm320, 0.0, %v849
  %v960 = vsel %vm320, 0.0, %v851
  %v961 = vsel %vm320, 0.0, %v853
  %v962 = vsel %vm320, 0.0, %v855
  %v963 = vsel %vm320, 0.0, %v857
  %v964 = vsel %vm320, 0.0, %v859
  %v965 = vsel %vm320, 0.0, %v861
  %v966 = vsel %vm320, 0.0, %v863
  %v967 = vsel %vm320, 0.0, %v865
  %v968 = vsel %vm320, 0.0, %v867
  %v969 = vsel %vm320, 0.0, %v869
  %v970 = vsel %vm320, 0.0, %v871
  %v971 = vsel %vm320, 0.0, %v873
  %v972 = vsel %vm320, 0.0, %v875
  %v973 = vsel %vm320, 0.0, %v877
  %v974 = vsel %vm320, 0.0, %v879
  %v975 = vsel %vm320, 0.0, %v881
  %v976 = vsel %vm320, 0.0, %v883
  %v977 = vsel %vm320, 0.0, %v885
  %v978 = vsel %vm320, 0.0, %v887
  %v979 = vsel %vm320, 0.0, %v889
  %v980 = vsel %vm320, 0.0, %v891
  %v981 = vsel %vm320, 0.0, %v893
  %v982 = vsel %vm365, %v938, 0.0
  %v983 = vsel %vm365, %v939, 0.0
  %v984 = vsel %vm365, %v940, 0.0
  %v985 = vsel %vm365, %v941, 0.0
  %v986 = vsel %vm365, %v942, 0.0
  %v987 = vsel %vm365, %v943, 0.0
  %v988 = vsel %vm365, %v944, 0.0
  %v989 = vsel %vm365, %v945, 0.0
  %v990 = vsel %vm365, %v946, 0.0
  %v991 = vsel %vm365, %v947, 0.0
  %v992 = vsel %vm365, %v948, 0.0
  %v993 = vsel %vm365, %v949, 0.0
  %v994 = vsel %vm365, %v950, 0.0
  %v995 = vsel %vm365, %v951, 0.0
  %v996 = vsel %vm365, %v952, 0.0
  %v997 = vsel %vm365, %v953, 0.0
  %v998 = vsel %vm365, %v954, 0.0
  %v999 = vsel %vm365, %v955, 0.0
  %v1000 = vsel %vm365, %v956, 0.0
  %v1001 = vsel %vm365, %v957, 0.0
  %v1002 = vsel %vm365, %v958, 0.0
  %v1003 = vsel %vm365, %v959, 0.0
  %v1004 = vsel %vm365, %v960, 0.0
  %v1005 = vsel %vm365, %v961, 0.0
  %v1006 = vsel %vm365, %v962, 0.0
  %v1007 = vsel %vm365, %v963, 0.0
  %v1008 = vsel %vm365, %v964, 0.0
  %v1009 = vsel %vm365, %v965, 0.0
  %v1010 = vsel %vm365, %v966, 0.0
  %v1011 = vsel %vm365, %v967, 0.0
  %v1012 = vsel %vm365, %v968, 0.0
  %v1013 = vsel %vm365, %v969, 0.0
  %v1014 = vsel %vm365, %v970, 0.0
  %v1015 = vsel %vm365, %v971, 0.0
  %v1016 = vsel %vm365, %v972, 0.0
  %v1017 = vsel %vm365, %v973, 0.0
  %v1018 = vsel %vm365, %v974, 0.0
  %v1019 = vsel %vm365, %v975, 0.0
  %v1020 = vsel %vm365, %v976, 0.0
  %v1021 = vsel %vm365, %v977, 0.0
  %v1022 = vsel %vm365, %v978, 0.0
  %v1023 = vsel %vm365, %v979, 0.0
  %v1024 = vsel %vm365, %v980, 0.0
  %v1025 = vsel %vm365, %v981, 0.0
  %1027 = vset.pattern.permute.xlu0 4
  %1028 = vperm.xlu0 %1027, %v55
  %v1029 = vpop.permute.xlu0 %1028
  %1032 = vset.pattern.permute.xlu0 4
  %1033 = vperm.xlu0 %1032, %v56
  %v1034 = vpop.permute.xlu0 %1033
  %1037 = vset.pattern.permute.xlu0 4
  %1038 = vperm.xlu0 %1037, %v57
  %v1039 = vpop.permute.xlu0 %1038
  %1042 = vset.pattern.permute.xlu0 4
  %1043 = vperm.xlu0 %1042, %v58
  %v1044 = vpop.permute.xlu0 %1043
  %1047 = vset.pattern.permute.xlu0 4
  %1048 = vperm.xlu0 %1047, %v59
  %v1049 = vpop.permute.xlu0 %1048
  %1052 = vset.pattern.permute.xlu0 4
  %1053 = vperm.xlu0 %1052, %v60
  %v1054 = vpop.permute.xlu0 %1053
  %1057 = vset.pattern.permute.xlu0 4
  %1058 = vperm.xlu0 %1057, %v61
  %v1059 = vpop.permute.xlu0 %1058
  %1062 = vset.pattern.permute.xlu0 4
  %1063 = vperm.xlu0 %1062, %v62
  %v1064 = vpop.permute.xlu0 %1063
  %1067 = vset.pattern.permute.xlu0 4
  %1068 = vperm.xlu0 %1067, %v63
  %v1069 = vpop.permute.xlu0 %1068
  %1072 = vset.pattern.permute.xlu0 4
  %1073 = vperm.xlu0 %1072, %v64
  %v1074 = vpop.permute.xlu0 %1073
  %1077 = vset.pattern.permute.xlu0 4
  %1078 = vperm.xlu0 %1077, %v65
  %v1079 = vpop.permute.xlu0 %1078
  %1082 = vset.pattern.permute.xlu0 4
  %1083 = vperm.xlu0 %1082, %v66
  %v1084 = vpop.permute.xlu0 %1083
  %1087 = vset.pattern.permute.xlu0 4
  %1088 = vperm.xlu0 %1087, %v67
  %v1089 = vpop.permute.xlu0 %1088
  %1092 = vset.pattern.permute.xlu0 4
  %1093 = vperm.xlu0 %1092, %v68
  %v1094 = vpop.permute.xlu0 %1093
  %1097 = vset.pattern.permute.xlu0 4
  %1098 = vperm.xlu0 %1097, %v69
  %v1099 = vpop.permute.xlu0 %1098
  %1102 = vset.pattern.permute.xlu0 4
  %1103 = vperm.xlu0 %1102, %v70
  %v1104 = vpop.permute.xlu0 %1103
  %1107 = vset.pattern.permute.xlu0 4
  %1108 = vperm.xlu0 %1107, %v71
  %v1109 = vpop.permute.xlu0 %1108
  %1112 = vset.pattern.permute.xlu0 4
  %1113 = vperm.xlu0 %1112, %v72
  %v1114 = vpop.permute.xlu0 %1113
  %1117 = vset.pattern.permute.xlu0 4
  %1118 = vperm.xlu0 %1117, %v73
  %v1119 = vpop.permute.xlu0 %1118
  %1122 = vset.pattern.permute.xlu0 4
  %1123 = vperm.xlu0 %1122, %v74
  %v1124 = vpop.permute.xlu0 %1123
  %1127 = vset.pattern.permute.xlu0 4
  %1128 = vperm.xlu0 %1127, %v75
  %v1129 = vpop.permute.xlu0 %1128
  %1132 = vset.pattern.permute.xlu0 4
  %1133 = vperm.xlu0 %1132, %v76
  %v1134 = vpop.permute.xlu0 %1133
  %1137 = vset.pattern.permute.xlu0 4
  %1138 = vperm.xlu0 %1137, %v77
  %v1139 = vpop.permute.xlu0 %1138
  %1142 = vset.pattern.permute.xlu0 4
  %1143 = vperm.xlu0 %1142, %v78
  %v1144 = vpop.permute.xlu0 %1143
  %1147 = vset.pattern.permute.xlu0 4
  %1148 = vperm.xlu0 %1147, %v79
  %v1149 = vpop.permute.xlu0 %1148
  %1152 = vset.pattern.permute.xlu0 4
  %1153 = vperm.xlu0 %1152, %v80
  %v1154 = vpop.permute.xlu0 %1153
  %1157 = vset.pattern.permute.xlu0 4
  %1158 = vperm.xlu0 %1157, %v81
  %v1159 = vpop.permute.xlu0 %1158
  %1162 = vset.pattern.permute.xlu0 4
  %1163 = vperm.xlu0 %1162, %v82
  %v1164 = vpop.permute.xlu0 %1163
  %1167 = vset.pattern.permute.xlu0 4
  %1168 = vperm.xlu0 %1167, %v83
  %v1169 = vpop.permute.xlu0 %1168
  %1172 = vset.pattern.permute.xlu0 4
  %1173 = vperm.xlu0 %1172, %v84
  %v1174 = vpop.permute.xlu0 %1173
  %1177 = vset.pattern.permute.xlu0 4
  %1178 = vperm.xlu0 %1177, %v85
  %v1179 = vpop.permute.xlu0 %1178
  %1182 = vset.pattern.permute.xlu0 4
  %1183 = vperm.xlu0 %1182, %v86
  %v1184 = vpop.permute.xlu0 %1183
  %1187 = vset.pattern.permute.xlu0 4
  %1188 = vperm.xlu0 %1187, %v87
  %v1189 = vpop.permute.xlu0 %1188
  %1192 = vset.pattern.permute.xlu0 4
  %1193 = vperm.xlu0 %1192, %v88
  %v1194 = vpop.permute.xlu0 %1193
  %1197 = vset.pattern.permute.xlu0 4
  %1198 = vperm.xlu0 %1197, %v89
  %v1199 = vpop.permute.xlu0 %1198
  %1202 = vset.pattern.permute.xlu0 4
  %1203 = vperm.xlu0 %1202, %v90
  %v1204 = vpop.permute.xlu0 %1203
  %1207 = vset.pattern.permute.xlu0 4
  %1208 = vperm.xlu0 %1207, %v91
  %v1209 = vpop.permute.xlu0 %1208
  %1212 = vset.pattern.permute.xlu0 4
  %1213 = vperm.xlu0 %1212, %v92
  %v1214 = vpop.permute.xlu0 %1213
  %1217 = vset.pattern.permute.xlu0 4
  %1218 = vperm.xlu0 %1217, %v93
  %v1219 = vpop.permute.xlu0 %1218
  %1222 = vset.pattern.permute.xlu0 4
  %1223 = vperm.xlu0 %1222, %v94
  %v1224 = vpop.permute.xlu0 %1223
  %1227 = vset.pattern.permute.xlu0 4
  %1228 = vperm.xlu0 %1227, %v95
  %v1229 = vpop.permute.xlu0 %1228
  %1232 = vset.pattern.permute.xlu0 4
  %1233 = vperm.xlu0 %1232, %v96
  %v1234 = vpop.permute.xlu0 %1233
  %1237 = vset.pattern.permute.xlu0 4
  %1238 = vperm.xlu0 %1237, %v97
  %v1239 = vpop.permute.xlu0 %1238
  %1242 = vset.pattern.permute.xlu0 4
  %1243 = vperm.xlu0 %1242, %v98
  %v1244 = vpop.permute.xlu0 %1243
  %v1246 = vmul.f32 %v11, %v1029
  %v1247 = vmul.f32 %v12, %v1034
  %v1248 = vmul.f32 %v13, %v1039
  %v1249 = vmul.f32 %v14, %v1044
  %v1250 = vmul.f32 %v15, %v1049
  %v1251 = vmul.f32 %v16, %v1054
  %v1252 = vmul.f32 %v17, %v1059
  %v1253 = vmul.f32 %v18, %v1064
  %v1254 = vmul.f32 %v19, %v1069
  %v1255 = vmul.f32 %v20, %v1074
  %v1256 = vmul.f32 %v21, %v1079
  %v1257 = vmul.f32 %v22, %v1084
  %v1258 = vmul.f32 %v23, %v1089
  %v1259 = vmul.f32 %v24, %v1094
  %v1260 = vmul.f32 %v25, %v1099
  %v1261 = vmul.f32 %v26, %v1104
  %v1262 = vmul.f32 %v27, %v1109
  %v1263 = vmul.f32 %v28, %v1114
  %v1264 = vmul.f32 %v29, %v1119
  %v1265 = vmul.f32 %v30, %v1124
  %v1266 = vmul.f32 %v31, %v1129
  %v1267 = vmul.f32 %v32, %v1134
  %v1268 = vmul.f32 %v33, %v1139
  %v1269 = vmul.f32 %v34, %v1144
  %v1270 = vmul.f32 %v35, %v1149
  %v1271 = vmul.f32 %v36, %v1154
  %v1272 = vmul.f32 %v37, %v1159
  %v1273 = vmul.f32 %v38, %v1164
  %v1274 = vmul.f32 %v39, %v1169
  %v1275 = vmul.f32 %v40, %v1174
  %v1276 = vmul.f32 %v41, %v1179
  %v1277 = vmul.f32 %v42, %v1184
  %v1278 = vmul.f32 %v43, %v1189
  %v1279 = vmul.f32 %v44, %v1194
  %v1280 = vmul.f32 %v45, %v1199
  %v1281 = vmul.f32 %v46, %v1204
  %v1282 = vmul.f32 %v47, %v1209
  %v1283 = vmul.f32 %v48, %v1214
  %v1284 = vmul.f32 %v49, %v1219
  %v1285 = vmul.f32 %v50, %v1224
  %v1286 = vmul.f32 %v51, %v1229
  %v1287 = vmul.f32 %v52, %v1234
  %v1288 = vmul.f32 %v53, %v1239
  %v1289 = vmul.f32 %v54, %v1244
  %1290 = vset.pattern.permute.xlu0 0
  %1291 = vperm.xlu0 %1290, %v55
  %v1292 = vpop.permute.xlu0 %1291
  %1294 = vset.pattern.permute.xlu0 0
  %1295 = vperm.xlu0 %1294, %v56
  %v1296 = vpop.permute.xlu0 %1295
  %1298 = vset.pattern.permute.xlu0 0
  %1299 = vperm.xlu0 %1298, %v57
  %v1300 = vpop.permute.xlu0 %1299
  %1302 = vset.pattern.permute.xlu0 0
  %1303 = vperm.xlu0 %1302, %v58
  %v1304 = vpop.permute.xlu0 %1303
  %1306 = vset.pattern.permute.xlu0 0
  %1307 = vperm.xlu0 %1306, %v59
  %v1308 = vpop.permute.xlu0 %1307
  %1310 = vset.pattern.permute.xlu0 0
  %1311 = vperm.xlu0 %1310, %v60
  %v1312 = vpop.permute.xlu0 %1311
  %1314 = vset.pattern.permute.xlu0 0
  %1315 = vperm.xlu0 %1314, %v61
  %v1316 = vpop.permute.xlu0 %1315
  %1318 = vset.pattern.permute.xlu0 0
  %1319 = vperm.xlu0 %1318, %v62
  %v1320 = vpop.permute.xlu0 %1319
  %1322 = vset.pattern.permute.xlu0 0
  %1323 = vperm.xlu0 %1322, %v63
  %v1324 = vpop.permute.xlu0 %1323
  %1326 = vset.pattern.permute.xlu0 0
  %1327 = vperm.xlu0 %1326, %v64
  %v1328 = vpop.permute.xlu0 %1327
  %1330 = vset.pattern.permute.xlu0 0
  %1331 = vperm.xlu0 %1330, %v65
  %v1332 = vpop.permute.xlu0 %1331
  %1334 = vset.pattern.permute.xlu0 0
  %1335 = vperm.xlu0 %1334, %v66
  %v1336 = vpop.permute.xlu0 %1335
  %1338 = vset.pattern.permute.xlu0 0
  %1339 = vperm.xlu0 %1338, %v67
  %v1340 = vpop.permute.xlu0 %1339
  %1342 = vset.pattern.permute.xlu0 0
  %1343 = vperm.xlu0 %1342, %v68
  %v1344 = vpop.permute.xlu0 %1343
  %1346 = vset.pattern.permute.xlu0 0
  %1347 = vperm.xlu0 %1346, %v69
  %v1348 = vpop.permute.xlu0 %1347
  %1350 = vset.pattern.permute.xlu0 0
  %1351 = vperm.xlu0 %1350, %v70
  %v1352 = vpop.permute.xlu0 %1351
  %1354 = vset.pattern.permute.xlu0 0
  %1355 = vperm.xlu0 %1354, %v71
  %v1356 = vpop.permute.xlu0 %1355
  %1358 = vset.pattern.permute.xlu0 0
  %1359 = vperm.xlu0 %1358, %v72
  %v1360 = vpop.permute.xlu0 %1359
  %1362 = vset.pattern.permute.xlu0 0
  %1363 = vperm.xlu0 %1362, %v73
  %v1364 = vpop.permute.xlu0 %1363
  %1366 = vset.pattern.permute.xlu0 0
  %1367 = vperm.xlu0 %1366, %v74
  %v1368 = vpop.permute.xlu0 %1367
  %1370 = vset.pattern.permute.xlu0 0
  %1371 = vperm.xlu0 %1370, %v75
  %v1372 = vpop.permute.xlu0 %1371
  %1374 = vset.pattern.permute.xlu0 0
  %1375 = vperm.xlu0 %1374, %v76
  %v1376 = vpop.permute.xlu0 %1375
  %1378 = vset.pattern.permute.xlu0 0
  %1379 = vperm.xlu0 %1378, %v77
  %v1380 = vpop.permute.xlu0 %1379
  %1382 = vset.pattern.permute.xlu0 0
  %1383 = vperm.xlu0 %1382, %v78
  %v1384 = vpop.permute.xlu0 %1383
  %1386 = vset.pattern.permute.xlu0 0
  %1387 = vperm.xlu0 %1386, %v79
  %v1388 = vpop.permute.xlu0 %1387
  %1390 = vset.pattern.permute.xlu0 0
  %1391 = vperm.xlu0 %1390, %v80
  %v1392 = vpop.permute.xlu0 %1391
  %1394 = vset.pattern.permute.xlu0 0
  %1395 = vperm.xlu0 %1394, %v81
  %v1396 = vpop.permute.xlu0 %1395
  %1398 = vset.pattern.permute.xlu0 0
  %1399 = vperm.xlu0 %1398, %v82
  %v1400 = vpop.permute.xlu0 %1399
  %1402 = vset.pattern.permute.xlu0 0
  %1403 = vperm.xlu0 %1402, %v83
  %v1404 = vpop.permute.xlu0 %1403
  %1406 = vset.pattern.permute.xlu0 0
  %1407 = vperm.xlu0 %1406, %v84
  %v1408 = vpop.permute.xlu0 %1407
  %1410 = vset.pattern.permute.xlu0 0
  %1411 = vperm.xlu0 %1410, %v85
  %v1412 = vpop.permute.xlu0 %1411
  %1414 = vset.pattern.permute.xlu0 0
  %1415 = vperm.xlu0 %1414, %v86
  %v1416 = vpop.permute.xlu0 %1415
  %1418 = vset.pattern.permute.xlu0 0
  %1419 = vperm.xlu0 %1418, %v87
  %v1420 = vpop.permute.xlu0 %1419
  %1422 = vset.pattern.permute.xlu0 0
  %1423 = vperm.xlu0 %1422, %v88
  %v1424 = vpop.permute.xlu0 %1423
  %1426 = vset.pattern.permute.xlu0 0
  %1427 = vperm.xlu0 %1426, %v89
  %v1428 = vpop.permute.xlu0 %1427
  %1430 = vset.pattern.permute.xlu0 0
  %1431 = vperm.xlu0 %1430, %v90
  %v1432 = vpop.permute.xlu0 %1431
  %1434 = vset.pattern.permute.xlu0 0
  %1435 = vperm.xlu0 %1434, %v91
  %v1436 = vpop.permute.xlu0 %1435
  %1438 = vset.pattern.permute.xlu0 0
  %1439 = vperm.xlu0 %1438, %v92
  %v1440 = vpop.permute.xlu0 %1439
  %1442 = vset.pattern.permute.xlu0 0
  %1443 = vperm.xlu0 %1442, %v93
  %v1444 = vpop.permute.xlu0 %1443
  %1446 = vset.pattern.permute.xlu0 0
  %1447 = vperm.xlu0 %1446, %v94
  %v1448 = vpop.permute.xlu0 %1447
  %1450 = vset.pattern.permute.xlu0 0
  %1451 = vperm.xlu0 %1450, %v95
  %v1452 = vpop.permute.xlu0 %1451
  %1454 = vset.pattern.permute.xlu0 0
  %1455 = vperm.xlu0 %1454, %v96
  %v1456 = vpop.permute.xlu0 %1455
  %1458 = vset.pattern.permute.xlu0 0
  %1459 = vperm.xlu0 %1458, %v97
  %v1460 = vpop.permute.xlu0 %1459
  %1462 = vset.pattern.permute.xlu0 0
  %1463 = vperm.xlu0 %1462, %v98
  %v1464 = vpop.permute.xlu0 %1463
  %v1466 = vmul.f32 %v674, %v1292
  %v1467 = vmul.f32 %v675, %v1296
  %v1468 = vmul.f32 %v676, %v1300
  %v1469 = vmul.f32 %v677, %v1304
  %v1470 = vmul.f32 %v678, %v1308
  %v1471 = vmul.f32 %v679, %v1312
  %v1472 = vmul.f32 %v680, %v1316
  %v1473 = vmul.f32 %v681, %v1320
  %v1474 = vmul.f32 %v682, %v1324
  %v1475 = vmul.f32 %v683, %v1328
  %v1476 = vmul.f32 %v684, %v1332
  %v1477 = vmul.f32 %v685, %v1336
  %v1478 = vmul.f32 %v686, %v1340
  %v1479 = vmul.f32 %v687, %v1344
  %v1480 = vmul.f32 %v688, %v1348
  %v1481 = vmul.f32 %v689, %v1352
  %v1482 = vmul.f32 %v690, %v1356
  %v1483 = vmul.f32 %v691, %v1360
  %v1484 = vmul.f32 %v692, %v1364
  %v1485 = vmul.f32 %v693, %v1368
  %v1486 = vmul.f32 %v694, %v1372
  %v1487 = vmul.f32 %v695, %v1376
  %v1488 = vmul.f32 %v696, %v1380
  %v1489 = vmul.f32 %v697, %v1384
  %v1490 = vmul.f32 %v698, %v1388
  %v1491 = vmul.f32 %v699, %v1392
  %v1492 = vmul.f32 %v700, %v1396
  %v1493 = vmul.f32 %v701, %v1400
  %v1494 = vmul.f32 %v702, %v1404
  %v1495 = vmul.f32 %v703, %v1408
  %v1496 = vmul.f32 %v704, %v1412
  %v1497 = vmul.f32 %v705, %v1416
  %v1498 = vmul.f32 %v706, %v1420
  %v1499 = vmul.f32 %v707, %v1424
  %v1500 = vmul.f32 %v708, %v1428
  %v1501 = vmul.f32 %v709, %v1432
  %v1502 = vmul.f32 %v710, %v1436
  %v1503 = vmul.f32 %v711, %v1440
  %v1504 = vmul.f32 %v712, %v1444
  %v1505 = vmul.f32 %v713, %v1448
  %v1506 = vmul.f32 %v714, %v1452
  %v1507 = vmul.f32 %v715, %v1456
  %v1508 = vmul.f32 %v716, %v1460
  %v1509 = vmul.f32 %v717, %v1464
  %v1510 = vadd.f32 %v1246, %v1466
  %v1511 = vadd.f32 %v1247, %v1467
  %v1512 = vadd.f32 %v1248, %v1468
  %v1513 = vadd.f32 %v1249, %v1469
  %v1514 = vadd.f32 %v1250, %v1470
  %v1515 = vadd.f32 %v1251, %v1471
  %v1516 = vadd.f32 %v1252, %v1472
  %v1517 = vadd.f32 %v1253, %v1473
  %v1518 = vadd.f32 %v1254, %v1474
  %v1519 = vadd.f32 %v1255, %v1475
  %v1520 = vadd.f32 %v1256, %v1476
  %v1521 = vadd.f32 %v1257, %v1477
  %v1522 = vadd.f32 %v1258, %v1478
  %v1523 = vadd.f32 %v1259, %v1479
  %v1524 = vadd.f32 %v1260, %v1480
  %v1525 = vadd.f32 %v1261, %v1481
  %v1526 = vadd.f32 %v1262, %v1482
  %v1527 = vadd.f32 %v1263, %v1483
  %v1528 = vadd.f32 %v1264, %v1484
  %v1529 = vadd.f32 %v1265, %v1485
  %v1530 = vadd.f32 %v1266, %v1486
  %v1531 = vadd.f32 %v1267, %v1487
  %v1532 = vadd.f32 %v1268, %v1488
  %v1533 = vadd.f32 %v1269, %v1489
  %v1534 = vadd.f32 %v1270, %v1490
  %v1535 = vadd.f32 %v1271, %v1491
  %v1536 = vadd.f32 %v1272, %v1492
  %v1537 = vadd.f32 %v1273, %v1493
  %v1538 = vadd.f32 %v1274, %v1494
  %v1539 = vadd.f32 %v1275, %v1495
  %v1540 = vadd.f32 %v1276, %v1496
  %v1541 = vadd.f32 %v1277, %v1497
  %v1542 = vadd.f32 %v1278, %v1498
  %v1543 = vadd.f32 %v1279, %v1499
  %v1544 = vadd.f32 %v1280, %v1500
  %v1545 = vadd.f32 %v1281, %v1501
  %v1546 = vadd.f32 %v1282, %v1502
  %v1547 = vadd.f32 %v1283, %v1503
  %v1548 = vadd.f32 %v1284, %v1504
  %v1549 = vadd.f32 %v1285, %v1505
  %v1550 = vadd.f32 %v1286, %v1506
  %v1551 = vadd.f32 %v1287, %v1507
  %v1552 = vadd.f32 %v1288, %v1508
  %v1553 = vadd.f32 %v1289, %v1509
  %1554 = vset.pattern.permute.xlu0 1
  %1555 = vperm.xlu0 %1554, %v55
  %v1556 = vpop.permute.xlu0 %1555
  %1558 = vset.pattern.permute.xlu0 1
  %1559 = vperm.xlu0 %1558, %v56
  %v1560 = vpop.permute.xlu0 %1559
  %1562 = vset.pattern.permute.xlu0 1
  %1563 = vperm.xlu0 %1562, %v57
  %v1564 = vpop.permute.xlu0 %1563
  %1566 = vset.pattern.permute.xlu0 1
  %1567 = vperm.xlu0 %1566, %v58
  %v1568 = vpop.permute.xlu0 %1567
  %1570 = vset.pattern.permute.xlu0 1
  %1571 = vperm.xlu0 %1570, %v59
  %v1572 = vpop.permute.xlu0 %1571
  %1574 = vset.pattern.permute.xlu0 1
  %1575 = vperm.xlu0 %1574, %v60
  %v1576 = vpop.permute.xlu0 %1575
  %1578 = vset.pattern.permute.xlu0 1
  %1579 = vperm.xlu0 %1578, %v61
  %v1580 = vpop.permute.xlu0 %1579
  %1582 = vset.pattern.permute.xlu0 1
  %1583 = vperm.xlu0 %1582, %v62
  %v1584 = vpop.permute.xlu0 %1583
  %1586 = vset.pattern.permute.xlu0 1
  %1587 = vperm.xlu0 %1586, %v63
  %v1588 = vpop.permute.xlu0 %1587
  %1590 = vset.pattern.permute.xlu0 1
  %1591 = vperm.xlu0 %1590, %v64
  %v1592 = vpop.permute.xlu0 %1591
  %1594 = vset.pattern.permute.xlu0 1
  %1595 = vperm.xlu0 %1594, %v65
  %v1596 = vpop.permute.xlu0 %1595
  %1598 = vset.pattern.permute.xlu0 1
  %1599 = vperm.xlu0 %1598, %v66
  %v1600 = vpop.permute.xlu0 %1599
  %1602 = vset.pattern.permute.xlu0 1
  %1603 = vperm.xlu0 %1602, %v67
  %v1604 = vpop.permute.xlu0 %1603
  %1606 = vset.pattern.permute.xlu0 1
  %1607 = vperm.xlu0 %1606, %v68
  %v1608 = vpop.permute.xlu0 %1607
  %1610 = vset.pattern.permute.xlu0 1
  %1611 = vperm.xlu0 %1610, %v69
  %v1612 = vpop.permute.xlu0 %1611
  %1614 = vset.pattern.permute.xlu0 1
  %1615 = vperm.xlu0 %1614, %v70
  %v1616 = vpop.permute.xlu0 %1615
  %1618 = vset.pattern.permute.xlu0 1
  %1619 = vperm.xlu0 %1618, %v71
  %v1620 = vpop.permute.xlu0 %1619
  %1622 = vset.pattern.permute.xlu0 1
  %1623 = vperm.xlu0 %1622, %v72
  %v1624 = vpop.permute.xlu0 %1623
  %1626 = vset.pattern.permute.xlu0 1
  %1627 = vperm.xlu0 %1626, %v73
  %v1628 = vpop.permute.xlu0 %1627
  %1630 = vset.pattern.permute.xlu0 1
  %1631 = vperm.xlu0 %1630, %v74
  %v1632 = vpop.permute.xlu0 %1631
  %1634 = vset.pattern.permute.xlu0 1
  %1635 = vperm.xlu0 %1634, %v75
  %v1636 = vpop.permute.xlu0 %1635
  %1638 = vset.pattern.permute.xlu0 1
  %1639 = vperm.xlu0 %1638, %v76
  %v1640 = vpop.permute.xlu0 %1639
  %1642 = vset.pattern.permute.xlu0 1
  %1643 = vperm.xlu0 %1642, %v77
  %v1644 = vpop.permute.xlu0 %1643
  %1646 = vset.pattern.permute.xlu0 1
  %1647 = vperm.xlu0 %1646, %v78
  %v1648 = vpop.permute.xlu0 %1647
  %1650 = vset.pattern.permute.xlu0 1
  %1651 = vperm.xlu0 %1650, %v79
  %v1652 = vpop.permute.xlu0 %1651
  %1654 = vset.pattern.permute.xlu0 1
  %1655 = vperm.xlu0 %1654, %v80
  %v1656 = vpop.permute.xlu0 %1655
  %1658 = vset.pattern.permute.xlu0 1
  %1659 = vperm.xlu0 %1658, %v81
  %v1660 = vpop.permute.xlu0 %1659
  %1662 = vset.pattern.permute.xlu0 1
  %1663 = vperm.xlu0 %1662, %v82
  %v1664 = vpop.permute.xlu0 %1663
  %1666 = vset.pattern.permute.xlu0 1
  %1667 = vperm.xlu0 %1666, %v83
  %v1668 = vpop.permute.xlu0 %1667
  %1670 = vset.pattern.permute.xlu0 1
  %1671 = vperm.xlu0 %1670, %v84
  %v1672 = vpop.permute.xlu0 %1671
  %1674 = vset.pattern.permute.xlu0 1
  %1675 = vperm.xlu0 %1674, %v85
  %v1676 = vpop.permute.xlu0 %1675
  %1678 = vset.pattern.permute.xlu0 1
  %1679 = vperm.xlu0 %1678, %v86
  %v1680 = vpop.permute.xlu0 %1679
  %1682 = vset.pattern.permute.xlu0 1
  %1683 = vperm.xlu0 %1682, %v87
  %v1684 = vpop.permute.xlu0 %1683
  %1686 = vset.pattern.permute.xlu0 1
  %1687 = vperm.xlu0 %1686, %v88
  %v1688 = vpop.permute.xlu0 %1687
  %1690 = vset.pattern.permute.xlu0 1
  %1691 = vperm.xlu0 %1690, %v89
  %v1692 = vpop.permute.xlu0 %1691
  %1694 = vset.pattern.permute.xlu0 1
  %1695 = vperm.xlu0 %1694, %v90
  %v1696 = vpop.permute.xlu0 %1695
  %1698 = vset.pattern.permute.xlu0 1
  %1699 = vperm.xlu0 %1698, %v91
  %v1700 = vpop.permute.xlu0 %1699
  %1702 = vset.pattern.permute.xlu0 1
  %1703 = vperm.xlu0 %1702, %v92
  %v1704 = vpop.permute.xlu0 %1703
  %1706 = vset.pattern.permute.xlu0 1
  %1707 = vperm.xlu0 %1706, %v93
  %v1708 = vpop.permute.xlu0 %1707
  %1710 = vset.pattern.permute.xlu0 1
  %1711 = vperm.xlu0 %1710, %v94
  %v1712 = vpop.permute.xlu0 %1711
  %1714 = vset.pattern.permute.xlu0 1
  %1715 = vperm.xlu0 %1714, %v95
  %v1716 = vpop.permute.xlu0 %1715
  %1718 = vset.pattern.permute.xlu0 1
  %1719 = vperm.xlu0 %1718, %v96
  %v1720 = vpop.permute.xlu0 %1719
  %1722 = vset.pattern.permute.xlu0 1
  %1723 = vperm.xlu0 %1722, %v97
  %v1724 = vpop.permute.xlu0 %1723
  %1726 = vset.pattern.permute.xlu0 1
  %1727 = vperm.xlu0 %1726, %v98
  %v1728 = vpop.permute.xlu0 %1727
  %v1730 = vmul.f32 %v366, %v1556
  %v1731 = vmul.f32 %v367, %v1560
  %v1732 = vmul.f32 %v368, %v1564
  %v1733 = vmul.f32 %v369, %v1568
  %v1734 = vmul.f32 %v370, %v1572
  %v1735 = vmul.f32 %v371, %v1576
  %v1736 = vmul.f32 %v372, %v1580
  %v1737 = vmul.f32 %v373, %v1584
  %v1738 = vmul.f32 %v374, %v1588
  %v1739 = vmul.f32 %v375, %v1592
  %v1740 = vmul.f32 %v376, %v1596
  %v1741 = vmul.f32 %v377, %v1600
  %v1742 = vmul.f32 %v378, %v1604
  %v1743 = vmul.f32 %v379, %v1608
  %v1744 = vmul.f32 %v380, %v1612
  %v1745 = vmul.f32 %v381, %v1616
  %v1746 = vmul.f32 %v382, %v1620
  %v1747 = vmul.f32 %v383, %v1624
  %v1748 = vmul.f32 %v384, %v1628
  %v1749 = vmul.f32 %v385, %v1632
  %v1750 = vmul.f32 %v386, %v1636
  %v1751 = vmul.f32 %v387, %v1640
  %v1752 = vmul.f32 %v388, %v1644
  %v1753 = vmul.f32 %v389, %v1648
  %v1754 = vmul.f32 %v390, %v1652
  %v1755 = vmul.f32 %v391, %v1656
  %v1756 = vmul.f32 %v392, %v1660
  %v1757 = vmul.f32 %v393, %v1664
  %v1758 = vmul.f32 %v394, %v1668
  %v1759 = vmul.f32 %v395, %v1672
  %v1760 = vmul.f32 %v396, %v1676
  %v1761 = vmul.f32 %v397, %v1680
  %v1762 = vmul.f32 %v398, %v1684
  %v1763 = vmul.f32 %v399, %v1688
  %v1764 = vmul.f32 %v400, %v1692
  %v1765 = vmul.f32 %v401, %v1696
  %v1766 = vmul.f32 %v402, %v1700
  %v1767 = vmul.f32 %v403, %v1704
  %v1768 = vmul.f32 %v404, %v1708
  %v1769 = vmul.f32 %v405, %v1712
  %v1770 = vmul.f32 %v406, %v1716
  %v1771 = vmul.f32 %v407, %v1720
  %v1772 = vmul.f32 %v408, %v1724
  %v1773 = vmul.f32 %v409, %v1728
  %1818 = vrot.lane.b32.xlu0 %v1730, 127
  %v1819 = vpop.permute.xlu0 %1818
  %1820 = vrot.lane.b32.xlu0 %v1731, 127
  %v1821 = vpop.permute.xlu0 %1820
  %1822 = vrot.lane.b32.xlu0 %v1732, 127
  %v1823 = vpop.permute.xlu0 %1822
  %1824 = vrot.lane.b32.xlu0 %v1733, 127
  %v1825 = vpop.permute.xlu0 %1824
  %1826 = vrot.lane.b32.xlu0 %v1734, 127
  %v1827 = vpop.permute.xlu0 %1826
  %1828 = vrot.lane.b32.xlu0 %v1735, 127
  %v1829 = vpop.permute.xlu0 %1828
  %1830 = vrot.lane.b32.xlu0 %v1736, 127
  %v1831 = vpop.permute.xlu0 %1830
  %1832 = vrot.lane.b32.xlu0 %v1737, 127
  %v1833 = vpop.permute.xlu0 %1832
  %1834 = vrot.lane.b32.xlu0 %v1738, 127
  %v1835 = vpop.permute.xlu0 %1834
  %1836 = vrot.lane.b32.xlu0 %v1739, 127
  %v1837 = vpop.permute.xlu0 %1836
  %1838 = vrot.lane.b32.xlu0 %v1740, 127
  %v1839 = vpop.permute.xlu0 %1838
  %1840 = vrot.lane.b32.xlu0 %v1741, 127
  %v1841 = vpop.permute.xlu0 %1840
  %1842 = vrot.lane.b32.xlu0 %v1742, 127
  %v1843 = vpop.permute.xlu0 %1842
  %1844 = vrot.lane.b32.xlu0 %v1743, 127
  %v1845 = vpop.permute.xlu0 %1844
  %1846 = vrot.lane.b32.xlu0 %v1744, 127
  %v1847 = vpop.permute.xlu0 %1846
  %1848 = vrot.lane.b32.xlu0 %v1745, 127
  %v1849 = vpop.permute.xlu0 %1848
  %1850 = vrot.lane.b32.xlu0 %v1746, 127
  %v1851 = vpop.permute.xlu0 %1850
  %1852 = vrot.lane.b32.xlu0 %v1747, 127
  %v1853 = vpop.permute.xlu0 %1852
  %1854 = vrot.lane.b32.xlu0 %v1748, 127
  %v1855 = vpop.permute.xlu0 %1854
  %1856 = vrot.lane.b32.xlu0 %v1749, 127
  %v1857 = vpop.permute.xlu0 %1856
  %1858 = vrot.lane.b32.xlu0 %v1750, 127
  %v1859 = vpop.permute.xlu0 %1858
  %1860 = vrot.lane.b32.xlu0 %v1751, 127
  %v1861 = vpop.permute.xlu0 %1860
  %1862 = vrot.lane.b32.xlu0 %v1752, 127
  %v1863 = vpop.permute.xlu0 %1862
  %1864 = vrot.lane.b32.xlu0 %v1753, 127
  %v1865 = vpop.permute.xlu0 %1864
  %1866 = vrot.lane.b32.xlu0 %v1754, 127
  %v1867 = vpop.permute.xlu0 %1866
  %1868 = vrot.lane.b32.xlu0 %v1755, 127
  %v1869 = vpop.permute.xlu0 %1868
  %1870 = vrot.lane.b32.xlu0 %v1756, 127
  %v1871 = vpop.permute.xlu0 %1870
  %1872 = vrot.lane.b32.xlu0 %v1757, 127
  %v1873 = vpop.permute.xlu0 %1872
  %1874 = vrot.lane.b32.xlu0 %v1758, 127
  %v1875 = vpop.permute.xlu0 %1874
  %1876 = vrot.lane.b32.xlu0 %v1759, 127
  %v1877 = vpop.permute.xlu0 %1876
  %1878 = vrot.lane.b32.xlu0 %v1760, 127
  %v1879 = vpop.permute.xlu0 %1878
  %1880 = vrot.lane.b32.xlu0 %v1761, 127
  %v1881 = vpop.permute.xlu0 %1880
  %1882 = vrot.lane.b32.xlu0 %v1762, 127
  %v1883 = vpop.permute.xlu0 %1882
  %1884 = vrot.lane.b32.xlu0 %v1763, 127
  %v1885 = vpop.permute.xlu0 %1884
  %1886 = vrot.lane.b32.xlu0 %v1764, 127
  %v1887 = vpop.permute.xlu0 %1886
  %1888 = vrot.lane.b32.xlu0 %v1765, 127
  %v1889 = vpop.permute.xlu0 %1888
  %1890 = vrot.lane.b32.xlu0 %v1766, 127
  %v1891 = vpop.permute.xlu0 %1890
  %1892 = vrot.lane.b32.xlu0 %v1767, 127
  %v1893 = vpop.permute.xlu0 %1892
  %1894 = vrot.lane.b32.xlu0 %v1768, 127
  %v1895 = vpop.permute.xlu0 %1894
  %1896 = vrot.lane.b32.xlu0 %v1769, 127
  %v1897 = vpop.permute.xlu0 %1896
  %1898 = vrot.lane.b32.xlu0 %v1770, 127
  %v1899 = vpop.permute.xlu0 %1898
  %1900 = vrot.lane.b32.xlu0 %v1771, 127
  %v1901 = vpop.permute.xlu0 %1900
  %1902 = vrot.lane.b32.xlu0 %v1772, 127
  %v1903 = vpop.permute.xlu0 %1902
  %1904 = vrot.lane.b32.xlu0 %v1773, 127
  %v1905 = vpop.permute.xlu0 %1904
  %v1950 = vadd.f32 %v1510, %v1819
  %v1951 = vadd.f32 %v1511, %v1821
  %v1952 = vadd.f32 %v1512, %v1823
  %v1953 = vadd.f32 %v1513, %v1825
  %v1954 = vadd.f32 %v1514, %v1827
  %v1955 = vadd.f32 %v1515, %v1829
  %v1956 = vadd.f32 %v1516, %v1831
  %v1957 = vadd.f32 %v1517, %v1833
  %v1958 = vadd.f32 %v1518, %v1835
  %v1959 = vadd.f32 %v1519, %v1837
  %v1960 = vadd.f32 %v1520, %v1839
  %v1961 = vadd.f32 %v1521, %v1841
  %v1962 = vadd.f32 %v1522, %v1843
  %v1963 = vadd.f32 %v1523, %v1845
  %v1964 = vadd.f32 %v1524, %v1847
  %v1965 = vadd.f32 %v1525, %v1849
  %v1966 = vadd.f32 %v1526, %v1851
  %v1967 = vadd.f32 %v1527, %v1853
  %v1968 = vadd.f32 %v1528, %v1855
  %v1969 = vadd.f32 %v1529, %v1857
  %v1970 = vadd.f32 %v1530, %v1859
  %v1971 = vadd.f32 %v1531, %v1861
  %v1972 = vadd.f32 %v1532, %v1863
  %v1973 = vadd.f32 %v1533, %v1865
  %v1974 = vadd.f32 %v1534, %v1867
  %v1975 = vadd.f32 %v1535, %v1869
  %v1976 = vadd.f32 %v1536, %v1871
  %v1977 = vadd.f32 %v1537, %v1873
  %v1978 = vadd.f32 %v1538, %v1875
  %v1979 = vadd.f32 %v1539, %v1877
  %v1980 = vadd.f32 %v1540, %v1879
  %v1981 = vadd.f32 %v1541, %v1881
  %v1982 = vadd.f32 %v1542, %v1883
  %v1983 = vadd.f32 %v1543, %v1885
  %v1984 = vadd.f32 %v1544, %v1887
  %v1985 = vadd.f32 %v1545, %v1889
  %v1986 = vadd.f32 %v1546, %v1891
  %v1987 = vadd.f32 %v1547, %v1893
  %v1988 = vadd.f32 %v1548, %v1895
  %v1989 = vadd.f32 %v1549, %v1897
  %v1990 = vadd.f32 %v1550, %v1899
  %v1991 = vadd.f32 %v1551, %v1901
  %v1992 = vadd.f32 %v1552, %v1903
  %v1993 = vadd.f32 %v1553, %v1905
  %1994 = vset.pattern.permute.xlu0 2
  %1995 = vperm.xlu0 %1994, %v55
  %v1996 = vpop.permute.xlu0 %1995
  %1998 = vset.pattern.permute.xlu0 2
  %1999 = vperm.xlu0 %1998, %v56
  %v2000 = vpop.permute.xlu0 %1999
  %2002 = vset.pattern.permute.xlu0 2
  %2003 = vperm.xlu0 %2002, %v57
  %v2004 = vpop.permute.xlu0 %2003
  %2006 = vset.pattern.permute.xlu0 2
  %2007 = vperm.xlu0 %2006, %v58
  %v2008 = vpop.permute.xlu0 %2007
  %2010 = vset.pattern.permute.xlu0 2
  %2011 = vperm.xlu0 %2010, %v59
  %v2012 = vpop.permute.xlu0 %2011
  %2014 = vset.pattern.permute.xlu0 2
  %2015 = vperm.xlu0 %2014, %v60
  %v2016 = vpop.permute.xlu0 %2015
  %2018 = vset.pattern.permute.xlu0 2
  %2019 = vperm.xlu0 %2018, %v61
  %v2020 = vpop.permute.xlu0 %2019
  %2022 = vset.pattern.permute.xlu0 2
  %2023 = vperm.xlu0 %2022, %v62
  %v2024 = vpop.permute.xlu0 %2023
  %2026 = vset.pattern.permute.xlu0 2
  %2027 = vperm.xlu0 %2026, %v63
  %v2028 = vpop.permute.xlu0 %2027
  %2030 = vset.pattern.permute.xlu0 2
  %2031 = vperm.xlu0 %2030, %v64
  %v2032 = vpop.permute.xlu0 %2031
  %2034 = vset.pattern.permute.xlu0 2
  %2035 = vperm.xlu0 %2034, %v65
  %v2036 = vpop.permute.xlu0 %2035
  %2038 = vset.pattern.permute.xlu0 2
  %2039 = vperm.xlu0 %2038, %v66
  %v2040 = vpop.permute.xlu0 %2039
  %2042 = vset.pattern.permute.xlu0 2
  %2043 = vperm.xlu0 %2042, %v67
  %v2044 = vpop.permute.xlu0 %2043
  %2046 = vset.pattern.permute.xlu0 2
  %2047 = vperm.xlu0 %2046, %v68
  %v2048 = vpop.permute.xlu0 %2047
  %2050 = vset.pattern.permute.xlu0 2
  %2051 = vperm.xlu0 %2050, %v69
  %v2052 = vpop.permute.xlu0 %2051
  %2054 = vset.pattern.permute.xlu0 2
  %2055 = vperm.xlu0 %2054, %v70
  %v2056 = vpop.permute.xlu0 %2055
  %2058 = vset.pattern.permute.xlu0 2
  %2059 = vperm.xlu0 %2058, %v71
  %v2060 = vpop.permute.xlu0 %2059
  %2062 = vset.pattern.permute.xlu0 2
  %2063 = vperm.xlu0 %2062, %v72
  %v2064 = vpop.permute.xlu0 %2063
  %2066 = vset.pattern.permute.xlu0 2
  %2067 = vperm.xlu0 %2066, %v73
  %v2068 = vpop.permute.xlu0 %2067
  %2070 = vset.pattern.permute.xlu0 2
  %2071 = vperm.xlu0 %2070, %v74
  %v2072 = vpop.permute.xlu0 %2071
  %2074 = vset.pattern.permute.xlu0 2
  %2075 = vperm.xlu0 %2074, %v75
  %v2076 = vpop.permute.xlu0 %2075
  %2078 = vset.pattern.permute.xlu0 2
  %2079 = vperm.xlu0 %2078, %v76
  %v2080 = vpop.permute.xlu0 %2079
  %2082 = vset.pattern.permute.xlu0 2
  %2083 = vperm.xlu0 %2082, %v77
  %v2084 = vpop.permute.xlu0 %2083
  %2086 = vset.pattern.permute.xlu0 2
  %2087 = vperm.xlu0 %2086, %v78
  %v2088 = vpop.permute.xlu0 %2087
  %2090 = vset.pattern.permute.xlu0 2
  %2091 = vperm.xlu0 %2090, %v79
  %v2092 = vpop.permute.xlu0 %2091
  %2094 = vset.pattern.permute.xlu0 2
  %2095 = vperm.xlu0 %2094, %v80
  %v2096 = vpop.permute.xlu0 %2095
  %2098 = vset.pattern.permute.xlu0 2
  %2099 = vperm.xlu0 %2098, %v81
  %v2100 = vpop.permute.xlu0 %2099
  %2102 = vset.pattern.permute.xlu0 2
  %2103 = vperm.xlu0 %2102, %v82
  %v2104 = vpop.permute.xlu0 %2103
  %2106 = vset.pattern.permute.xlu0 2
  %2107 = vperm.xlu0 %2106, %v83
  %v2108 = vpop.permute.xlu0 %2107
  %2110 = vset.pattern.permute.xlu0 2
  %2111 = vperm.xlu0 %2110, %v84
  %v2112 = vpop.permute.xlu0 %2111
  %2114 = vset.pattern.permute.xlu0 2
  %2115 = vperm.xlu0 %2114, %v85
  %v2116 = vpop.permute.xlu0 %2115
  %2118 = vset.pattern.permute.xlu0 2
  %2119 = vperm.xlu0 %2118, %v86
  %v2120 = vpop.permute.xlu0 %2119
  %2122 = vset.pattern.permute.xlu0 2
  %2123 = vperm.xlu0 %2122, %v87
  %v2124 = vpop.permute.xlu0 %2123
  %2126 = vset.pattern.permute.xlu0 2
  %2127 = vperm.xlu0 %2126, %v88
  %v2128 = vpop.permute.xlu0 %2127
  %2130 = vset.pattern.permute.xlu0 2
  %2131 = vperm.xlu0 %2130, %v89
  %v2132 = vpop.permute.xlu0 %2131
  %2134 = vset.pattern.permute.xlu0 2
  %2135 = vperm.xlu0 %2134, %v90
  %v2136 = vpop.permute.xlu0 %2135
  %2138 = vset.pattern.permute.xlu0 2
  %2139 = vperm.xlu0 %2138, %v91
  %v2140 = vpop.permute.xlu0 %2139
  %2142 = vset.pattern.permute.xlu0 2
  %2143 = vperm.xlu0 %2142, %v92
  %v2144 = vpop.permute.xlu0 %2143
  %2146 = vset.pattern.permute.xlu0 2
  %2147 = vperm.xlu0 %2146, %v93
  %v2148 = vpop.permute.xlu0 %2147
  %2150 = vset.pattern.permute.xlu0 2
  %2151 = vperm.xlu0 %2150, %v94
  %v2152 = vpop.permute.xlu0 %2151
  %2154 = vset.pattern.permute.xlu0 2
  %2155 = vperm.xlu0 %2154, %v95
  %v2156 = vpop.permute.xlu0 %2155
  %2158 = vset.pattern.permute.xlu0 2
  %2159 = vperm.xlu0 %2158, %v96
  %v2160 = vpop.permute.xlu0 %2159
  %2162 = vset.pattern.permute.xlu0 2
  %2163 = vperm.xlu0 %2162, %v97
  %v2164 = vpop.permute.xlu0 %2163
  %2166 = vset.pattern.permute.xlu0 2
  %2167 = vperm.xlu0 %2166, %v98
  %v2168 = vpop.permute.xlu0 %2167
  %v2170 = vmul.f32 %v982, %v1996
  %v2171 = vmul.f32 %v983, %v2000
  %v2172 = vmul.f32 %v984, %v2004
  %v2173 = vmul.f32 %v985, %v2008
  %v2174 = vmul.f32 %v986, %v2012
  %v2175 = vmul.f32 %v987, %v2016
  %v2176 = vmul.f32 %v988, %v2020
  %v2177 = vmul.f32 %v989, %v2024
  %v2178 = vmul.f32 %v990, %v2028
  %v2179 = vmul.f32 %v991, %v2032
  %v2180 = vmul.f32 %v992, %v2036
  %v2181 = vmul.f32 %v993, %v2040
  %v2182 = vmul.f32 %v994, %v2044
  %v2183 = vmul.f32 %v995, %v2048
  %v2184 = vmul.f32 %v996, %v2052
  %v2185 = vmul.f32 %v997, %v2056
  %v2186 = vmul.f32 %v998, %v2060
  %v2187 = vmul.f32 %v999, %v2064
  %v2188 = vmul.f32 %v1000, %v2068
  %v2189 = vmul.f32 %v1001, %v2072
  %v2190 = vmul.f32 %v1002, %v2076
  %v2191 = vmul.f32 %v1003, %v2080
  %v2192 = vmul.f32 %v1004, %v2084
  %v2193 = vmul.f32 %v1005, %v2088
  %v2194 = vmul.f32 %v1006, %v2092
  %v2195 = vmul.f32 %v1007, %v2096
  %v2196 = vmul.f32 %v1008, %v2100
  %v2197 = vmul.f32 %v1009, %v2104
  %v2198 = vmul.f32 %v1010, %v2108
  %v2199 = vmul.f32 %v1011, %v2112
  %v2200 = vmul.f32 %v1012, %v2116
  %v2201 = vmul.f32 %v1013, %v2120
  %v2202 = vmul.f32 %v1014, %v2124
  %v2203 = vmul.f32 %v1015, %v2128
  %v2204 = vmul.f32 %v1016, %v2132
  %v2205 = vmul.f32 %v1017, %v2136
  %v2206 = vmul.f32 %v1018, %v2140
  %v2207 = vmul.f32 %v1019, %v2144
  %v2208 = vmul.f32 %v1020, %v2148
  %v2209 = vmul.f32 %v1021, %v2152
  %v2210 = vmul.f32 %v1022, %v2156
  %v2211 = vmul.f32 %v1023, %v2160
  %v2212 = vmul.f32 %v1024, %v2164
  %v2213 = vmul.f32 %v1025, %v2168
  %2258 = vrot.lane.b32.xlu0 %v2170, 126
  %v2259 = vpop.permute.xlu0 %2258
  %2260 = vrot.lane.b32.xlu0 %v2171, 126
  %v2261 = vpop.permute.xlu0 %2260
  %2262 = vrot.lane.b32.xlu0 %v2172, 126
  %v2263 = vpop.permute.xlu0 %2262
  %2264 = vrot.lane.b32.xlu0 %v2173, 126
  %v2265 = vpop.permute.xlu0 %2264
  %2266 = vrot.lane.b32.xlu0 %v2174, 126
  %v2267 = vpop.permute.xlu0 %2266
  %2268 = vrot.lane.b32.xlu0 %v2175, 126
  %v2269 = vpop.permute.xlu0 %2268
  %2270 = vrot.lane.b32.xlu0 %v2176, 126
  %v2271 = vpop.permute.xlu0 %2270
  %2272 = vrot.lane.b32.xlu0 %v2177, 126
  %v2273 = vpop.permute.xlu0 %2272
  %2274 = vrot.lane.b32.xlu0 %v2178, 126
  %v2275 = vpop.permute.xlu0 %2274
  %2276 = vrot.lane.b32.xlu0 %v2179, 126
  %v2277 = vpop.permute.xlu0 %2276
  %2278 = vrot.lane.b32.xlu0 %v2180, 126
  %v2279 = vpop.permute.xlu0 %2278
  %2280 = vrot.lane.b32.xlu0 %v2181, 126
  %v2281 = vpop.permute.xlu0 %2280
  %2282 = vrot.lane.b32.xlu0 %v2182, 126
  %v2283 = vpop.permute.xlu0 %2282
  %2284 = vrot.lane.b32.xlu0 %v2183, 126
  %v2285 = vpop.permute.xlu0 %2284
  %2286 = vrot.lane.b32.xlu0 %v2184, 126
  %v2287 = vpop.permute.xlu0 %2286
  %2288 = vrot.lane.b32.xlu0 %v2185, 126
  %v2289 = vpop.permute.xlu0 %2288
  %2290 = vrot.lane.b32.xlu0 %v2186, 126
  %v2291 = vpop.permute.xlu0 %2290
  %2292 = vrot.lane.b32.xlu0 %v2187, 126
  %v2293 = vpop.permute.xlu0 %2292
  %2294 = vrot.lane.b32.xlu0 %v2188, 126
  %v2295 = vpop.permute.xlu0 %2294
  %2296 = vrot.lane.b32.xlu0 %v2189, 126
  %v2297 = vpop.permute.xlu0 %2296
  %2298 = vrot.lane.b32.xlu0 %v2190, 126
  %v2299 = vpop.permute.xlu0 %2298
  %2300 = vrot.lane.b32.xlu0 %v2191, 126
  %v2301 = vpop.permute.xlu0 %2300
  %2302 = vrot.lane.b32.xlu0 %v2192, 126
  %v2303 = vpop.permute.xlu0 %2302
  %2304 = vrot.lane.b32.xlu0 %v2193, 126
  %v2305 = vpop.permute.xlu0 %2304
  %2306 = vrot.lane.b32.xlu0 %v2194, 126
  %v2307 = vpop.permute.xlu0 %2306
  %2308 = vrot.lane.b32.xlu0 %v2195, 126
  %v2309 = vpop.permute.xlu0 %2308
  %2310 = vrot.lane.b32.xlu0 %v2196, 126
  %v2311 = vpop.permute.xlu0 %2310
  %2312 = vrot.lane.b32.xlu0 %v2197, 126
  %v2313 = vpop.permute.xlu0 %2312
  %2314 = vrot.lane.b32.xlu0 %v2198, 126
  %v2315 = vpop.permute.xlu0 %2314
  %2316 = vrot.lane.b32.xlu0 %v2199, 126
  %v2317 = vpop.permute.xlu0 %2316
  %2318 = vrot.lane.b32.xlu0 %v2200, 126
  %v2319 = vpop.permute.xlu0 %2318
  %2320 = vrot.lane.b32.xlu0 %v2201, 126
  %v2321 = vpop.permute.xlu0 %2320
  %2322 = vrot.lane.b32.xlu0 %v2202, 126
  %v2323 = vpop.permute.xlu0 %2322
  %2324 = vrot.lane.b32.xlu0 %v2203, 126
  %v2325 = vpop.permute.xlu0 %2324
  %2326 = vrot.lane.b32.xlu0 %v2204, 126
  %v2327 = vpop.permute.xlu0 %2326
  %2328 = vrot.lane.b32.xlu0 %v2205, 126
  %v2329 = vpop.permute.xlu0 %2328
  %2330 = vrot.lane.b32.xlu0 %v2206, 126
  %v2331 = vpop.permute.xlu0 %2330
  %2332 = vrot.lane.b32.xlu0 %v2207, 126
  %v2333 = vpop.permute.xlu0 %2332
  %2334 = vrot.lane.b32.xlu0 %v2208, 126
  %v2335 = vpop.permute.xlu0 %2334
  %2336 = vrot.lane.b32.xlu0 %v2209, 126
  %v2337 = vpop.permute.xlu0 %2336
  %2338 = vrot.lane.b32.xlu0 %v2210, 126
  %v2339 = vpop.permute.xlu0 %2338
  %2340 = vrot.lane.b32.xlu0 %v2211, 126
  %v2341 = vpop.permute.xlu0 %2340
  %2342 = vrot.lane.b32.xlu0 %v2212, 126
  %v2343 = vpop.permute.xlu0 %2342
  %2344 = vrot.lane.b32.xlu0 %v2213, 126
  %v2345 = vpop.permute.xlu0 %2344
  %v2390 = vadd.f32 %v1950, %v2259
  %v2391 = vadd.f32 %v1951, %v2261
  %v2392 = vadd.f32 %v1952, %v2263
  %v2393 = vadd.f32 %v1953, %v2265
  %v2394 = vadd.f32 %v1954, %v2267
  %v2395 = vadd.f32 %v1955, %v2269
  %v2396 = vadd.f32 %v1956, %v2271
  %v2397 = vadd.f32 %v1957, %v2273
  %v2398 = vadd.f32 %v1958, %v2275
  %v2399 = vadd.f32 %v1959, %v2277
  %v2400 = vadd.f32 %v1960, %v2279
  %v2401 = vadd.f32 %v1961, %v2281
  %v2402 = vadd.f32 %v1962, %v2283
  %v2403 = vadd.f32 %v1963, %v2285
  %v2404 = vadd.f32 %v1964, %v2287
  %v2405 = vadd.f32 %v1965, %v2289
  %v2406 = vadd.f32 %v1966, %v2291
  %v2407 = vadd.f32 %v1967, %v2293
  %v2408 = vadd.f32 %v1968, %v2295
  %v2409 = vadd.f32 %v1969, %v2297
  %v2410 = vadd.f32 %v1970, %v2299
  %v2411 = vadd.f32 %v1971, %v2301
  %v2412 = vadd.f32 %v1972, %v2303
  %v2413 = vadd.f32 %v1973, %v2305
  %v2414 = vadd.f32 %v1974, %v2307
  %v2415 = vadd.f32 %v1975, %v2309
  %v2416 = vadd.f32 %v1976, %v2311
  %v2417 = vadd.f32 %v1977, %v2313
  %v2418 = vadd.f32 %v1978, %v2315
  %v2419 = vadd.f32 %v1979, %v2317
  %v2420 = vadd.f32 %v1980, %v2319
  %v2421 = vadd.f32 %v1981, %v2321
  %v2422 = vadd.f32 %v1982, %v2323
  %v2423 = vadd.f32 %v1983, %v2325
  %v2424 = vadd.f32 %v1984, %v2327
  %v2425 = vadd.f32 %v1985, %v2329
  %v2426 = vadd.f32 %v1986, %v2331
  %v2427 = vadd.f32 %v1987, %v2333
  %v2428 = vadd.f32 %v1988, %v2335
  %v2429 = vadd.f32 %v1989, %v2337
  %v2430 = vadd.f32 %v1990, %v2339
  %v2431 = vadd.f32 %v1991, %v2341
  %v2432 = vadd.f32 %v1992, %v2343
  %v2433 = vadd.f32 %v1993, %v2345
  %2434 = vset.pattern.permute.xlu0 3
  %2435 = vperm.xlu0 %2434, %v55
  %v2436 = vpop.permute.xlu0 %2435
  %2438 = vset.pattern.permute.xlu0 3
  %2439 = vperm.xlu0 %2438, %v56
  %v2440 = vpop.permute.xlu0 %2439
  %2442 = vset.pattern.permute.xlu0 3
  %2443 = vperm.xlu0 %2442, %v57
  %v2444 = vpop.permute.xlu0 %2443
  %2446 = vset.pattern.permute.xlu0 3
  %2447 = vperm.xlu0 %2446, %v58
  %v2448 = vpop.permute.xlu0 %2447
  %2450 = vset.pattern.permute.xlu0 3
  %2451 = vperm.xlu0 %2450, %v59
  %v2452 = vpop.permute.xlu0 %2451
  %2454 = vset.pattern.permute.xlu0 3
  %2455 = vperm.xlu0 %2454, %v60
  %v2456 = vpop.permute.xlu0 %2455
  %2458 = vset.pattern.permute.xlu0 3
  %2459 = vperm.xlu0 %2458, %v61
  %v2460 = vpop.permute.xlu0 %2459
  %2462 = vset.pattern.permute.xlu0 3
  %2463 = vperm.xlu0 %2462, %v62
  %v2464 = vpop.permute.xlu0 %2463
  %2466 = vset.pattern.permute.xlu0 3
  %2467 = vperm.xlu0 %2466, %v63
  %v2468 = vpop.permute.xlu0 %2467
  %2470 = vset.pattern.permute.xlu0 3
  %2471 = vperm.xlu0 %2470, %v64
  %v2472 = vpop.permute.xlu0 %2471
  %2474 = vset.pattern.permute.xlu0 3
  %2475 = vperm.xlu0 %2474, %v65
  %v2476 = vpop.permute.xlu0 %2475
  %2478 = vset.pattern.permute.xlu0 3
  %2479 = vperm.xlu0 %2478, %v66
  %v2480 = vpop.permute.xlu0 %2479
  %2482 = vset.pattern.permute.xlu0 3
  %2483 = vperm.xlu0 %2482, %v67
  %v2484 = vpop.permute.xlu0 %2483
  %2486 = vset.pattern.permute.xlu0 3
  %2487 = vperm.xlu0 %2486, %v68
  %v2488 = vpop.permute.xlu0 %2487
  %2490 = vset.pattern.permute.xlu0 3
  %2491 = vperm.xlu0 %2490, %v69
  %v2492 = vpop.permute.xlu0 %2491
  %2494 = vset.pattern.permute.xlu0 3
  %2495 = vperm.xlu0 %2494, %v70
  %v2496 = vpop.permute.xlu0 %2495
  %2498 = vset.pattern.permute.xlu0 3
  %2499 = vperm.xlu0 %2498, %v71
  %v2500 = vpop.permute.xlu0 %2499
  %2502 = vset.pattern.permute.xlu0 3
  %2503 = vperm.xlu0 %2502, %v72
  %v2504 = vpop.permute.xlu0 %2503
  %2506 = vset.pattern.permute.xlu0 3
  %2507 = vperm.xlu0 %2506, %v73
  %v2508 = vpop.permute.xlu0 %2507
  %2510 = vset.pattern.permute.xlu0 3
  %2511 = vperm.xlu0 %2510, %v74
  %v2512 = vpop.permute.xlu0 %2511
  %2514 = vset.pattern.permute.xlu0 3
  %2515 = vperm.xlu0 %2514, %v75
  %v2516 = vpop.permute.xlu0 %2515
  %2518 = vset.pattern.permute.xlu0 3
  %2519 = vperm.xlu0 %2518, %v76
  %v2520 = vpop.permute.xlu0 %2519
  %2522 = vset.pattern.permute.xlu0 3
  %2523 = vperm.xlu0 %2522, %v77
  %v2524 = vpop.permute.xlu0 %2523
  %2526 = vset.pattern.permute.xlu0 3
  %2527 = vperm.xlu0 %2526, %v78
  %v2528 = vpop.permute.xlu0 %2527
  %2530 = vset.pattern.permute.xlu0 3
  %2531 = vperm.xlu0 %2530, %v79
  %v2532 = vpop.permute.xlu0 %2531
  %2534 = vset.pattern.permute.xlu0 3
  %2535 = vperm.xlu0 %2534, %v80
  %v2536 = vpop.permute.xlu0 %2535
  %2538 = vset.pattern.permute.xlu0 3
  %2539 = vperm.xlu0 %2538, %v81
  %v2540 = vpop.permute.xlu0 %2539
  %2542 = vset.pattern.permute.xlu0 3
  %2543 = vperm.xlu0 %2542, %v82
  %v2544 = vpop.permute.xlu0 %2543
  %2546 = vset.pattern.permute.xlu0 3
  %2547 = vperm.xlu0 %2546, %v83
  %v2548 = vpop.permute.xlu0 %2547
  %2550 = vset.pattern.permute.xlu0 3
  %2551 = vperm.xlu0 %2550, %v84
  %v2552 = vpop.permute.xlu0 %2551
  %2554 = vset.pattern.permute.xlu0 3
  %2555 = vperm.xlu0 %2554, %v85
  %v2556 = vpop.permute.xlu0 %2555
  %2558 = vset.pattern.permute.xlu0 3
  %2559 = vperm.xlu0 %2558, %v86
  %v2560 = vpop.permute.xlu0 %2559
  %2562 = vset.pattern.permute.xlu0 3
  %2563 = vperm.xlu0 %2562, %v87
  %v2564 = vpop.permute.xlu0 %2563
  %2566 = vset.pattern.permute.xlu0 3
  %2567 = vperm.xlu0 %2566, %v88
  %v2568 = vpop.permute.xlu0 %2567
  %2570 = vset.pattern.permute.xlu0 3
  %2571 = vperm.xlu0 %2570, %v89
  %v2572 = vpop.permute.xlu0 %2571
  %2574 = vset.pattern.permute.xlu0 3
  %2575 = vperm.xlu0 %2574, %v90
  %v2576 = vpop.permute.xlu0 %2575
  %2578 = vset.pattern.permute.xlu0 3
  %2579 = vperm.xlu0 %2578, %v91
  %v2580 = vpop.permute.xlu0 %2579
  %2582 = vset.pattern.permute.xlu0 3
  %2583 = vperm.xlu0 %2582, %v92
  %v2584 = vpop.permute.xlu0 %2583
  %2586 = vset.pattern.permute.xlu0 3
  %2587 = vperm.xlu0 %2586, %v93
  %v2588 = vpop.permute.xlu0 %2587
  %2590 = vset.pattern.permute.xlu0 3
  %2591 = vperm.xlu0 %2590, %v94
  %v2592 = vpop.permute.xlu0 %2591
  %2594 = vset.pattern.permute.xlu0 3
  %2595 = vperm.xlu0 %2594, %v95
  %v2596 = vpop.permute.xlu0 %2595
  %2598 = vset.pattern.permute.xlu0 3
  %2599 = vperm.xlu0 %2598, %v96
  %v2600 = vpop.permute.xlu0 %2599
  %2602 = vset.pattern.permute.xlu0 3
  %2603 = vperm.xlu0 %2602, %v97
  %v2604 = vpop.permute.xlu0 %2603
  %2606 = vset.pattern.permute.xlu0 3
  %2607 = vperm.xlu0 %2606, %v98
  %v2608 = vpop.permute.xlu0 %2607
  %v2610 = vmul.f32 %v674, %v2436
  %v2611 = vmul.f32 %v675, %v2440
  %v2612 = vmul.f32 %v676, %v2444
  %v2613 = vmul.f32 %v677, %v2448
  %v2614 = vmul.f32 %v678, %v2452
  %v2615 = vmul.f32 %v679, %v2456
  %v2616 = vmul.f32 %v680, %v2460
  %v2617 = vmul.f32 %v681, %v2464
  %v2618 = vmul.f32 %v682, %v2468
  %v2619 = vmul.f32 %v683, %v2472
  %v2620 = vmul.f32 %v684, %v2476
  %v2621 = vmul.f32 %v685, %v2480
  %v2622 = vmul.f32 %v686, %v2484
  %v2623 = vmul.f32 %v687, %v2488
  %v2624 = vmul.f32 %v688, %v2492
  %v2625 = vmul.f32 %v689, %v2496
  %v2626 = vmul.f32 %v690, %v2500
  %v2627 = vmul.f32 %v691, %v2504
  %v2628 = vmul.f32 %v692, %v2508
  %v2629 = vmul.f32 %v693, %v2512
  %v2630 = vmul.f32 %v694, %v2516
  %v2631 = vmul.f32 %v695, %v2520
  %v2632 = vmul.f32 %v696, %v2524
  %v2633 = vmul.f32 %v697, %v2528
  %v2634 = vmul.f32 %v698, %v2532
  %v2635 = vmul.f32 %v699, %v2536
  %v2636 = vmul.f32 %v700, %v2540
  %v2637 = vmul.f32 %v701, %v2544
  %v2638 = vmul.f32 %v702, %v2548
  %v2639 = vmul.f32 %v703, %v2552
  %v2640 = vmul.f32 %v704, %v2556
  %v2641 = vmul.f32 %v705, %v2560
  %v2642 = vmul.f32 %v706, %v2564
  %v2643 = vmul.f32 %v707, %v2568
  %v2644 = vmul.f32 %v708, %v2572
  %v2645 = vmul.f32 %v709, %v2576
  %v2646 = vmul.f32 %v710, %v2580
  %v2647 = vmul.f32 %v711, %v2584
  %v2648 = vmul.f32 %v712, %v2588
  %v2649 = vmul.f32 %v713, %v2592
  %v2650 = vmul.f32 %v714, %v2596
  %v2651 = vmul.f32 %v715, %v2600
  %v2652 = vmul.f32 %v716, %v2604
  %v2653 = vmul.f32 %v717, %v2608
  %2698 = vrot.lane.b32.xlu0 %v2610, 121
  %v2699 = vpop.permute.xlu0 %2698
  %2700 = vrot.lane.b32.xlu0 %v2611, 121
  %v2701 = vpop.permute.xlu0 %2700
  %2702 = vrot.lane.b32.xlu0 %v2612, 121
  %v2703 = vpop.permute.xlu0 %2702
  %2704 = vrot.lane.b32.xlu0 %v2613, 121
  %v2705 = vpop.permute.xlu0 %2704
  %2706 = vrot.lane.b32.xlu0 %v2614, 121
  %v2707 = vpop.permute.xlu0 %2706
  %2708 = vrot.lane.b32.xlu0 %v2615, 121
  %v2709 = vpop.permute.xlu0 %2708
  %2710 = vrot.lane.b32.xlu0 %v2616, 121
  %v2711 = vpop.permute.xlu0 %2710
  %2712 = vrot.lane.b32.xlu0 %v2617, 121
  %v2713 = vpop.permute.xlu0 %2712
  %2714 = vrot.lane.b32.xlu0 %v2618, 121
  %v2715 = vpop.permute.xlu0 %2714
  %2716 = vrot.lane.b32.xlu0 %v2619, 121
  %v2717 = vpop.permute.xlu0 %2716
  %2718 = vrot.lane.b32.xlu0 %v2620, 121
  %v2719 = vpop.permute.xlu0 %2718
  %2720 = vrot.lane.b32.xlu0 %v2621, 121
  %v2721 = vpop.permute.xlu0 %2720
  %2722 = vrot.lane.b32.xlu0 %v2622, 121
  %v2723 = vpop.permute.xlu0 %2722
  %2724 = vrot.lane.b32.xlu0 %v2623, 121
  %v2725 = vpop.permute.xlu0 %2724
  %2726 = vrot.lane.b32.xlu0 %v2624, 121
  %v2727 = vpop.permute.xlu0 %2726
  %2728 = vrot.lane.b32.xlu0 %v2625, 121
  %v2729 = vpop.permute.xlu0 %2728
  %2730 = vrot.lane.b32.xlu0 %v2626, 121
  %v2731 = vpop.permute.xlu0 %2730
  %2732 = vrot.lane.b32.xlu0 %v2627, 121
  %v2733 = vpop.permute.xlu0 %2732
  %2734 = vrot.lane.b32.xlu0 %v2628, 121
  %v2735 = vpop.permute.xlu0 %2734
  %2736 = vrot.lane.b32.xlu0 %v2629, 121
  %v2737 = vpop.permute.xlu0 %2736
  %2738 = vrot.lane.b32.xlu0 %v2630, 121
  %v2739 = vpop.permute.xlu0 %2738
  %2740 = vrot.lane.b32.xlu0 %v2631, 121
  %v2741 = vpop.permute.xlu0 %2740
  %2742 = vrot.lane.b32.xlu0 %v2632, 121
  %v2743 = vpop.permute.xlu0 %2742
  %2744 = vrot.lane.b32.xlu0 %v2633, 121
  %v2745 = vpop.permute.xlu0 %2744
  %2746 = vrot.lane.b32.xlu0 %v2634, 121
  %v2747 = vpop.permute.xlu0 %2746
  %2748 = vrot.lane.b32.xlu0 %v2635, 121
  %v2749 = vpop.permute.xlu0 %2748
  %2750 = vrot.lane.b32.xlu0 %v2636, 121
  %v2751 = vpop.permute.xlu0 %2750
  %2752 = vrot.lane.b32.xlu0 %v2637, 121
  %v2753 = vpop.permute.xlu0 %2752
  %2754 = vrot.lane.b32.xlu0 %v2638, 121
  %v2755 = vpop.permute.xlu0 %2754
  %2756 = vrot.lane.b32.xlu0 %v2639, 121
  %v2757 = vpop.permute.xlu0 %2756
  %2758 = vrot.lane.b32.xlu0 %v2640, 121
  %v2759 = vpop.permute.xlu0 %2758
  %2760 = vrot.lane.b32.xlu0 %v2641, 121
  %v2761 = vpop.permute.xlu0 %2760
  %2762 = vrot.lane.b32.xlu0 %v2642, 121
  %v2763 = vpop.permute.xlu0 %2762
  %2764 = vrot.lane.b32.xlu0 %v2643, 121
  %v2765 = vpop.permute.xlu0 %2764
  %2766 = vrot.lane.b32.xlu0 %v2644, 121
  %v2767 = vpop.permute.xlu0 %2766
  %2768 = vrot.lane.b32.xlu0 %v2645, 121
  %v2769 = vpop.permute.xlu0 %2768
  %2770 = vrot.lane.b32.xlu0 %v2646, 121
  %v2771 = vpop.permute.xlu0 %2770
  %2772 = vrot.lane.b32.xlu0 %v2647, 121
  %v2773 = vpop.permute.xlu0 %2772
  %2774 = vrot.lane.b32.xlu0 %v2648, 121
  %v2775 = vpop.permute.xlu0 %2774
  %2776 = vrot.lane.b32.xlu0 %v2649, 121
  %v2777 = vpop.permute.xlu0 %2776
  %2778 = vrot.lane.b32.xlu0 %v2650, 121
  %v2779 = vpop.permute.xlu0 %2778
  %2780 = vrot.lane.b32.xlu0 %v2651, 121
  %v2781 = vpop.permute.xlu0 %2780
  %2782 = vrot.lane.b32.xlu0 %v2652, 121
  %v2783 = vpop.permute.xlu0 %2782
  %2784 = vrot.lane.b32.xlu0 %v2653, 121
  %v2785 = vpop.permute.xlu0 %2784
  %v2830 = vadd.f32 %v2390, %v2699
  %v2831 = vadd.f32 %v2391, %v2701
  %v2832 = vadd.f32 %v2392, %v2703
  %v2833 = vadd.f32 %v2393, %v2705
  %v2834 = vadd.f32 %v2394, %v2707
  %v2835 = vadd.f32 %v2395, %v2709
  %v2836 = vadd.f32 %v2396, %v2711
  %v2837 = vadd.f32 %v2397, %v2713
  %v2838 = vadd.f32 %v2398, %v2715
  %v2839 = vadd.f32 %v2399, %v2717
  %v2840 = vadd.f32 %v2400, %v2719
  %v2841 = vadd.f32 %v2401, %v2721
  %v2842 = vadd.f32 %v2402, %v2723
  %v2843 = vadd.f32 %v2403, %v2725
  %v2844 = vadd.f32 %v2404, %v2727
  %v2845 = vadd.f32 %v2405, %v2729
  %v2846 = vadd.f32 %v2406, %v2731
  %v2847 = vadd.f32 %v2407, %v2733
  %v2848 = vadd.f32 %v2408, %v2735
  %v2849 = vadd.f32 %v2409, %v2737
  %v2850 = vadd.f32 %v2410, %v2739
  %v2851 = vadd.f32 %v2411, %v2741
  %v2852 = vadd.f32 %v2412, %v2743
  %v2853 = vadd.f32 %v2413, %v2745
  %v2854 = vadd.f32 %v2414, %v2747
  %v2855 = vadd.f32 %v2415, %v2749
  %v2856 = vadd.f32 %v2416, %v2751
  %v2857 = vadd.f32 %v2417, %v2753
  %v2858 = vadd.f32 %v2418, %v2755
  %v2859 = vadd.f32 %v2419, %v2757
  %v2860 = vadd.f32 %v2420, %v2759
  %v2861 = vadd.f32 %v2421, %v2761
  %v2862 = vadd.f32 %v2422, %v2763
  %v2863 = vadd.f32 %v2423, %v2765
  %v2864 = vadd.f32 %v2424, %v2767
  %v2865 = vadd.f32 %v2425, %v2769
  %v2866 = vadd.f32 %v2426, %v2771
  %v2867 = vadd.f32 %v2427, %v2773
  %v2868 = vadd.f32 %v2428, %v2775
  %v2869 = vadd.f32 %v2429, %v2777
  %v2870 = vadd.f32 %v2430, %v2779
  %v2871 = vadd.f32 %v2431, %v2781
  %v2872 = vadd.f32 %v2432, %v2783
  %v2873 = vadd.f32 %v2433, %v2785
  %2874 = vset.pattern.permute.xlu0 5
  %2875 = vperm.xlu0 %2874, %v55
  %v2876 = vpop.permute.xlu0 %2875
  %2878 = vset.pattern.permute.xlu0 5
  %2879 = vperm.xlu0 %2878, %v56
  %v2880 = vpop.permute.xlu0 %2879
  %2882 = vset.pattern.permute.xlu0 5
  %2883 = vperm.xlu0 %2882, %v57
  %v2884 = vpop.permute.xlu0 %2883
  %2886 = vset.pattern.permute.xlu0 5
  %2887 = vperm.xlu0 %2886, %v58
  %v2888 = vpop.permute.xlu0 %2887
  %2890 = vset.pattern.permute.xlu0 5
  %2891 = vperm.xlu0 %2890, %v59
  %v2892 = vpop.permute.xlu0 %2891
  %2894 = vset.pattern.permute.xlu0 5
  %2895 = vperm.xlu0 %2894, %v60
  %v2896 = vpop.permute.xlu0 %2895
  %2898 = vset.pattern.permute.xlu0 5
  %2899 = vperm.xlu0 %2898, %v61
  %v2900 = vpop.permute.xlu0 %2899
  %2902 = vset.pattern.permute.xlu0 5
  %2903 = vperm.xlu0 %2902, %v62
  %v2904 = vpop.permute.xlu0 %2903
  %2906 = vset.pattern.permute.xlu0 5
  %2907 = vperm.xlu0 %2906, %v63
  %v2908 = vpop.permute.xlu0 %2907
  %2910 = vset.pattern.permute.xlu0 5
  %2911 = vperm.xlu0 %2910, %v64
  %v2912 = vpop.permute.xlu0 %2911
  %2914 = vset.pattern.permute.xlu0 5
  %2915 = vperm.xlu0 %2914, %v65
  %v2916 = vpop.permute.xlu0 %2915
  %2918 = vset.pattern.permute.xlu0 5
  %2919 = vperm.xlu0 %2918, %v66
  %v2920 = vpop.permute.xlu0 %2919
  %2922 = vset.pattern.permute.xlu0 5
  %2923 = vperm.xlu0 %2922, %v67
  %v2924 = vpop.permute.xlu0 %2923
  %2926 = vset.pattern.permute.xlu0 5
  %2927 = vperm.xlu0 %2926, %v68
  %v2928 = vpop.permute.xlu0 %2927
  %2930 = vset.pattern.permute.xlu0 5
  %2931 = vperm.xlu0 %2930, %v69
  %v2932 = vpop.permute.xlu0 %2931
  %2934 = vset.pattern.permute.xlu0 5
  %2935 = vperm.xlu0 %2934, %v70
  %v2936 = vpop.permute.xlu0 %2935
  %2938 = vset.pattern.permute.xlu0 5
  %2939 = vperm.xlu0 %2938, %v71
  %v2940 = vpop.permute.xlu0 %2939
  %2942 = vset.pattern.permute.xlu0 5
  %2943 = vperm.xlu0 %2942, %v72
  %v2944 = vpop.permute.xlu0 %2943
  %2946 = vset.pattern.permute.xlu0 5
  %2947 = vperm.xlu0 %2946, %v73
  %v2948 = vpop.permute.xlu0 %2947
  %2950 = vset.pattern.permute.xlu0 5
  %2951 = vperm.xlu0 %2950, %v74
  %v2952 = vpop.permute.xlu0 %2951
  %2954 = vset.pattern.permute.xlu0 5
  %2955 = vperm.xlu0 %2954, %v75
  %v2956 = vpop.permute.xlu0 %2955
  %2958 = vset.pattern.permute.xlu0 5
  %2959 = vperm.xlu0 %2958, %v76
  %v2960 = vpop.permute.xlu0 %2959
  %2962 = vset.pattern.permute.xlu0 5
  %2963 = vperm.xlu0 %2962, %v77
  %v2964 = vpop.permute.xlu0 %2963
  %2966 = vset.pattern.permute.xlu0 5
  %2967 = vperm.xlu0 %2966, %v78
  %v2968 = vpop.permute.xlu0 %2967
  %2970 = vset.pattern.permute.xlu0 5
  %2971 = vperm.xlu0 %2970, %v79
  %v2972 = vpop.permute.xlu0 %2971
  %2974 = vset.pattern.permute.xlu0 5
  %2975 = vperm.xlu0 %2974, %v80
  %v2976 = vpop.permute.xlu0 %2975
  %2978 = vset.pattern.permute.xlu0 5
  %2979 = vperm.xlu0 %2978, %v81
  %v2980 = vpop.permute.xlu0 %2979
  %2982 = vset.pattern.permute.xlu0 5
  %2983 = vperm.xlu0 %2982, %v82
  %v2984 = vpop.permute.xlu0 %2983
  %2986 = vset.pattern.permute.xlu0 5
  %2987 = vperm.xlu0 %2986, %v83
  %v2988 = vpop.permute.xlu0 %2987
  %2990 = vset.pattern.permute.xlu0 5
  %2991 = vperm.xlu0 %2990, %v84
  %v2992 = vpop.permute.xlu0 %2991
  %2994 = vset.pattern.permute.xlu0 5
  %2995 = vperm.xlu0 %2994, %v85
  %v2996 = vpop.permute.xlu0 %2995
  %2998 = vset.pattern.permute.xlu0 5
  %2999 = vperm.xlu0 %2998, %v86
  %v3000 = vpop.permute.xlu0 %2999
  %3002 = vset.pattern.permute.xlu0 5
  %3003 = vperm.xlu0 %3002, %v87
  %v3004 = vpop.permute.xlu0 %3003
  %3006 = vset.pattern.permute.xlu0 5
  %3007 = vperm.xlu0 %3006, %v88
  %v3008 = vpop.permute.xlu0 %3007
  %3010 = vset.pattern.permute.xlu0 5
  %3011 = vperm.xlu0 %3010, %v89
  %v3012 = vpop.permute.xlu0 %3011
  %3014 = vset.pattern.permute.xlu0 5
  %3015 = vperm.xlu0 %3014, %v90
  %v3016 = vpop.permute.xlu0 %3015
  %3018 = vset.pattern.permute.xlu0 5
  %3019 = vperm.xlu0 %3018, %v91
  %v3020 = vpop.permute.xlu0 %3019
  %3022 = vset.pattern.permute.xlu0 5
  %3023 = vperm.xlu0 %3022, %v92
  %v3024 = vpop.permute.xlu0 %3023
  %3026 = vset.pattern.permute.xlu0 5
  %3027 = vperm.xlu0 %3026, %v93
  %v3028 = vpop.permute.xlu0 %3027
  %3030 = vset.pattern.permute.xlu0 5
  %3031 = vperm.xlu0 %3030, %v94
  %v3032 = vpop.permute.xlu0 %3031
  %3034 = vset.pattern.permute.xlu0 5
  %3035 = vperm.xlu0 %3034, %v95
  %v3036 = vpop.permute.xlu0 %3035
  %3038 = vset.pattern.permute.xlu0 5
  %3039 = vperm.xlu0 %3038, %v96
  %v3040 = vpop.permute.xlu0 %3039
  %3042 = vset.pattern.permute.xlu0 5
  %3043 = vperm.xlu0 %3042, %v97
  %v3044 = vpop.permute.xlu0 %3043
  %3046 = vset.pattern.permute.xlu0 5
  %3047 = vperm.xlu0 %3046, %v98
  %v3048 = vpop.permute.xlu0 %3047
  %v3050 = vmul.f32 %v982, %v2876
  %v3051 = vmul.f32 %v983, %v2880
  %v3052 = vmul.f32 %v984, %v2884
  %v3053 = vmul.f32 %v985, %v2888
  %v3054 = vmul.f32 %v986, %v2892
  %v3055 = vmul.f32 %v987, %v2896
  %v3056 = vmul.f32 %v988, %v2900
  %v3057 = vmul.f32 %v989, %v2904
  %v3058 = vmul.f32 %v990, %v2908
  %v3059 = vmul.f32 %v991, %v2912
  %v3060 = vmul.f32 %v992, %v2916
  %v3061 = vmul.f32 %v993, %v2920
  %v3062 = vmul.f32 %v994, %v2924
  %v3063 = vmul.f32 %v995, %v2928
  %v3064 = vmul.f32 %v996, %v2932
  %v3065 = vmul.f32 %v997, %v2936
  %v3066 = vmul.f32 %v998, %v2940
  %v3067 = vmul.f32 %v999, %v2944
  %v3068 = vmul.f32 %v1000, %v2948
  %v3069 = vmul.f32 %v1001, %v2952
  %v3070 = vmul.f32 %v1002, %v2956
  %v3071 = vmul.f32 %v1003, %v2960
  %v3072 = vmul.f32 %v1004, %v2964
  %v3073 = vmul.f32 %v1005, %v2968
  %v3074 = vmul.f32 %v1006, %v2972
  %v3075 = vmul.f32 %v1007, %v2976
  %v3076 = vmul.f32 %v1008, %v2980
  %v3077 = vmul.f32 %v1009, %v2984
  %v3078 = vmul.f32 %v1010, %v2988
  %v3079 = vmul.f32 %v1011, %v2992
  %v3080 = vmul.f32 %v1012, %v2996
  %v3081 = vmul.f32 %v1013, %v3000
  %v3082 = vmul.f32 %v1014, %v3004
  %v3083 = vmul.f32 %v1015, %v3008
  %v3084 = vmul.f32 %v1016, %v3012
  %v3085 = vmul.f32 %v1017, %v3016
  %v3086 = vmul.f32 %v1018, %v3020
  %v3087 = vmul.f32 %v1019, %v3024
  %v3088 = vmul.f32 %v1020, %v3028
  %v3089 = vmul.f32 %v1021, %v3032
  %v3090 = vmul.f32 %v1022, %v3036
  %v3091 = vmul.f32 %v1023, %v3040
  %v3092 = vmul.f32 %v1024, %v3044
  %v3093 = vmul.f32 %v1025, %v3048
  %3138 = vrot.lane.b32.xlu0 %v3050, 119
  %v3139 = vpop.permute.xlu0 %3138
  %3140 = vrot.lane.b32.xlu0 %v3051, 119
  %v3141 = vpop.permute.xlu0 %3140
  %3142 = vrot.lane.b32.xlu0 %v3052, 119
  %v3143 = vpop.permute.xlu0 %3142
  %3144 = vrot.lane.b32.xlu0 %v3053, 119
  %v3145 = vpop.permute.xlu0 %3144
  %3146 = vrot.lane.b32.xlu0 %v3054, 119
  %v3147 = vpop.permute.xlu0 %3146
  %3148 = vrot.lane.b32.xlu0 %v3055, 119
  %v3149 = vpop.permute.xlu0 %3148
  %3150 = vrot.lane.b32.xlu0 %v3056, 119
  %v3151 = vpop.permute.xlu0 %3150
  %3152 = vrot.lane.b32.xlu0 %v3057, 119
  %v3153 = vpop.permute.xlu0 %3152
  %3154 = vrot.lane.b32.xlu0 %v3058, 119
  %v3155 = vpop.permute.xlu0 %3154
  %3156 = vrot.lane.b32.xlu0 %v3059, 119
  %v3157 = vpop.permute.xlu0 %3156
  %3158 = vrot.lane.b32.xlu0 %v3060, 119
  %v3159 = vpop.permute.xlu0 %3158
  %3160 = vrot.lane.b32.xlu0 %v3061, 119
  %v3161 = vpop.permute.xlu0 %3160
  %3162 = vrot.lane.b32.xlu0 %v3062, 119
  %v3163 = vpop.permute.xlu0 %3162
  %3164 = vrot.lane.b32.xlu0 %v3063, 119
  %v3165 = vpop.permute.xlu0 %3164
  %3166 = vrot.lane.b32.xlu0 %v3064, 119
  %v3167 = vpop.permute.xlu0 %3166
  %3168 = vrot.lane.b32.xlu0 %v3065, 119
  %v3169 = vpop.permute.xlu0 %3168
  %3170 = vrot.lane.b32.xlu0 %v3066, 119
  %v3171 = vpop.permute.xlu0 %3170
  %3172 = vrot.lane.b32.xlu0 %v3067, 119
  %v3173 = vpop.permute.xlu0 %3172
  %3174 = vrot.lane.b32.xlu0 %v3068, 119
  %v3175 = vpop.permute.xlu0 %3174
  %3176 = vrot.lane.b32.xlu0 %v3069, 119
  %v3177 = vpop.permute.xlu0 %3176
  %3178 = vrot.lane.b32.xlu0 %v3070, 119
  %v3179 = vpop.permute.xlu0 %3178
  %3180 = vrot.lane.b32.xlu0 %v3071, 119
  %v3181 = vpop.permute.xlu0 %3180
  %3182 = vrot.lane.b32.xlu0 %v3072, 119
  %v3183 = vpop.permute.xlu0 %3182
  %3184 = vrot.lane.b32.xlu0 %v3073, 119
  %v3185 = vpop.permute.xlu0 %3184
  %3186 = vrot.lane.b32.xlu0 %v3074, 119
  %v3187 = vpop.permute.xlu0 %3186
  %3188 = vrot.lane.b32.xlu0 %v3075, 119
  %v3189 = vpop.permute.xlu0 %3188
  %3190 = vrot.lane.b32.xlu0 %v3076, 119
  %v3191 = vpop.permute.xlu0 %3190
  %3192 = vrot.lane.b32.xlu0 %v3077, 119
  %v3193 = vpop.permute.xlu0 %3192
  %3194 = vrot.lane.b32.xlu0 %v3078, 119
  %v3195 = vpop.permute.xlu0 %3194
  %3196 = vrot.lane.b32.xlu0 %v3079, 119
  %v3197 = vpop.permute.xlu0 %3196
  %3198 = vrot.lane.b32.xlu0 %v3080, 119
  %v3199 = vpop.permute.xlu0 %3198
  %3200 = vrot.lane.b32.xlu0 %v3081, 119
  %v3201 = vpop.permute.xlu0 %3200
  %3202 = vrot.lane.b32.xlu0 %v3082, 119
  %v3203 = vpop.permute.xlu0 %3202
  %3204 = vrot.lane.b32.xlu0 %v3083, 119
  %v3205 = vpop.permute.xlu0 %3204
  %3206 = vrot.lane.b32.xlu0 %v3084, 119
  %v3207 = vpop.permute.xlu0 %3206
  %3208 = vrot.lane.b32.xlu0 %v3085, 119
  %v3209 = vpop.permute.xlu0 %3208
  %3210 = vrot.lane.b32.xlu0 %v3086, 119
  %v3211 = vpop.permute.xlu0 %3210
  %3212 = vrot.lane.b32.xlu0 %v3087, 119
  %v3213 = vpop.permute.xlu0 %3212
  %3214 = vrot.lane.b32.xlu0 %v3088, 119
  %v3215 = vpop.permute.xlu0 %3214
  %3216 = vrot.lane.b32.xlu0 %v3089, 119
  %v3217 = vpop.permute.xlu0 %3216
  %3218 = vrot.lane.b32.xlu0 %v3090, 119
  %v3219 = vpop.permute.xlu0 %3218
  %3220 = vrot.lane.b32.xlu0 %v3091, 119
  %v3221 = vpop.permute.xlu0 %3220
  %3222 = vrot.lane.b32.xlu0 %v3092, 119
  %v3223 = vpop.permute.xlu0 %3222
  %3224 = vrot.lane.b32.xlu0 %v3093, 119
  %v3225 = vpop.permute.xlu0 %3224
  %v3270 = vadd.f32 %v2830, %v3139
  %v3271 = vadd.f32 %v2831, %v3141
  %v3272 = vadd.f32 %v2832, %v3143
  %v3273 = vadd.f32 %v2833, %v3145
  %v3274 = vadd.f32 %v2834, %v3147
  %v3275 = vadd.f32 %v2835, %v3149
  %v3276 = vadd.f32 %v2836, %v3151
  %v3277 = vadd.f32 %v2837, %v3153
  %v3278 = vadd.f32 %v2838, %v3155
  %v3279 = vadd.f32 %v2839, %v3157
  %v3280 = vadd.f32 %v2840, %v3159
  %v3281 = vadd.f32 %v2841, %v3161
  %v3282 = vadd.f32 %v2842, %v3163
  %v3283 = vadd.f32 %v2843, %v3165
  %v3284 = vadd.f32 %v2844, %v3167
  %v3285 = vadd.f32 %v2845, %v3169
  %v3286 = vadd.f32 %v2846, %v3171
  %v3287 = vadd.f32 %v2847, %v3173
  %v3288 = vadd.f32 %v2848, %v3175
  %v3289 = vadd.f32 %v2849, %v3177
  %v3290 = vadd.f32 %v2850, %v3179
  %v3291 = vadd.f32 %v2851, %v3181
  %v3292 = vadd.f32 %v2852, %v3183
  %v3293 = vadd.f32 %v2853, %v3185
  %v3294 = vadd.f32 %v2854, %v3187
  %v3295 = vadd.f32 %v2855, %v3189
  %v3296 = vadd.f32 %v2856, %v3191
  %v3297 = vadd.f32 %v2857, %v3193
  %v3298 = vadd.f32 %v2858, %v3195
  %v3299 = vadd.f32 %v2859, %v3197
  %v3300 = vadd.f32 %v2860, %v3199
  %v3301 = vadd.f32 %v2861, %v3201
  %v3302 = vadd.f32 %v2862, %v3203
  %v3303 = vadd.f32 %v2863, %v3205
  %v3304 = vadd.f32 %v2864, %v3207
  %v3305 = vadd.f32 %v2865, %v3209
  %v3306 = vadd.f32 %v2866, %v3211
  %v3307 = vadd.f32 %v2867, %v3213
  %v3308 = vadd.f32 %v2868, %v3215
  %v3309 = vadd.f32 %v2869, %v3217
  %v3310 = vadd.f32 %v2870, %v3219
  %v3311 = vadd.f32 %v2871, %v3221
  %v3312 = vadd.f32 %v2872, %v3223
  %v3313 = vadd.f32 %v2873, %v3225
  %3314 = vset.pattern.permute.xlu0 6
  %3315 = vperm.xlu0 %3314, %v55
  %v3316 = vpop.permute.xlu0 %3315
  %3318 = vset.pattern.permute.xlu0 6
  %3319 = vperm.xlu0 %3318, %v56
  %v3320 = vpop.permute.xlu0 %3319
  %3322 = vset.pattern.permute.xlu0 6
  %3323 = vperm.xlu0 %3322, %v57
  %v3324 = vpop.permute.xlu0 %3323
  %3326 = vset.pattern.permute.xlu0 6
  %3327 = vperm.xlu0 %3326, %v58
  %v3328 = vpop.permute.xlu0 %3327
  %3330 = vset.pattern.permute.xlu0 6
  %3331 = vperm.xlu0 %3330, %v59
  %v3332 = vpop.permute.xlu0 %3331
  %3334 = vset.pattern.permute.xlu0 6
  %3335 = vperm.xlu0 %3334, %v60
  %v3336 = vpop.permute.xlu0 %3335
  %3338 = vset.pattern.permute.xlu0 6
  %3339 = vperm.xlu0 %3338, %v61
  %v3340 = vpop.permute.xlu0 %3339
  %3342 = vset.pattern.permute.xlu0 6
  %3343 = vperm.xlu0 %3342, %v62
  %v3344 = vpop.permute.xlu0 %3343
  %3346 = vset.pattern.permute.xlu0 6
  %3347 = vperm.xlu0 %3346, %v63
  %v3348 = vpop.permute.xlu0 %3347
  %3350 = vset.pattern.permute.xlu0 6
  %3351 = vperm.xlu0 %3350, %v64
  %v3352 = vpop.permute.xlu0 %3351
  %3354 = vset.pattern.permute.xlu0 6
  %3355 = vperm.xlu0 %3354, %v65
  %v3356 = vpop.permute.xlu0 %3355
  %3358 = vset.pattern.permute.xlu0 6
  %3359 = vperm.xlu0 %3358, %v66
  %v3360 = vpop.permute.xlu0 %3359
  %3362 = vset.pattern.permute.xlu0 6
  %3363 = vperm.xlu0 %3362, %v67
  %v3364 = vpop.permute.xlu0 %3363
  %3366 = vset.pattern.permute.xlu0 6
  %3367 = vperm.xlu0 %3366, %v68
  %v3368 = vpop.permute.xlu0 %3367
  %3370 = vset.pattern.permute.xlu0 6
  %3371 = vperm.xlu0 %3370, %v69
  %v3372 = vpop.permute.xlu0 %3371
  %3374 = vset.pattern.permute.xlu0 6
  %3375 = vperm.xlu0 %3374, %v70
  %v3376 = vpop.permute.xlu0 %3375
  %3378 = vset.pattern.permute.xlu0 6
  %3379 = vperm.xlu0 %3378, %v71
  %v3380 = vpop.permute.xlu0 %3379
  %3382 = vset.pattern.permute.xlu0 6
  %3383 = vperm.xlu0 %3382, %v72
  %v3384 = vpop.permute.xlu0 %3383
  %3386 = vset.pattern.permute.xlu0 6
  %3387 = vperm.xlu0 %3386, %v73
  %v3388 = vpop.permute.xlu0 %3387
  %3390 = vset.pattern.permute.xlu0 6
  %3391 = vperm.xlu0 %3390, %v74
  %v3392 = vpop.permute.xlu0 %3391
  %3394 = vset.pattern.permute.xlu0 6
  %3395 = vperm.xlu0 %3394, %v75
  %v3396 = vpop.permute.xlu0 %3395
  %3398 = vset.pattern.permute.xlu0 6
  %3399 = vperm.xlu0 %3398, %v76
  %v3400 = vpop.permute.xlu0 %3399
  %3402 = vset.pattern.permute.xlu0 6
  %3403 = vperm.xlu0 %3402, %v77
  %v3404 = vpop.permute.xlu0 %3403
  %3406 = vset.pattern.permute.xlu0 6
  %3407 = vperm.xlu0 %3406, %v78
  %v3408 = vpop.permute.xlu0 %3407
  %3410 = vset.pattern.permute.xlu0 6
  %3411 = vperm.xlu0 %3410, %v79
  %v3412 = vpop.permute.xlu0 %3411
  %3414 = vset.pattern.permute.xlu0 6
  %3415 = vperm.xlu0 %3414, %v80
  %v3416 = vpop.permute.xlu0 %3415
  %3418 = vset.pattern.permute.xlu0 6
  %3419 = vperm.xlu0 %3418, %v81
  %v3420 = vpop.permute.xlu0 %3419
  %3422 = vset.pattern.permute.xlu0 6
  %3423 = vperm.xlu0 %3422, %v82
  %v3424 = vpop.permute.xlu0 %3423
  %3426 = vset.pattern.permute.xlu0 6
  %3427 = vperm.xlu0 %3426, %v83
  %v3428 = vpop.permute.xlu0 %3427
  %3430 = vset.pattern.permute.xlu0 6
  %3431 = vperm.xlu0 %3430, %v84
  %v3432 = vpop.permute.xlu0 %3431
  %3434 = vset.pattern.permute.xlu0 6
  %3435 = vperm.xlu0 %3434, %v85
  %v3436 = vpop.permute.xlu0 %3435
  %3438 = vset.pattern.permute.xlu0 6
  %3439 = vperm.xlu0 %3438, %v86
  %v3440 = vpop.permute.xlu0 %3439
  %3442 = vset.pattern.permute.xlu0 6
  %3443 = vperm.xlu0 %3442, %v87
  %v3444 = vpop.permute.xlu0 %3443
  %3446 = vset.pattern.permute.xlu0 6
  %3447 = vperm.xlu0 %3446, %v88
  %v3448 = vpop.permute.xlu0 %3447
  %3450 = vset.pattern.permute.xlu0 6
  %3451 = vperm.xlu0 %3450, %v89
  %v3452 = vpop.permute.xlu0 %3451
  %3454 = vset.pattern.permute.xlu0 6
  %3455 = vperm.xlu0 %3454, %v90
  %v3456 = vpop.permute.xlu0 %3455
  %3458 = vset.pattern.permute.xlu0 6
  %3459 = vperm.xlu0 %3458, %v91
  %v3460 = vpop.permute.xlu0 %3459
  %3462 = vset.pattern.permute.xlu0 6
  %3463 = vperm.xlu0 %3462, %v92
  %v3464 = vpop.permute.xlu0 %3463
  %3466 = vset.pattern.permute.xlu0 6
  %3467 = vperm.xlu0 %3466, %v93
  %v3468 = vpop.permute.xlu0 %3467
  %3470 = vset.pattern.permute.xlu0 6
  %3471 = vperm.xlu0 %3470, %v94
  %v3472 = vpop.permute.xlu0 %3471
  %3474 = vset.pattern.permute.xlu0 6
  %3475 = vperm.xlu0 %3474, %v95
  %v3476 = vpop.permute.xlu0 %3475
  %3478 = vset.pattern.permute.xlu0 6
  %3479 = vperm.xlu0 %3478, %v96
  %v3480 = vpop.permute.xlu0 %3479
  %3482 = vset.pattern.permute.xlu0 6
  %3483 = vperm.xlu0 %3482, %v97
  %v3484 = vpop.permute.xlu0 %3483
  %3486 = vset.pattern.permute.xlu0 6
  %3487 = vperm.xlu0 %3486, %v98
  %v3488 = vpop.permute.xlu0 %3487
  %v3490 = vmul.f32 %v674, %v3316
  %v3491 = vmul.f32 %v675, %v3320
  %v3492 = vmul.f32 %v676, %v3324
  %v3493 = vmul.f32 %v677, %v3328
  %v3494 = vmul.f32 %v678, %v3332
  %v3495 = vmul.f32 %v679, %v3336
  %v3496 = vmul.f32 %v680, %v3340
  %v3497 = vmul.f32 %v681, %v3344
  %v3498 = vmul.f32 %v682, %v3348
  %v3499 = vmul.f32 %v683, %v3352
  %v3500 = vmul.f32 %v684, %v3356
  %v3501 = vmul.f32 %v685, %v3360
  %v3502 = vmul.f32 %v686, %v3364
  %v3503 = vmul.f32 %v687, %v3368
  %v3504 = vmul.f32 %v688, %v3372
  %v3505 = vmul.f32 %v689, %v3376
  %v3506 = vmul.f32 %v690, %v3380
  %v3507 = vmul.f32 %v691, %v3384
  %v3508 = vmul.f32 %v692, %v3388
  %v3509 = vmul.f32 %v693, %v3392
  %v3510 = vmul.f32 %v694, %v3396
  %v3511 = vmul.f32 %v695, %v3400
  %v3512 = vmul.f32 %v696, %v3404
  %v3513 = vmul.f32 %v697, %v3408
  %v3514 = vmul.f32 %v698, %v3412
  %v3515 = vmul.f32 %v699, %v3416
  %v3516 = vmul.f32 %v700, %v3420
  %v3517 = vmul.f32 %v701, %v3424
  %v3518 = vmul.f32 %v702, %v3428
  %v3519 = vmul.f32 %v703, %v3432
  %v3520 = vmul.f32 %v704, %v3436
  %v3521 = vmul.f32 %v705, %v3440
  %v3522 = vmul.f32 %v706, %v3444
  %v3523 = vmul.f32 %v707, %v3448
  %v3524 = vmul.f32 %v708, %v3452
  %v3525 = vmul.f32 %v709, %v3456
  %v3526 = vmul.f32 %v710, %v3460
  %v3527 = vmul.f32 %v711, %v3464
  %v3528 = vmul.f32 %v712, %v3468
  %v3529 = vmul.f32 %v713, %v3472
  %v3530 = vmul.f32 %v714, %v3476
  %v3531 = vmul.f32 %v715, %v3480
  %v3532 = vmul.f32 %v716, %v3484
  %v3533 = vmul.f32 %v717, %v3488
  %3578 = vrot.lane.b32.xlu0 %v3490, 114
  %v3579 = vpop.permute.xlu0 %3578
  %3580 = vrot.lane.b32.xlu0 %v3491, 114
  %v3581 = vpop.permute.xlu0 %3580
  %3582 = vrot.lane.b32.xlu0 %v3492, 114
  %v3583 = vpop.permute.xlu0 %3582
  %3584 = vrot.lane.b32.xlu0 %v3493, 114
  %v3585 = vpop.permute.xlu0 %3584
  %3586 = vrot.lane.b32.xlu0 %v3494, 114
  %v3587 = vpop.permute.xlu0 %3586
  %3588 = vrot.lane.b32.xlu0 %v3495, 114
  %v3589 = vpop.permute.xlu0 %3588
  %3590 = vrot.lane.b32.xlu0 %v3496, 114
  %v3591 = vpop.permute.xlu0 %3590
  %3592 = vrot.lane.b32.xlu0 %v3497, 114
  %v3593 = vpop.permute.xlu0 %3592
  %3594 = vrot.lane.b32.xlu0 %v3498, 114
  %v3595 = vpop.permute.xlu0 %3594
  %3596 = vrot.lane.b32.xlu0 %v3499, 114
  %v3597 = vpop.permute.xlu0 %3596
  %3598 = vrot.lane.b32.xlu0 %v3500, 114
  %v3599 = vpop.permute.xlu0 %3598
  %3600 = vrot.lane.b32.xlu0 %v3501, 114
  %v3601 = vpop.permute.xlu0 %3600
  %3602 = vrot.lane.b32.xlu0 %v3502, 114
  %v3603 = vpop.permute.xlu0 %3602
  %3604 = vrot.lane.b32.xlu0 %v3503, 114
  %v3605 = vpop.permute.xlu0 %3604
  %3606 = vrot.lane.b32.xlu0 %v3504, 114
  %v3607 = vpop.permute.xlu0 %3606
  %3608 = vrot.lane.b32.xlu0 %v3505, 114
  %v3609 = vpop.permute.xlu0 %3608
  %3610 = vrot.lane.b32.xlu0 %v3506, 114
  %v3611 = vpop.permute.xlu0 %3610
  %3612 = vrot.lane.b32.xlu0 %v3507, 114
  %v3613 = vpop.permute.xlu0 %3612
  %3614 = vrot.lane.b32.xlu0 %v3508, 114
  %v3615 = vpop.permute.xlu0 %3614
  %3616 = vrot.lane.b32.xlu0 %v3509, 114
  %v3617 = vpop.permute.xlu0 %3616
  %3618 = vrot.lane.b32.xlu0 %v3510, 114
  %v3619 = vpop.permute.xlu0 %3618
  %3620 = vrot.lane.b32.xlu0 %v3511, 114
  %v3621 = vpop.permute.xlu0 %3620
  %3622 = vrot.lane.b32.xlu0 %v3512, 114
  %v3623 = vpop.permute.xlu0 %3622
  %3624 = vrot.lane.b32.xlu0 %v3513, 114
  %v3625 = vpop.permute.xlu0 %3624
  %3626 = vrot.lane.b32.xlu0 %v3514, 114
  %v3627 = vpop.permute.xlu0 %3626
  %3628 = vrot.lane.b32.xlu0 %v3515, 114
  %v3629 = vpop.permute.xlu0 %3628
  %3630 = vrot.lane.b32.xlu0 %v3516, 114
  %v3631 = vpop.permute.xlu0 %3630
  %3632 = vrot.lane.b32.xlu0 %v3517, 114
  %v3633 = vpop.permute.xlu0 %3632
  %3634 = vrot.lane.b32.xlu0 %v3518, 114
  %v3635 = vpop.permute.xlu0 %3634
  %3636 = vrot.lane.b32.xlu0 %v3519, 114
  %v3637 = vpop.permute.xlu0 %3636
  %3638 = vrot.lane.b32.xlu0 %v3520, 114
  %v3639 = vpop.permute.xlu0 %3638
  %3640 = vrot.lane.b32.xlu0 %v3521, 114
  %v3641 = vpop.permute.xlu0 %3640
  %3642 = vrot.lane.b32.xlu0 %v3522, 114
  %v3643 = vpop.permute.xlu0 %3642
  %3644 = vrot.lane.b32.xlu0 %v3523, 114
  %v3645 = vpop.permute.xlu0 %3644
  %3646 = vrot.lane.b32.xlu0 %v3524, 114
  %v3647 = vpop.permute.xlu0 %3646
  %3648 = vrot.lane.b32.xlu0 %v3525, 114
  %v3649 = vpop.permute.xlu0 %3648
  %3650 = vrot.lane.b32.xlu0 %v3526, 114
  %v3651 = vpop.permute.xlu0 %3650
  %3652 = vrot.lane.b32.xlu0 %v3527, 114
  %v3653 = vpop.permute.xlu0 %3652
  %3654 = vrot.lane.b32.xlu0 %v3528, 114
  %v3655 = vpop.permute.xlu0 %3654
  %3656 = vrot.lane.b32.xlu0 %v3529, 114
  %v3657 = vpop.permute.xlu0 %3656
  %3658 = vrot.lane.b32.xlu0 %v3530, 114
  %v3659 = vpop.permute.xlu0 %3658
  %3660 = vrot.lane.b32.xlu0 %v3531, 114
  %v3661 = vpop.permute.xlu0 %3660
  %3662 = vrot.lane.b32.xlu0 %v3532, 114
  %v3663 = vpop.permute.xlu0 %3662
  %3664 = vrot.lane.b32.xlu0 %v3533, 114
  %v3665 = vpop.permute.xlu0 %3664
  %v3710 = vadd.f32 %v3270, %v3579
  %v3711 = vadd.f32 %v3271, %v3581
  %v3712 = vadd.f32 %v3272, %v3583
  %v3713 = vadd.f32 %v3273, %v3585
  %v3714 = vadd.f32 %v3274, %v3587
  %v3715 = vadd.f32 %v3275, %v3589
  %v3716 = vadd.f32 %v3276, %v3591
  %v3717 = vadd.f32 %v3277, %v3593
  %v3718 = vadd.f32 %v3278, %v3595
  %v3719 = vadd.f32 %v3279, %v3597
  %v3720 = vadd.f32 %v3280, %v3599
  %v3721 = vadd.f32 %v3281, %v3601
  %v3722 = vadd.f32 %v3282, %v3603
  %v3723 = vadd.f32 %v3283, %v3605
  %v3724 = vadd.f32 %v3284, %v3607
  %v3725 = vadd.f32 %v3285, %v3609
  %v3726 = vadd.f32 %v3286, %v3611
  %v3727 = vadd.f32 %v3287, %v3613
  %v3728 = vadd.f32 %v3288, %v3615
  %v3729 = vadd.f32 %v3289, %v3617
  %v3730 = vadd.f32 %v3290, %v3619
  %v3731 = vadd.f32 %v3291, %v3621
  %v3732 = vadd.f32 %v3292, %v3623
  %v3733 = vadd.f32 %v3293, %v3625
  %v3734 = vadd.f32 %v3294, %v3627
  %v3735 = vadd.f32 %v3295, %v3629
  %v3736 = vadd.f32 %v3296, %v3631
  %v3737 = vadd.f32 %v3297, %v3633
  %v3738 = vadd.f32 %v3298, %v3635
  %v3739 = vadd.f32 %v3299, %v3637
  %v3740 = vadd.f32 %v3300, %v3639
  %v3741 = vadd.f32 %v3301, %v3641
  %v3742 = vadd.f32 %v3302, %v3643
  %v3743 = vadd.f32 %v3303, %v3645
  %v3744 = vadd.f32 %v3304, %v3647
  %v3745 = vadd.f32 %v3305, %v3649
  %v3746 = vadd.f32 %v3306, %v3651
  %v3747 = vadd.f32 %v3307, %v3653
  %v3748 = vadd.f32 %v3308, %v3655
  %v3749 = vadd.f32 %v3309, %v3657
  %v3750 = vadd.f32 %v3310, %v3659
  %v3751 = vadd.f32 %v3311, %v3661
  %v3752 = vadd.f32 %v3312, %v3663
  %v3753 = vadd.f32 %v3313, %v3665
  %3754 = vset.pattern.permute.xlu0 7
  %3755 = vperm.xlu0 %3754, %v55
  %v3756 = vpop.permute.xlu0 %3755
  %3758 = vset.pattern.permute.xlu0 7
  %3759 = vperm.xlu0 %3758, %v56
  %v3760 = vpop.permute.xlu0 %3759
  %3762 = vset.pattern.permute.xlu0 7
  %3763 = vperm.xlu0 %3762, %v57
  %v3764 = vpop.permute.xlu0 %3763
  %3766 = vset.pattern.permute.xlu0 7
  %3767 = vperm.xlu0 %3766, %v58
  %v3768 = vpop.permute.xlu0 %3767
  %3770 = vset.pattern.permute.xlu0 7
  %3771 = vperm.xlu0 %3770, %v59
  %v3772 = vpop.permute.xlu0 %3771
  %3774 = vset.pattern.permute.xlu0 7
  %3775 = vperm.xlu0 %3774, %v60
  %v3776 = vpop.permute.xlu0 %3775
  %3778 = vset.pattern.permute.xlu0 7
  %3779 = vperm.xlu0 %3778, %v61
  %v3780 = vpop.permute.xlu0 %3779
  %3782 = vset.pattern.permute.xlu0 7
  %3783 = vperm.xlu0 %3782, %v62
  %v3784 = vpop.permute.xlu0 %3783
  %3786 = vset.pattern.permute.xlu0 7
  %3787 = vperm.xlu0 %3786, %v63
  %v3788 = vpop.permute.xlu0 %3787
  %3790 = vset.pattern.permute.xlu0 7
  %3791 = vperm.xlu0 %3790, %v64
  %v3792 = vpop.permute.xlu0 %3791
  %3794 = vset.pattern.permute.xlu0 7
  %3795 = vperm.xlu0 %3794, %v65
  %v3796 = vpop.permute.xlu0 %3795
  %3798 = vset.pattern.permute.xlu0 7
  %3799 = vperm.xlu0 %3798, %v66
  %v3800 = vpop.permute.xlu0 %3799
  %3802 = vset.pattern.permute.xlu0 7
  %3803 = vperm.xlu0 %3802, %v67
  %v3804 = vpop.permute.xlu0 %3803
  %3806 = vset.pattern.permute.xlu0 7
  %3807 = vperm.xlu0 %3806, %v68
  %v3808 = vpop.permute.xlu0 %3807
  %3810 = vset.pattern.permute.xlu0 7
  %3811 = vperm.xlu0 %3810, %v69
  %v3812 = vpop.permute.xlu0 %3811
  %3814 = vset.pattern.permute.xlu0 7
  %3815 = vperm.xlu0 %3814, %v70
  %v3816 = vpop.permute.xlu0 %3815
  %3818 = vset.pattern.permute.xlu0 7
  %3819 = vperm.xlu0 %3818, %v71
  %v3820 = vpop.permute.xlu0 %3819
  %3822 = vset.pattern.permute.xlu0 7
  %3823 = vperm.xlu0 %3822, %v72
  %v3824 = vpop.permute.xlu0 %3823
  %3826 = vset.pattern.permute.xlu0 7
  %3827 = vperm.xlu0 %3826, %v73
  %v3828 = vpop.permute.xlu0 %3827
  %3830 = vset.pattern.permute.xlu0 7
  %3831 = vperm.xlu0 %3830, %v74
  %v3832 = vpop.permute.xlu0 %3831
  %3834 = vset.pattern.permute.xlu0 7
  %3835 = vperm.xlu0 %3834, %v75
  %v3836 = vpop.permute.xlu0 %3835
  %3838 = vset.pattern.permute.xlu0 7
  %3839 = vperm.xlu0 %3838, %v76
  %v3840 = vpop.permute.xlu0 %3839
  %3842 = vset.pattern.permute.xlu0 7
  %3843 = vperm.xlu0 %3842, %v77
  %v3844 = vpop.permute.xlu0 %3843
  %3846 = vset.pattern.permute.xlu0 7
  %3847 = vperm.xlu0 %3846, %v78
  %v3848 = vpop.permute.xlu0 %3847
  %3850 = vset.pattern.permute.xlu0 7
  %3851 = vperm.xlu0 %3850, %v79
  %v3852 = vpop.permute.xlu0 %3851
  %3854 = vset.pattern.permute.xlu0 7
  %3855 = vperm.xlu0 %3854, %v80
  %v3856 = vpop.permute.xlu0 %3855
  %3858 = vset.pattern.permute.xlu0 7
  %3859 = vperm.xlu0 %3858, %v81
  %v3860 = vpop.permute.xlu0 %3859
  %3862 = vset.pattern.permute.xlu0 7
  %3863 = vperm.xlu0 %3862, %v82
  %v3864 = vpop.permute.xlu0 %3863
  %3866 = vset.pattern.permute.xlu0 7
  %3867 = vperm.xlu0 %3866, %v83
  %v3868 = vpop.permute.xlu0 %3867
  %3870 = vset.pattern.permute.xlu0 7
  %3871 = vperm.xlu0 %3870, %v84
  %v3872 = vpop.permute.xlu0 %3871
  %3874 = vset.pattern.permute.xlu0 7
  %3875 = vperm.xlu0 %3874, %v85
  %v3876 = vpop.permute.xlu0 %3875
  %3878 = vset.pattern.permute.xlu0 7
  %3879 = vperm.xlu0 %3878, %v86
  %v3880 = vpop.permute.xlu0 %3879
  %3882 = vset.pattern.permute.xlu0 7
  %3883 = vperm.xlu0 %3882, %v87
  %v3884 = vpop.permute.xlu0 %3883
  %3886 = vset.pattern.permute.xlu0 7
  %3887 = vperm.xlu0 %3886, %v88
  %v3888 = vpop.permute.xlu0 %3887
  %3890 = vset.pattern.permute.xlu0 7
  %3891 = vperm.xlu0 %3890, %v89
  %v3892 = vpop.permute.xlu0 %3891
  %3894 = vset.pattern.permute.xlu0 7
  %3895 = vperm.xlu0 %3894, %v90
  %v3896 = vpop.permute.xlu0 %3895
  %3898 = vset.pattern.permute.xlu0 7
  %3899 = vperm.xlu0 %3898, %v91
  %v3900 = vpop.permute.xlu0 %3899
  %3902 = vset.pattern.permute.xlu0 7
  %3903 = vperm.xlu0 %3902, %v92
  %v3904 = vpop.permute.xlu0 %3903
  %3906 = vset.pattern.permute.xlu0 7
  %3907 = vperm.xlu0 %3906, %v93
  %v3908 = vpop.permute.xlu0 %3907
  %3910 = vset.pattern.permute.xlu0 7
  %3911 = vperm.xlu0 %3910, %v94
  %v3912 = vpop.permute.xlu0 %3911
  %3914 = vset.pattern.permute.xlu0 7
  %3915 = vperm.xlu0 %3914, %v95
  %v3916 = vpop.permute.xlu0 %3915
  %3918 = vset.pattern.permute.xlu0 7
  %3919 = vperm.xlu0 %3918, %v96
  %v3920 = vpop.permute.xlu0 %3919
  %3922 = vset.pattern.permute.xlu0 7
  %3923 = vperm.xlu0 %3922, %v97
  %v3924 = vpop.permute.xlu0 %3923
  %3926 = vset.pattern.permute.xlu0 7
  %3927 = vperm.xlu0 %3926, %v98
  %v3928 = vpop.permute.xlu0 %3927
  %v3930 = vmul.f32 %v366, %v3756
  %v3931 = vmul.f32 %v367, %v3760
  %v3932 = vmul.f32 %v368, %v3764
  %v3933 = vmul.f32 %v369, %v3768
  %v3934 = vmul.f32 %v370, %v3772
  %v3935 = vmul.f32 %v371, %v3776
  %v3936 = vmul.f32 %v372, %v3780
  %v3937 = vmul.f32 %v373, %v3784
  %v3938 = vmul.f32 %v374, %v3788
  %v3939 = vmul.f32 %v375, %v3792
  %v3940 = vmul.f32 %v376, %v3796
  %v3941 = vmul.f32 %v377, %v3800
  %v3942 = vmul.f32 %v378, %v3804
  %v3943 = vmul.f32 %v379, %v3808
  %v3944 = vmul.f32 %v380, %v3812
  %v3945 = vmul.f32 %v381, %v3816
  %v3946 = vmul.f32 %v382, %v3820
  %v3947 = vmul.f32 %v383, %v3824
  %v3948 = vmul.f32 %v384, %v3828
  %v3949 = vmul.f32 %v385, %v3832
  %v3950 = vmul.f32 %v386, %v3836
  %v3951 = vmul.f32 %v387, %v3840
  %v3952 = vmul.f32 %v388, %v3844
  %v3953 = vmul.f32 %v389, %v3848
  %v3954 = vmul.f32 %v390, %v3852
  %v3955 = vmul.f32 %v391, %v3856
  %v3956 = vmul.f32 %v392, %v3860
  %v3957 = vmul.f32 %v393, %v3864
  %v3958 = vmul.f32 %v394, %v3868
  %v3959 = vmul.f32 %v395, %v3872
  %v3960 = vmul.f32 %v396, %v3876
  %v3961 = vmul.f32 %v397, %v3880
  %v3962 = vmul.f32 %v398, %v3884
  %v3963 = vmul.f32 %v399, %v3888
  %v3964 = vmul.f32 %v400, %v3892
  %v3965 = vmul.f32 %v401, %v3896
  %v3966 = vmul.f32 %v402, %v3900
  %v3967 = vmul.f32 %v403, %v3904
  %v3968 = vmul.f32 %v404, %v3908
  %v3969 = vmul.f32 %v405, %v3912
  %v3970 = vmul.f32 %v406, %v3916
  %v3971 = vmul.f32 %v407, %v3920
  %v3972 = vmul.f32 %v408, %v3924
  %v3973 = vmul.f32 %v409, %v3928
  %4018 = vrot.lane.b32.xlu0 %v3930, 113
  %v4019 = vpop.permute.xlu0 %4018
  %4020 = vrot.lane.b32.xlu0 %v3931, 113
  %v4021 = vpop.permute.xlu0 %4020
  %4022 = vrot.lane.b32.xlu0 %v3932, 113
  %v4023 = vpop.permute.xlu0 %4022
  %4024 = vrot.lane.b32.xlu0 %v3933, 113
  %v4025 = vpop.permute.xlu0 %4024
  %4026 = vrot.lane.b32.xlu0 %v3934, 113
  %v4027 = vpop.permute.xlu0 %4026
  %4028 = vrot.lane.b32.xlu0 %v3935, 113
  %v4029 = vpop.permute.xlu0 %4028
  %4030 = vrot.lane.b32.xlu0 %v3936, 113
  %v4031 = vpop.permute.xlu0 %4030
  %4032 = vrot.lane.b32.xlu0 %v3937, 113
  %v4033 = vpop.permute.xlu0 %4032
  %4034 = vrot.lane.b32.xlu0 %v3938, 113
  %v4035 = vpop.permute.xlu0 %4034
  %4036 = vrot.lane.b32.xlu0 %v3939, 113
  %v4037 = vpop.permute.xlu0 %4036
  %4038 = vrot.lane.b32.xlu0 %v3940, 113
  %v4039 = vpop.permute.xlu0 %4038
  %4040 = vrot.lane.b32.xlu0 %v3941, 113
  %v4041 = vpop.permute.xlu0 %4040
  %4042 = vrot.lane.b32.xlu0 %v3942, 113
  %v4043 = vpop.permute.xlu0 %4042
  %4044 = vrot.lane.b32.xlu0 %v3943, 113
  %v4045 = vpop.permute.xlu0 %4044
  %4046 = vrot.lane.b32.xlu0 %v3944, 113
  %v4047 = vpop.permute.xlu0 %4046
  %4048 = vrot.lane.b32.xlu0 %v3945, 113
  %v4049 = vpop.permute.xlu0 %4048
  %4050 = vrot.lane.b32.xlu0 %v3946, 113
  %v4051 = vpop.permute.xlu0 %4050
  %4052 = vrot.lane.b32.xlu0 %v3947, 113
  %v4053 = vpop.permute.xlu0 %4052
  %4054 = vrot.lane.b32.xlu0 %v3948, 113
  %v4055 = vpop.permute.xlu0 %4054
  %4056 = vrot.lane.b32.xlu0 %v3949, 113
  %v4057 = vpop.permute.xlu0 %4056
  %4058 = vrot.lane.b32.xlu0 %v3950, 113
  %v4059 = vpop.permute.xlu0 %4058
  %4060 = vrot.lane.b32.xlu0 %v3951, 113
  %v4061 = vpop.permute.xlu0 %4060
  %4062 = vrot.lane.b32.xlu0 %v3952, 113
  %v4063 = vpop.permute.xlu0 %4062
  %4064 = vrot.lane.b32.xlu0 %v3953, 113
  %v4065 = vpop.permute.xlu0 %4064
  %4066 = vrot.lane.b32.xlu0 %v3954, 113
  %v4067 = vpop.permute.xlu0 %4066
  %4068 = vrot.lane.b32.xlu0 %v3955, 113
  %v4069 = vpop.permute.xlu0 %4068
  %4070 = vrot.lane.b32.xlu0 %v3956, 113
  %v4071 = vpop.permute.xlu0 %4070
  %4072 = vrot.lane.b32.xlu0 %v3957, 113
  %v4073 = vpop.permute.xlu0 %4072
  %4074 = vrot.lane.b32.xlu0 %v3958, 113
  %v4075 = vpop.permute.xlu0 %4074
  %4076 = vrot.lane.b32.xlu0 %v3959, 113
  %v4077 = vpop.permute.xlu0 %4076
  %4078 = vrot.lane.b32.xlu0 %v3960, 113
  %v4079 = vpop.permute.xlu0 %4078
  %4080 = vrot.lane.b32.xlu0 %v3961, 113
  %v4081 = vpop.permute.xlu0 %4080
  %4082 = vrot.lane.b32.xlu0 %v3962, 113
  %v4083 = vpop.permute.xlu0 %4082
  %4084 = vrot.lane.b32.xlu0 %v3963, 113
  %v4085 = vpop.permute.xlu0 %4084
  %4086 = vrot.lane.b32.xlu0 %v3964, 113
  %v4087 = vpop.permute.xlu0 %4086
  %4088 = vrot.lane.b32.xlu0 %v3965, 113
  %v4089 = vpop.permute.xlu0 %4088
  %4090 = vrot.lane.b32.xlu0 %v3966, 113
  %v4091 = vpop.permute.xlu0 %4090
  %4092 = vrot.lane.b32.xlu0 %v3967, 113
  %v4093 = vpop.permute.xlu0 %4092
  %4094 = vrot.lane.b32.xlu0 %v3968, 113
  %v4095 = vpop.permute.xlu0 %4094
  %4096 = vrot.lane.b32.xlu0 %v3969, 113
  %v4097 = vpop.permute.xlu0 %4096
  %4098 = vrot.lane.b32.xlu0 %v3970, 113
  %v4099 = vpop.permute.xlu0 %4098
  %4100 = vrot.lane.b32.xlu0 %v3971, 113
  %v4101 = vpop.permute.xlu0 %4100
  %4102 = vrot.lane.b32.xlu0 %v3972, 113
  %v4103 = vpop.permute.xlu0 %4102
  %4104 = vrot.lane.b32.xlu0 %v3973, 113
  %v4105 = vpop.permute.xlu0 %4104
  %v4150 = vadd.f32 %v3710, %v4019
  %v4151 = vadd.f32 %v3711, %v4021
  %v4152 = vadd.f32 %v3712, %v4023
  %v4153 = vadd.f32 %v3713, %v4025
  %v4154 = vadd.f32 %v3714, %v4027
  %v4155 = vadd.f32 %v3715, %v4029
  %v4156 = vadd.f32 %v3716, %v4031
  %v4157 = vadd.f32 %v3717, %v4033
  %v4158 = vadd.f32 %v3718, %v4035
  %v4159 = vadd.f32 %v3719, %v4037
  %v4160 = vadd.f32 %v3720, %v4039
  %v4161 = vadd.f32 %v3721, %v4041
  %v4162 = vadd.f32 %v3722, %v4043
  %v4163 = vadd.f32 %v3723, %v4045
  %v4164 = vadd.f32 %v3724, %v4047
  %v4165 = vadd.f32 %v3725, %v4049
  %v4166 = vadd.f32 %v3726, %v4051
  %v4167 = vadd.f32 %v3727, %v4053
  %v4168 = vadd.f32 %v3728, %v4055
  %v4169 = vadd.f32 %v3729, %v4057
  %v4170 = vadd.f32 %v3730, %v4059
  %v4171 = vadd.f32 %v3731, %v4061
  %v4172 = vadd.f32 %v3732, %v4063
  %v4173 = vadd.f32 %v3733, %v4065
  %v4174 = vadd.f32 %v3734, %v4067
  %v4175 = vadd.f32 %v3735, %v4069
  %v4176 = vadd.f32 %v3736, %v4071
  %v4177 = vadd.f32 %v3737, %v4073
  %v4178 = vadd.f32 %v3738, %v4075
  %v4179 = vadd.f32 %v3739, %v4077
  %v4180 = vadd.f32 %v3740, %v4079
  %v4181 = vadd.f32 %v3741, %v4081
  %v4182 = vadd.f32 %v3742, %v4083
  %v4183 = vadd.f32 %v3743, %v4085
  %v4184 = vadd.f32 %v3744, %v4087
  %v4185 = vadd.f32 %v3745, %v4089
  %v4186 = vadd.f32 %v3746, %v4091
  %v4187 = vadd.f32 %v3747, %v4093
  %v4188 = vadd.f32 %v3748, %v4095
  %v4189 = vadd.f32 %v3749, %v4097
  %v4190 = vadd.f32 %v3750, %v4099
  %v4191 = vadd.f32 %v3751, %v4101
  %v4192 = vadd.f32 %v3752, %v4103
  %v4193 = vadd.f32 %v3753, %v4105
  %4194 = vset.pattern.permute.xlu0 8
  %4195 = vperm.xlu0 %4194, %v55
  %v4196 = vpop.permute.xlu0 %4195
  %4198 = vset.pattern.permute.xlu0 8
  %4199 = vperm.xlu0 %4198, %v56
  %v4200 = vpop.permute.xlu0 %4199
  %4202 = vset.pattern.permute.xlu0 8
  %4203 = vperm.xlu0 %4202, %v57
  %v4204 = vpop.permute.xlu0 %4203
  %4206 = vset.pattern.permute.xlu0 8
  %4207 = vperm.xlu0 %4206, %v58
  %v4208 = vpop.permute.xlu0 %4207
  %4210 = vset.pattern.permute.xlu0 8
  %4211 = vperm.xlu0 %4210, %v59
  %v4212 = vpop.permute.xlu0 %4211
  %4214 = vset.pattern.permute.xlu0 8
  %4215 = vperm.xlu0 %4214, %v60
  %v4216 = vpop.permute.xlu0 %4215
  %4218 = vset.pattern.permute.xlu0 8
  %4219 = vperm.xlu0 %4218, %v61
  %v4220 = vpop.permute.xlu0 %4219
  %4222 = vset.pattern.permute.xlu0 8
  %4223 = vperm.xlu0 %4222, %v62
  %v4224 = vpop.permute.xlu0 %4223
  %4226 = vset.pattern.permute.xlu0 8
  %4227 = vperm.xlu0 %4226, %v63
  %v4228 = vpop.permute.xlu0 %4227
  %4230 = vset.pattern.permute.xlu0 8
  %4231 = vperm.xlu0 %4230, %v64
  %v4232 = vpop.permute.xlu0 %4231
  %4234 = vset.pattern.permute.xlu0 8
  %4235 = vperm.xlu0 %4234, %v65
  %v4236 = vpop.permute.xlu0 %4235
  %4238 = vset.pattern.permute.xlu0 8
  %4239 = vperm.xlu0 %4238, %v66
  %v4240 = vpop.permute.xlu0 %4239
  %4242 = vset.pattern.permute.xlu0 8
  %4243 = vperm.xlu0 %4242, %v67
  %v4244 = vpop.permute.xlu0 %4243
  %4246 = vset.pattern.permute.xlu0 8
  %4247 = vperm.xlu0 %4246, %v68
  %v4248 = vpop.permute.xlu0 %4247
  %4250 = vset.pattern.permute.xlu0 8
  %4251 = vperm.xlu0 %4250, %v69
  %v4252 = vpop.permute.xlu0 %4251
  %4254 = vset.pattern.permute.xlu0 8
  %4255 = vperm.xlu0 %4254, %v70
  %v4256 = vpop.permute.xlu0 %4255
  %4258 = vset.pattern.permute.xlu0 8
  %4259 = vperm.xlu0 %4258, %v71
  %v4260 = vpop.permute.xlu0 %4259
  %4262 = vset.pattern.permute.xlu0 8
  %4263 = vperm.xlu0 %4262, %v72
  %v4264 = vpop.permute.xlu0 %4263
  %4266 = vset.pattern.permute.xlu0 8
  %4267 = vperm.xlu0 %4266, %v73
  %v4268 = vpop.permute.xlu0 %4267
  %4270 = vset.pattern.permute.xlu0 8
  %4271 = vperm.xlu0 %4270, %v74
  %v4272 = vpop.permute.xlu0 %4271
  %4274 = vset.pattern.permute.xlu0 8
  %4275 = vperm.xlu0 %4274, %v75
  %v4276 = vpop.permute.xlu0 %4275
  %4278 = vset.pattern.permute.xlu0 8
  %4279 = vperm.xlu0 %4278, %v76
  %v4280 = vpop.permute.xlu0 %4279
  %4282 = vset.pattern.permute.xlu0 8
  %4283 = vperm.xlu0 %4282, %v77
  %v4284 = vpop.permute.xlu0 %4283
  %4286 = vset.pattern.permute.xlu0 8
  %4287 = vperm.xlu0 %4286, %v78
  %v4288 = vpop.permute.xlu0 %4287
  %4290 = vset.pattern.permute.xlu0 8
  %4291 = vperm.xlu0 %4290, %v79
  %v4292 = vpop.permute.xlu0 %4291
  %4294 = vset.pattern.permute.xlu0 8
  %4295 = vperm.xlu0 %4294, %v80
  %v4296 = vpop.permute.xlu0 %4295
  %4298 = vset.pattern.permute.xlu0 8
  %4299 = vperm.xlu0 %4298, %v81
  %v4300 = vpop.permute.xlu0 %4299
  %4302 = vset.pattern.permute.xlu0 8
  %4303 = vperm.xlu0 %4302, %v82
  %v4304 = vpop.permute.xlu0 %4303
  %4306 = vset.pattern.permute.xlu0 8
  %4307 = vperm.xlu0 %4306, %v83
  %v4308 = vpop.permute.xlu0 %4307
  %4310 = vset.pattern.permute.xlu0 8
  %4311 = vperm.xlu0 %4310, %v84
  %v4312 = vpop.permute.xlu0 %4311
  %4314 = vset.pattern.permute.xlu0 8
  %4315 = vperm.xlu0 %4314, %v85
  %v4316 = vpop.permute.xlu0 %4315
  %4318 = vset.pattern.permute.xlu0 8
  %4319 = vperm.xlu0 %4318, %v86
  %v4320 = vpop.permute.xlu0 %4319
  %4322 = vset.pattern.permute.xlu0 8
  %4323 = vperm.xlu0 %4322, %v87
  %v4324 = vpop.permute.xlu0 %4323
  %4326 = vset.pattern.permute.xlu0 8
  %4327 = vperm.xlu0 %4326, %v88
  %v4328 = vpop.permute.xlu0 %4327
  %4330 = vset.pattern.permute.xlu0 8
  %4331 = vperm.xlu0 %4330, %v89
  %v4332 = vpop.permute.xlu0 %4331
  %4334 = vset.pattern.permute.xlu0 8
  %4335 = vperm.xlu0 %4334, %v90
  %v4336 = vpop.permute.xlu0 %4335
  %4338 = vset.pattern.permute.xlu0 8
  %4339 = vperm.xlu0 %4338, %v91
  %v4340 = vpop.permute.xlu0 %4339
  %4342 = vset.pattern.permute.xlu0 8
  %4343 = vperm.xlu0 %4342, %v92
  %v4344 = vpop.permute.xlu0 %4343
  %4346 = vset.pattern.permute.xlu0 8
  %4347 = vperm.xlu0 %4346, %v93
  %v4348 = vpop.permute.xlu0 %4347
  %4350 = vset.pattern.permute.xlu0 8
  %4351 = vperm.xlu0 %4350, %v94
  %v4352 = vpop.permute.xlu0 %4351
  %4354 = vset.pattern.permute.xlu0 8
  %4355 = vperm.xlu0 %4354, %v95
  %v4356 = vpop.permute.xlu0 %4355
  %4358 = vset.pattern.permute.xlu0 8
  %4359 = vperm.xlu0 %4358, %v96
  %v4360 = vpop.permute.xlu0 %4359
  %4362 = vset.pattern.permute.xlu0 8
  %4363 = vperm.xlu0 %4362, %v97
  %v4364 = vpop.permute.xlu0 %4363
  %4366 = vset.pattern.permute.xlu0 8
  %4367 = vperm.xlu0 %4366, %v98
  %v4368 = vpop.permute.xlu0 %4367
  %v4370 = vmul.f32 %v982, %v4196
  %v4371 = vmul.f32 %v983, %v4200
  %v4372 = vmul.f32 %v984, %v4204
  %v4373 = vmul.f32 %v985, %v4208
  %v4374 = vmul.f32 %v986, %v4212
  %v4375 = vmul.f32 %v987, %v4216
  %v4376 = vmul.f32 %v988, %v4220
  %v4377 = vmul.f32 %v989, %v4224
  %v4378 = vmul.f32 %v990, %v4228
  %v4379 = vmul.f32 %v991, %v4232
  %v4380 = vmul.f32 %v992, %v4236
  %v4381 = vmul.f32 %v993, %v4240
  %v4382 = vmul.f32 %v994, %v4244
  %v4383 = vmul.f32 %v995, %v4248
  %v4384 = vmul.f32 %v996, %v4252
  %v4385 = vmul.f32 %v997, %v4256
  %v4386 = vmul.f32 %v998, %v4260
  %v4387 = vmul.f32 %v999, %v4264
  %v4388 = vmul.f32 %v1000, %v4268
  %v4389 = vmul.f32 %v1001, %v4272
  %v4390 = vmul.f32 %v1002, %v4276
  %v4391 = vmul.f32 %v1003, %v4280
  %v4392 = vmul.f32 %v1004, %v4284
  %v4393 = vmul.f32 %v1005, %v4288
  %v4394 = vmul.f32 %v1006, %v4292
  %v4395 = vmul.f32 %v1007, %v4296
  %v4396 = vmul.f32 %v1008, %v4300
  %v4397 = vmul.f32 %v1009, %v4304
  %v4398 = vmul.f32 %v1010, %v4308
  %v4399 = vmul.f32 %v1011, %v4312
  %v4400 = vmul.f32 %v1012, %v4316
  %v4401 = vmul.f32 %v1013, %v4320
  %v4402 = vmul.f32 %v1014, %v4324
  %v4403 = vmul.f32 %v1015, %v4328
  %v4404 = vmul.f32 %v1016, %v4332
  %v4405 = vmul.f32 %v1017, %v4336
  %v4406 = vmul.f32 %v1018, %v4340
  %v4407 = vmul.f32 %v1019, %v4344
  %v4408 = vmul.f32 %v1020, %v4348
  %v4409 = vmul.f32 %v1021, %v4352
  %v4410 = vmul.f32 %v1022, %v4356
  %v4411 = vmul.f32 %v1023, %v4360
  %v4412 = vmul.f32 %v1024, %v4364
  %v4413 = vmul.f32 %v1025, %v4368
  %4458 = vrot.lane.b32.xlu0 %v4370, 112
  %v4459 = vpop.permute.xlu0 %4458
  %4460 = vrot.lane.b32.xlu0 %v4371, 112
  %v4461 = vpop.permute.xlu0 %4460
  %4462 = vrot.lane.b32.xlu0 %v4372, 112
  %v4463 = vpop.permute.xlu0 %4462
  %4464 = vrot.lane.b32.xlu0 %v4373, 112
  %v4465 = vpop.permute.xlu0 %4464
  %4466 = vrot.lane.b32.xlu0 %v4374, 112
  %v4467 = vpop.permute.xlu0 %4466
  %4468 = vrot.lane.b32.xlu0 %v4375, 112
  %v4469 = vpop.permute.xlu0 %4468
  %4470 = vrot.lane.b32.xlu0 %v4376, 112
  %v4471 = vpop.permute.xlu0 %4470
  %4472 = vrot.lane.b32.xlu0 %v4377, 112
  %v4473 = vpop.permute.xlu0 %4472
  %4474 = vrot.lane.b32.xlu0 %v4378, 112
  %v4475 = vpop.permute.xlu0 %4474
  %4476 = vrot.lane.b32.xlu0 %v4379, 112
  %v4477 = vpop.permute.xlu0 %4476
  %4478 = vrot.lane.b32.xlu0 %v4380, 112
  %v4479 = vpop.permute.xlu0 %4478
  %4480 = vrot.lane.b32.xlu0 %v4381, 112
  %v4481 = vpop.permute.xlu0 %4480
  %4482 = vrot.lane.b32.xlu0 %v4382, 112
  %v4483 = vpop.permute.xlu0 %4482
  %4484 = vrot.lane.b32.xlu0 %v4383, 112
  %v4485 = vpop.permute.xlu0 %4484
  %4486 = vrot.lane.b32.xlu0 %v4384, 112
  %v4487 = vpop.permute.xlu0 %4486
  %4488 = vrot.lane.b32.xlu0 %v4385, 112
  %v4489 = vpop.permute.xlu0 %4488
  %4490 = vrot.lane.b32.xlu0 %v4386, 112
  %v4491 = vpop.permute.xlu0 %4490
  %4492 = vrot.lane.b32.xlu0 %v4387, 112
  %v4493 = vpop.permute.xlu0 %4492
  %4494 = vrot.lane.b32.xlu0 %v4388, 112
  %v4495 = vpop.permute.xlu0 %4494
  %4496 = vrot.lane.b32.xlu0 %v4389, 112
  %v4497 = vpop.permute.xlu0 %4496
  %4498 = vrot.lane.b32.xlu0 %v4390, 112
  %v4499 = vpop.permute.xlu0 %4498
  %4500 = vrot.lane.b32.xlu0 %v4391, 112
  %v4501 = vpop.permute.xlu0 %4500
  %4502 = vrot.lane.b32.xlu0 %v4392, 112
  %v4503 = vpop.permute.xlu0 %4502
  %4504 = vrot.lane.b32.xlu0 %v4393, 112
  %v4505 = vpop.permute.xlu0 %4504
  %4506 = vrot.lane.b32.xlu0 %v4394, 112
  %v4507 = vpop.permute.xlu0 %4506
  %4508 = vrot.lane.b32.xlu0 %v4395, 112
  %v4509 = vpop.permute.xlu0 %4508
  %4510 = vrot.lane.b32.xlu0 %v4396, 112
  %v4511 = vpop.permute.xlu0 %4510
  %4512 = vrot.lane.b32.xlu0 %v4397, 112
  %v4513 = vpop.permute.xlu0 %4512
  %4514 = vrot.lane.b32.xlu0 %v4398, 112
  %v4515 = vpop.permute.xlu0 %4514
  %4516 = vrot.lane.b32.xlu0 %v4399, 112
  %v4517 = vpop.permute.xlu0 %4516
  %4518 = vrot.lane.b32.xlu0 %v4400, 112
  %v4519 = vpop.permute.xlu0 %4518
  %4520 = vrot.lane.b32.xlu0 %v4401, 112
  %v4521 = vpop.permute.xlu0 %4520
  %4522 = vrot.lane.b32.xlu0 %v4402, 112
  %v4523 = vpop.permute.xlu0 %4522
  %4524 = vrot.lane.b32.xlu0 %v4403, 112
  %v4525 = vpop.permute.xlu0 %4524
  %4526 = vrot.lane.b32.xlu0 %v4404, 112
  %v4527 = vpop.permute.xlu0 %4526
  %4528 = vrot.lane.b32.xlu0 %v4405, 112
  %v4529 = vpop.permute.xlu0 %4528
  %4530 = vrot.lane.b32.xlu0 %v4406, 112
  %v4531 = vpop.permute.xlu0 %4530
  %4532 = vrot.lane.b32.xlu0 %v4407, 112
  %v4533 = vpop.permute.xlu0 %4532
  %4534 = vrot.lane.b32.xlu0 %v4408, 112
  %v4535 = vpop.permute.xlu0 %4534
  %4536 = vrot.lane.b32.xlu0 %v4409, 112
  %v4537 = vpop.permute.xlu0 %4536
  %4538 = vrot.lane.b32.xlu0 %v4410, 112
  %v4539 = vpop.permute.xlu0 %4538
  %4540 = vrot.lane.b32.xlu0 %v4411, 112
  %v4541 = vpop.permute.xlu0 %4540
  %4542 = vrot.lane.b32.xlu0 %v4412, 112
  %v4543 = vpop.permute.xlu0 %4542
  %4544 = vrot.lane.b32.xlu0 %v4413, 112
  %v4545 = vpop.permute.xlu0 %4544
  %v4590 = vadd.f32 %v4150, %v4459
  %v4591 = vadd.f32 %v4151, %v4461
  %v4592 = vadd.f32 %v4152, %v4463
  %v4593 = vadd.f32 %v4153, %v4465
  %v4594 = vadd.f32 %v4154, %v4467
  %v4595 = vadd.f32 %v4155, %v4469
  %v4596 = vadd.f32 %v4156, %v4471
  %v4597 = vadd.f32 %v4157, %v4473
  %v4598 = vadd.f32 %v4158, %v4475
  %v4599 = vadd.f32 %v4159, %v4477
  %v4600 = vadd.f32 %v4160, %v4479
  %v4601 = vadd.f32 %v4161, %v4481
  %v4602 = vadd.f32 %v4162, %v4483
  %v4603 = vadd.f32 %v4163, %v4485
  %v4604 = vadd.f32 %v4164, %v4487
  %v4605 = vadd.f32 %v4165, %v4489
  %v4606 = vadd.f32 %v4166, %v4491
  %v4607 = vadd.f32 %v4167, %v4493
  %v4608 = vadd.f32 %v4168, %v4495
  %v4609 = vadd.f32 %v4169, %v4497
  %v4610 = vadd.f32 %v4170, %v4499
  %v4611 = vadd.f32 %v4171, %v4501
  %v4612 = vadd.f32 %v4172, %v4503
  %v4613 = vadd.f32 %v4173, %v4505
  %v4614 = vadd.f32 %v4174, %v4507
  %v4615 = vadd.f32 %v4175, %v4509
  %v4616 = vadd.f32 %v4176, %v4511
  %v4617 = vadd.f32 %v4177, %v4513
  %v4618 = vadd.f32 %v4178, %v4515
  %v4619 = vadd.f32 %v4179, %v4517
  %v4620 = vadd.f32 %v4180, %v4519
  %v4621 = vadd.f32 %v4181, %v4521
  %v4622 = vadd.f32 %v4182, %v4523
  %v4623 = vadd.f32 %v4183, %v4525
  %v4624 = vadd.f32 %v4184, %v4527
  %v4625 = vadd.f32 %v4185, %v4529
  %v4626 = vadd.f32 %v4186, %v4531
  %v4627 = vadd.f32 %v4187, %v4533
  %v4628 = vadd.f32 %v4188, %v4535
  %v4629 = vadd.f32 %v4189, %v4537
  %v4630 = vadd.f32 %v4190, %v4539
  %v4631 = vadd.f32 %v4191, %v4541
  %v4632 = vadd.f32 %v4192, %v4543
  %v4633 = vadd.f32 %v4193, %v4545
  %vm4634 = vcmask 400384
  %4635 = vst.msk [vmem:[%s2] sm:$0xff] %vm4634, %v4590
  %4636 = vst.msk [vmem:[%s2 + $0x8] sm:$0xff] %vm4634, %v4591
  %4637 = vst.msk [vmem:[%s2 + $0x10] sm:$0xff] %vm4634, %v4592
  %4638 = vst.msk [vmem:[%s2 + $0x18] sm:$0xff] %vm4634, %v4593
  %4639 = vst.msk [vmem:[%s2 + $0x20] sm:$0xff] %vm4634, %v4594
  %4640 = vst.msk [vmem:[%s2 + $0x28] sm:$0xff] %vm4634, %v4595
  %4641 = vst.msk [vmem:[%s2 + $0x30] sm:$0xff] %vm4634, %v4596
  %4642 = vst.msk [vmem:[%s2 + $0x38] sm:$0xff] %vm4634, %v4597
  %4643 = vst.msk [vmem:[%s2 + $0x40] sm:$0xff] %vm4634, %v4598
  %4644 = vst.msk [vmem:[%s2 + $0x48] sm:$0xff] %vm4634, %v4599
  %4645 = vst.msk [vmem:[%s2 + $0x50] sm:$0xff] %vm4634, %v4600
  %4646 = vst.msk [vmem:[%s2 + $0x58] sm:$0xff] %vm4634, %v4601
  %4647 = vst.msk [vmem:[%s2 + $0x60] sm:$0xff] %vm4634, %v4602
  %4648 = vst.msk [vmem:[%s2 + $0x68] sm:$0xff] %vm4634, %v4603
  %4649 = vst.msk [vmem:[%s2 + $0x70] sm:$0xff] %vm4634, %v4604
  %4650 = vst.msk [vmem:[%s2 + $0x78] sm:$0xff] %vm4634, %v4605
  %4651 = vst.msk [vmem:[%s2 + $0x80] sm:$0xff] %vm4634, %v4606
  %4652 = vst.msk [vmem:[%s2 + $0x88] sm:$0xff] %vm4634, %v4607
  %4653 = vst.msk [vmem:[%s2 + $0x90] sm:$0xff] %vm4634, %v4608
  %4654 = vst.msk [vmem:[%s2 + $0x98] sm:$0xff] %vm4634, %v4609
  %4655 = vst.msk [vmem:[%s2 + $0xa0] sm:$0xff] %vm4634, %v4610
  %4656 = vst.msk [vmem:[%s2 + $0xa8] sm:$0xff] %vm4634, %v4611
  %4657 = vst.msk [vmem:[%s2 + $0xb0] sm:$0xff] %vm4634, %v4612
  %4658 = vst.msk [vmem:[%s2 + $0xb8] sm:$0xff] %vm4634, %v4613
  %4659 = vst.msk [vmem:[%s2 + $0xc0] sm:$0xff] %vm4634, %v4614
  %4660 = vst.msk [vmem:[%s2 + $0xc8] sm:$0xff] %vm4634, %v4615
  %4661 = vst.msk [vmem:[%s2 + $0xd0] sm:$0xff] %vm4634, %v4616
  %4662 = vst.msk [vmem:[%s2 + $0xd8] sm:$0xff] %vm4634, %v4617
  %4663 = vst.msk [vmem:[%s2 + $0xe0] sm:$0xff] %vm4634, %v4618
  %4664 = vst.msk [vmem:[%s2 + $0xe8] sm:$0xff] %vm4634, %v4619
  %4665 = vst.msk [vmem:[%s2 + $0xf0] sm:$0xff] %vm4634, %v4620
  %4666 = vst.msk [vmem:[%s2 + $0xf8] sm:$0xff] %vm4634, %v4621
  %4667 = vst.msk [vmem:[%s2 + $0x100] sm:$0xff] %vm4634, %v4622
  %4668 = vst.msk [vmem:[%s2 + $0x108] sm:$0xff] %vm4634, %v4623
  %4669 = vst.msk [vmem:[%s2 + $0x110] sm:$0xff] %vm4634, %v4624
  %4670 = vst.msk [vmem:[%s2 + $0x118] sm:$0xff] %vm4634, %v4625
  %4671 = vst.msk [vmem:[%s2 + $0x120] sm:$0xff] %vm4634, %v4626
  %4672 = vst.msk [vmem:[%s2 + $0x128] sm:$0xff] %vm4634, %v4627
  %4673 = vst.msk [vmem:[%s2 + $0x130] sm:$0xff] %vm4634, %v4628
  %4674 = vst.msk [vmem:[%s2 + $0x138] sm:$0xff] %vm4634, %v4629
  %4675 = vst.msk [vmem:[%s2 + $0x140] sm:$0xff] %vm4634, %v4630
  %4676 = vst.msk [vmem:[%s2 + $0x148] sm:$0xff] %vm4634, %v4631
  %4677 = vst.msk [vmem:[%s2 + $0x150] sm:$0xff] %vm4634, %v4632
  %4678 = vst.msk [vmem:[%s2 + $0x158] sm:$0xff] %vm4634, %v4633
  // Predicated region
  $region10: #{tpu_custom_call.1} parent=0 // pred_check
    _
  $region11: #{tpu_custom_call.1} parent=0 // pred_check_branch
    %4680 = sbr.rel (0) target = $region13
  $region12: #{tpu_custom_call.1} parent=0 // pred_region
    _
  $region13: #{tpu_custom_call.1} parent=0 // pred_fallthru
    _
  // Predicated region
  $region14: #{tpu_custom_call.1} parent=0 // pred_check
    _
  $region15: #{tpu_custom_call.1} parent=0 // pred_check_branch
    %4682 = sbr.rel (0) target = $region17
  $region16: #{tpu_custom_call.1} parent=0 // pred_region
    _
  $region17: #{tpu_custom_call.1} parent=0 // pred_fallthru
    _

</llo_original>
